<compile_context>
chip_gen: v7x
topology: tpu7x:2x2x1
jax: 0.10.0
libtpu: 0.0.40
codegen_flags: <defaults>
</compile_context>

<pallas_src>
import functools

import jax
import jax.numpy as jnp
from jax import lax
from jax.experimental import pallas as pl
from jax.experimental.pallas import tpu as pltpu

LANE = 128
_VMEM_LIMIT = 48 * 1024 * 1024  # safe on v5e/v6e (128 MiB) and v7x (64 MiB) VMEM


def _round_up(x, m):
    return ((x + m - 1) // m) * m


def _pick_tile_rows(H, W, target_m=128):
    """Largest divisor of H whose row tile gives a GEMM M = tile_rows*W <= target_m."""
    best = 1
    for d in range(1, H + 1):
        if H % d == 0 and d * W <= target_m:
            best = d
    return best


# ---------------------------------------------------------------------------
# Pass 1: 3x3 conv (pad=1, no bias) + per-tile BN partial statistics
# ---------------------------------------------------------------------------
def _conv3x3_stats_kernel(x_ref, w_ref, y_ref, stats_ref, pad_ref):
    """One (image, row-tile) step.

    x_ref:     (1, H, W, Cin)         un-padded NHWC image (same block for all row tiles)
    w_ref:     (9*Cin_pad, Cout_pad)  taps kh-major, zero-padded along Cin/Cout
    y_ref:     (1, TH, W, Cout_pad)   pre-BN conv output tile (f32)
    stats_ref: (1, 1, 2, Cout_pad)    per-tile [sum, sum_of_squares] over TH*W positions
    pad_ref:   (H+2, W+2, Cin_pad)    VMEM scratch: zero-padded image, rebuilt at tile 0
    """
    _, H, W, Cin = x_ref.shape
    Cin_pad = pad_ref.shape[-1]
    _, TH, _, Cout_pad = y_ref.shape
    i = pl.program_id(1)

    # Build the zero-padded (spatial + channel) image once per image, entirely in VMEM.
    @pl.when(i == 0)
    def _build_padded_image():
        pad_ref[...] = jnp.zeros_like(pad_ref)
        pad_ref[1:H + 1, 1:W + 1, :Cin] = x_ref[0]

    row0 = pl.multiple_of(i * TH, TH)

    # im2col for this row tile: one lane-aligned (Cin_pad-wide) chunk per tap, then a
    # single GEMM with K = 9*Cin_pad instead of nine small K=Cin matmuls.
    cols = []
    for dy in range(3):
        for dx in range(3):
            win = pad_ref[pl.ds(row0 + dy, TH), pl.ds(dx, W), :]      # (TH, W, Cin_pad)
            cols.append(win.reshape(TH * W, Cin_pad).astype(w_ref.dtype))
    patches = jnp.concatenate(cols, axis=-1)                          # (TH*W, 9*Cin_pad)

    acc = jnp.dot(patches, w_ref[...], preferred_element_type=jnp.float32)

    # NOTE: conv bias intentionally omitted — training-mode BatchNorm subtracts the
    # per-channel batch mean, which cancels a constant bias exactly.
    y_ref[...] = acc.reshape(1, TH, W, Cout_pad)
    stats_ref[0, 0, 0:1, :] = jnp.sum(acc, axis=0, keepdims=True)
    stats_ref[0, 0, 1:2, :] = jnp.sum(acc * acc, axis=0, keepdims=True)


def _conv3x3_stats(x_nhwc, w_flat, cin_pad, cout_pad, tile_rows):
    N, H, W, Cin = x_nhwc.shape
    n_tiles = H // tile_rows
    y, stats = pl.pallas_call(
        _conv3x3_stats_kernel,
        out_shape=(jax.ShapeDtypeStruct((N, H, W, cout_pad), jnp.float32),
                   jax.ShapeDtypeStruct((N, n_tiles, 2, cout_pad), jnp.float32)),
        grid_spec=pltpu.PrefetchScalarGridSpec(
            num_scalar_prefetch=0,
            grid=(N, n_tiles),
            in_specs=[
                # Whole image per batch index: the block index only changes with n, so
                # Pallas DMAs it once per image and reuses it across all row tiles.
                pl.BlockSpec((1, H, W, Cin), lambda n, i: (n, 0, 0, 0)),
                pl.BlockSpec((9 * cin_pad, cout_pad), lambda n, i: (0, 0)),
            ],
            out_specs=(
                pl.BlockSpec((1, tile_rows, W, cout_pad), lambda n, i: (n, i, 0, 0)),
                pl.BlockSpec((1, 1, 2, cout_pad), lambda n, i: (n, i, 0, 0)),
            ),
            scratch_shapes=[pltpu.VMEM((H + 2, W + 2, cin_pad), jnp.float32)],
        ),
        compiler_params=pltpu.CompilerParams(
            # Batch axis parallel (v7x megacore). Row-tile axis stays "arbitrary"
            # because the padded-image scratch is rebuilt at row-tile 0 of each image.
            dimension_semantics=("parallel", "arbitrary"),
            vmem_limit_bytes=_VMEM_LIMIT,
        ),
    )(x_nhwc, w_flat)
    return y, stats


# ---------------------------------------------------------------------------
# Pass 2: BatchNorm (folded to per-channel scale/shift) + ReLU, elementwise
# ---------------------------------------------------------------------------
def _bn_relu_kernel(x_ref, scale_ref, shift_ref, o_ref):
    o_ref[...] = jnp.maximum(x_ref[...] * scale_ref[...] + shift_ref[...], 0.0)


def _bn_relu(x_nhwc, scale, shift, tile_rows):
    N, H, W, C = x_nhwc.shape
    n_tiles = H // tile_rows
    return pl.pallas_call(
        _bn_relu_kernel,
        out_shape=jax.ShapeDtypeStruct((N, H, W, C), jnp.float32),
        grid_spec=pltpu.PrefetchScalarGridSpec(
            num_scalar_prefetch=0,
            grid=(N, n_tiles),
            in_specs=[
                pl.BlockSpec((1, tile_rows, W, C), lambda n, i: (n, i, 0, 0)),
                pl.BlockSpec((1, C), lambda n, i: (0, 0)),
                pl.BlockSpec((1, C), lambda n, i: (0, 0)),
            ],
            out_specs=pl.BlockSpec((1, tile_rows, W, C), lambda n, i: (n, i, 0, 0)),
        ),
        compiler_params=pltpu.CompilerParams(
            dimension_semantics=("parallel", "parallel"),
            vmem_limit_bytes=_VMEM_LIMIT,
        ),
    )(x_nhwc, scale, shift)


# ---------------------------------------------------------------------------
# Glue (tiny per-channel math, weight prep, public wrapper)
# ---------------------------------------------------------------------------
def _bn_scale_shift(stats, gamma_pad, beta_pad, count, eps=1e-5):
    s = jnp.sum(stats[:, :, 0, :], axis=(0, 1))
    sq = jnp.sum(stats[:, :, 1, :], axis=(0, 1))
    mean = s / count
    var = jnp.maximum(sq / count - mean * mean, 0.0)   # biased (training-mode) variance
    scale = gamma_pad * lax.rsqrt(var + eps)
    shift = beta_pad - mean * scale
    # Padded channels: gamma_pad = beta_pad = 0 -> scale = shift = 0, so lane padding
    # stays exactly 0 through BN+ReLU and feeds zero weight rows in the next conv.
    return (scale.reshape(1, -1).astype(jnp.float32),
            shift.reshape(1, -1).astype(jnp.float32))


def _prep_conv_weight(w_oihw, cin_pad, cout_pad, dtype):
    cout, cin = w_oihw.shape[0], w_oihw.shape[1]
    w = jnp.transpose(w_oihw, (2, 3, 1, 0)).reshape(9, cin, cout)   # [kh*3+kw, Cin, Cout]
    w = jnp.pad(w, ((0, 0), (0, cin_pad - cin), (0, cout_pad - cout)))
    return w.reshape(9 * cin_pad, cout_pad).astype(dtype)


def _pad_vec(v, cpad):
    return jnp.pad(v, (0, cpad - v.shape[0])).astype(jnp.float32)


@functools.partial(jax.jit, static_argnames=("compute_dtype",))
def double_conv_forward(x_nchw, params, compute_dtype=jnp.bfloat16):
    """Matches DoubleConv.forward (training-mode BN): NCHW in, NCHW out."""
    N, Cin, H, W = x_nchw.shape
    Cout = params["w1"].shape[0]
    cin_pad = _round_up(Cin, LANE)
    cout_pad = _round_up(Cout, LANE)
    tile_rows = _pick_tile_rows(H, W)
    count = N * H * W

    x = jnp.transpose(x_nchw, (0, 2, 3, 1))                 # NCHW -> NHWC

    w1 = _prep_conv_weight(params["w1"], cin_pad, cout_pad, compute_dtype)
    w2 = _prep_conv_weight(params["w2"], cout_pad, cout_pad, compute_dtype)
    g1, be1 = _pad_vec(params["g1"], cout_pad), _pad_vec(params["be1"], cout_pad)
    g2, be2 = _pad_vec(params["g2"], cout_pad), _pad_vec(params["be2"], cout_pad)

    # Stage 1: conv -> BN(batch stats) -> ReLU
    y1_raw, st1 = _conv3x3_stats(x, w1, cin_pad, cout_pad, tile_rows)
    sc1, sh1 = _bn_scale_shift(st1, g1, be1, count)
    y1 = _bn_relu(y1_raw, sc1, sh1, tile_rows)               # lane-padded channels stay 0

    # Stage 2 consumes the lane-padded activation directly (matching weight rows are 0),
    # so there is no slice/re-pad HBM round-trip between the stages.
    y2_raw, st2 = _conv3x3_stats(y1, w2, cout_pad, cout_pad, tile_rows)
    sc2, sh2 = _bn_scale_shift(st2, g2, be2, count)
    y2 = _bn_relu(y2_raw, sc2, sh2, tile_rows)

    # TODO(synk): fuse stage-1 BN+ReLU into the stage-2 conv pass (and both stages into a
    # single pallas_call when the feature map fits VMEM) to drop the intermediate HBM pass.
    return jnp.transpose(y2[..., :Cout], (0, 3, 1, 2))       # NHWC -> NCHW


def init_params(key, in_channels, out_channels):
    k1, k2, k3, k4 = jax.random.split(key, 4)
    # PyTorch Conv2d weight layout: [Cout, Cin, kh, kw]
    w1 = jax.random.normal(k1, (out_channels, in_channels, 3, 3), jnp.float32) * 0.1
    b1 = jax.random.normal(k2, (out_channels,), jnp.float32) * 0.1
    w2 = jax.random.normal(k3, (out_channels, out_channels, 3, 3), jnp.float32) * 0.1
    b2 = jax.random.normal(k4, (out_channels,), jnp.float32) * 0.1
    g1 = jnp.ones((out_channels,), jnp.float32)     # BN gamma init (PyTorch default)
    be1 = jnp.zeros((out_channels,), jnp.float32)   # BN beta init
    g2 = jnp.ones((out_channels,), jnp.float32)
    be2 = jnp.zeros((out_channels,), jnp.float32)
    return dict(w1=w1, b1=b1, g1=g1, be1=be1, w2=w2, b2=b2, g2=g2, be2=be2)


def double_conv_reference(x_nchw, params, eps=1e-5):
    """Pure-JAX reference mirroring PyTorch semantics (with conv bias, training-mode BN)."""
    def conv(x, w, b):
        y = lax.conv_general_dilated(
            x, w, window_strides=(1, 1), padding=((1, 1), (1, 1)),
            dimension_numbers=("NCHW", "OIHW", "NCHW"))
        return y + b[None, :, None, None]

    def bn_relu(y, g, be):
        mean = y.mean(axis=(0, 2, 3), keepdims=True)
        var = ((y - mean) ** 2).mean(axis=(0, 2, 3), keepdims=True)
        yn = (y - mean) / jnp.sqrt(var + eps)
        yn = yn * g[None, :, None, None] + be[None, :, None, None]
        return jnp.maximum(yn, 0.0)

    y = bn_relu(conv(x_nchw, params["w1"], params["b1"]), params["g1"], params["be1"])
    y = bn_relu(conv(y, params["w2"], params["b2"]), params["g2"], params["be2"])
    return y


if __name__ == "__main__":
    key = jax.random.PRNGKey(0)
    kx, kp = jax.random.split(key)

    N, Cin, Cout, H, W = 2, 4, 8, 16, 16
    x = jax.random.normal(kx, (N, Cin, H, W), jnp.float32)
    params = init_params(kp, Cin, Cout)

    ref = double_conv_reference(x, params)

    # Strict numerical check with f32 MXU operands.
    out_f32 = jax.block_until_ready(
        double_conv_forward(x, params, compute_dtype=jnp.float32))
    assert out_f32.shape == (N, Cout, H, W)
    assert jnp.allclose(out_f32, ref, rtol=1e-3, atol=1e-3), (
        f"f32 max abs err {jnp.max(jnp.abs(out_f32 - ref))}")

    # Default fast path: bf16 MXU operands with f32 accumulation (looser tolerance).
    out = jax.block_until_ready(double_conv_forward(x, params))
    assert out.shape == (N, Cout, H, W)
    assert jnp.allclose(out, ref, rtol=5e-2, atol=5e-2), (
        f"bf16 max abs err {jnp.max(jnp.abs(out - ref))}")

    print("KERNEL_OK")
</pallas_src>

<mosaic_0001>
module attributes {stable_mosaic.version = 11 : i64} {
  func.func @_conv3x3_stats_kernel(%arg0: i32, %arg1: i32, %arg2: memref<1x16x16x4xf32, #tpu.memory_space<vmem>>, %arg3: memref<1152x128xf32, #tpu.memory_space<vmem>>, %arg4: memref<1x8x16x128xf32, #tpu.memory_space<vmem>>, %arg5: memref<1x1x2x128xf32, #tpu.memory_space<vmem>>, %arg6: memref<18x18x128xf32, #tpu.memory_space<vmem>>) attributes {dimension_semantics = [#tpu.dimension_semantics<parallel>, #tpu.dimension_semantics<arbitrary>], iteration_bounds = array<i64: 2, 2>, scalar_prefetch = 0 : i64, scratch_operands = 1 : i64, tpu.core_type = #tpu.core_type<tc>, window_params = [{transform_indices = @transform_0, window_bounds = array<i64: 1, 16, 16, 4>}, {pipeline_mode = #tpu.pipeline_mode<synchronous>, transform_indices = @transform_1, window_bounds = array<i64: 1152, 128>}, {transform_indices = @transform_2, window_bounds = array<i64: 1, 8, 16, 128>}, {transform_indices = @transform_3, window_bounds = array<i64: 1, 1, 2, 128>}]} {
    %c0_i32 = arith.constant 0 : i32
    %0 = arith.cmpi eq, %arg1, %c0_i32 : i32
    %1 = arith.extui %0 : i1 to i32
    %c0_i32_0 = arith.constant 0 : i32
    %2 = arith.cmpi ne, %1, %c0_i32_0 : i32
    scf.if %2 {
      %cst_39 = arith.constant 0.000000e+00 : f32
      %57 = vector.broadcast %cst_39 : f32 to vector<18x18x128xf32>
      %c0_40 = arith.constant 0 : index
      %c0_41 = arith.constant 0 : index
      %c0_42 = arith.constant 0 : index
      %58 = vector.load %arg6[%c0_40, %c0_41, %c0_42] : memref<18x18x128xf32, #tpu.memory_space<vmem>>, vector<18x18x128xf32>
      tpu.vector_store %arg6[%c0_40, %c0_41, %c0_42], %57 {strides = array<i32>} : memref<18x18x128xf32, #tpu.memory_space<vmem>>, vector<18x18x128xf32>,
      %c0_43 = arith.constant 0 : index
      %c0_44 = arith.constant 0 : index
      %c0_45 = arith.constant 0 : index
      %c0_46 = arith.constant 0 : index
      %59 = vector.load %arg2[%c0_43, %c0_44, %c0_45, %c0_46] : memref<1x16x16x4xf32, #tpu.memory_space<vmem>>, vector<1x16x16x4xf32>
      %60 = vector.shape_cast %59 : vector<1x16x16x4xf32> to vector<16x16x4xf32>
      %c1_47 = arith.constant 1 : index
      %c1_48 = arith.constant 1 : index
      %c0_49 = arith.constant 0 : index
      %61 = vector.load %arg6[%c1_47, %c1_48, %c0_49] : memref<18x18x128xf32, #tpu.memory_space<vmem>>, vector<16x16x4xf32>
      tpu.vector_store %arg6[%c1_47, %c1_48, %c0_49], %60 {strides = array<i32>} : memref<18x18x128xf32, #tpu.memory_space<vmem>>, vector<16x16x4xf32>,
    } else {
    }
    %c8_i32 = arith.constant 8 : i32
    %3 = arith.muli %arg1, %c8_i32 : i32
    %4 = tpu.assume_multiple %3, 8 : i32
    %c0_i32_1 = arith.constant 0 : i32
    %5 = arith.addi %4, %c0_i32_1 : i32
    %6 = arith.index_cast %5 : i32 to index
    %c0 = arith.constant 0 : index
    %c0_2 = arith.constant 0 : index
    %7 = vector.load %arg6[%6, %c0, %c0_2] : memref<18x18x128xf32, #tpu.memory_space<vmem>>, vector<8x16x128xf32>
    %8 = vector.shape_cast %7 : vector<8x16x128xf32> to vector<128x128xf32>
    %c0_i32_3 = arith.constant 0 : i32
    %9 = arith.addi %4, %c0_i32_3 : i32
    %10 = arith.index_cast %9 : i32 to index
    %c1 = arith.constant 1 : index
    %c0_4 = arith.constant 0 : index
    %11 = vector.load %arg6[%10, %c1, %c0_4] : memref<18x18x128xf32, #tpu.memory_space<vmem>>, vector<8x16x128xf32>
    %12 = vector.shape_cast %11 : vector<8x16x128xf32> to vector<128x128xf32>
    %c0_i32_5 = arith.constant 0 : i32
    %13 = arith.addi %4, %c0_i32_5 : i32
    %14 = arith.index_cast %13 : i32 to index
    %c2 = arith.constant 2 : index
    %c0_6 = arith.constant 0 : index
    %15 = vector.load %arg6[%14, %c2, %c0_6] : memref<18x18x128xf32, #tpu.memory_space<vmem>>, vector<8x16x128xf32>
    %16 = vector.shape_cast %15 : vector<8x16x128xf32> to vector<128x128xf32>
    %c1_i32 = arith.constant 1 : i32
    %17 = arith.addi %4, %c1_i32 : i32
    %18 = arith.index_cast %17 : i32 to index
    %c0_7 = arith.constant 0 : index
    %c0_8 = arith.constant 0 : index
    %19 = vector.load %arg6[%18, %c0_7, %c0_8] : memref<18x18x128xf32, #tpu.memory_space<vmem>>, vector<8x16x128xf32>
    %20 = vector.shape_cast %19 : vector<8x16x128xf32> to vector<128x128xf32>
    %c1_i32_9 = arith.constant 1 : i32
    %21 = arith.addi %4, %c1_i32_9 : i32
    %22 = arith.index_cast %21 : i32 to index
    %c1_10 = arith.constant 1 : index
    %c0_11 = arith.constant 0 : index
    %23 = vector.load %arg6[%22, %c1_10, %c0_11] : memref<18x18x128xf32, #tpu.memory_space<vmem>>, vector<8x16x128xf32>
    %24 = vector.shape_cast %23 : vector<8x16x128xf32> to vector<128x128xf32>
    %c1_i32_12 = arith.constant 1 : i32
    %25 = arith.addi %4, %c1_i32_12 : i32
    %26 = arith.index_cast %25 : i32 to index
    %c2_13 = arith.constant 2 : index
    %c0_14 = arith.constant 0 : index
    %27 = vector.load %arg6[%26, %c2_13, %c0_14] : memref<18x18x128xf32, #tpu.memory_space<vmem>>, vector<8x16x128xf32>
    %28 = vector.shape_cast %27 : vector<8x16x128xf32> to vector<128x128xf32>
    %c2_i32 = arith.constant 2 : i32
    %29 = arith.addi %4, %c2_i32 : i32
    %30 = arith.index_cast %29 : i32 to index
    %c0_15 = arith.constant 0 : index
    %c0_16 = arith.constant 0 : index
    %31 = vector.load %arg6[%30, %c0_15, %c0_16] : memref<18x18x128xf32, #tpu.memory_space<vmem>>, vector<8x16x128xf32>
    %32 = vector.shape_cast %31 : vector<8x16x128xf32> to vector<128x128xf32>
    %c2_i32_17 = arith.constant 2 : i32
    %33 = arith.addi %4, %c2_i32_17 : i32
    %34 = arith.index_cast %33 : i32 to index
    %c1_18 = arith.constant 1 : index
    %c0_19 = arith.constant 0 : index
    %35 = vector.load %arg6[%34, %c1_18, %c0_19] : memref<18x18x128xf32, #tpu.memory_space<vmem>>, vector<8x16x128xf32>
    %36 = vector.shape_cast %35 : vector<8x16x128xf32> to vector<128x128xf32>
    %c2_i32_20 = arith.constant 2 : i32
    %37 = arith.addi %4, %c2_i32_20 : i32
    %38 = arith.index_cast %37 : i32 to index
    %c2_21 = arith.constant 2 : index
    %c0_22 = arith.constant 0 : index
    %39 = vector.load %arg6[%38, %c2_21, %c0_22] : memref<18x18x128xf32, #tpu.memory_space<vmem>>, vector<8x16x128xf32>
    %40 = vector.shape_cast %39 : vector<8x16x128xf32> to vector<128x128xf32>
    %41 = tpu.concatenate %8, %12, %16, %20, %24, %28, %32, %36, %40 in 1 : vector<128x128xf32>, vector<128x128xf32>, vector<128x128xf32>, vector<128x128xf32>, vector<128x128xf32>, vector<128x128xf32>, vector<128x128xf32>, vector<128x128xf32>, vector<128x128xf32> -> vector<128x1152xf32>
    %c0_23 = arith.constant 0 : index
    %c0_24 = arith.constant 0 : index
    %42 = vector.load %arg3[%c0_23, %c0_24] : memref<1152x128xf32, #tpu.memory_space<vmem>>, vector<1152x128xf32>
    %cst = arith.constant dense<0.000000e+00> : vector<128x128xf32>
    %43 = tpu.matmul %41, %42, %cst {dimension_numbers = #tpu.dot_dimension_numbers<[1], [0], [0], [1], [0, 0, 1, 1], [], []>} : vector<128x1152xf32>, vector<1152x128xf32>, vector<128x128xf32> -> vector<128x128xf32>
    %44 = vector.shape_cast %43 : vector<128x128xf32> to vector<1x8x16x128xf32>
    %c0_25 = arith.constant 0 : index
    %c0_26 = arith.constant 0 : index
    %c0_27 = arith.constant 0 : index
    %c0_28 = arith.constant 0 : index
    %45 = vector.load %arg4[%c0_25, %c0_26, %c0_27, %c0_28] : memref<1x8x16x128xf32, #tpu.memory_space<vmem>>, vector<1x8x16x128xf32>
    tpu.vector_store %arg4[%c0_25, %c0_26, %c0_27, %c0_28], %44 {strides = array<i32>} : memref<1x8x16x128xf32, #tpu.memory_space<vmem>>, vector<1x8x16x128xf32>,
    %cst_29 = arith.constant dense<0.000000e+00> : vector<128xf32>
    %46 = vector.multi_reduction <add>, %43, %cst_29 [0] : vector<128x128xf32> to vector<128xf32>
    %47 = vector.shape_cast %46 : vector<128xf32> to vector<1x128xf32>
    %c0_30 = arith.constant 0 : index
    %c0_31 = arith.constant 0 : index
    %c0_32 = arith.constant 0 : index
    %c0_33 = arith.constant 0 : index
    %48 = vector.load %arg5[%c0_30, %c0_31, %c0_32, %c0_33] : memref<1x1x2x128xf32, #tpu.memory_space<vmem>>, vector<1x1x1x128xf32>
    %49 = vector.shape_cast %48 : vector<1x1x1x128xf32> to vector<1x128xf32>
    %50 = vector.shape_cast %47 : vector<1x128xf32> to vector<1x1x1x128xf32>
    tpu.vector_store %arg5[%c0_30, %c0_31, %c0_32, %c0_33], %50 {strides = array<i32>} : memref<1x1x2x128xf32, #tpu.memory_space<vmem>>, vector<1x1x1x128xf32>,
    %51 = arith.mulf %43, %43 : vector<128x128xf32>
    %cst_34 = arith.constant dense<0.000000e+00> : vector<128xf32>
    %52 = vector.multi_reduction <add>, %51, %cst_34 [0] : vector<128x128xf32> to vector<128xf32>
    %53 = vector.shape_cast %52 : vector<128xf32> to vector<1x128xf32>
    %c0_35 = arith.constant 0 : index
    %c0_36 = arith.constant 0 : index
    %c1_37 = arith.constant 1 : index
    %c0_38 = arith.constant 0 : index
    %54 = vector.load %arg5[%c0_35, %c0_36, %c1_37, %c0_38] : memref<1x1x2x128xf32, #tpu.memory_space<vmem>>, vector<1x1x1x128xf32>
    %55 = vector.shape_cast %54 : vector<1x1x1x128xf32> to vector<1x128xf32>
    %56 = vector.shape_cast %53 : vector<1x128xf32> to vector<1x1x1x128xf32>
    tpu.vector_store %arg5[%c0_35, %c0_36, %c1_37, %c0_38], %56 {strides = array<i32>} : memref<1x1x2x128xf32, #tpu.memory_space<vmem>>, vector<1x1x1x128xf32>,
    return
  }
  func.func @transform_0(%arg0: i32, %arg1: i32) -> (i32, i32, i32, i32) {
    %c0_i32 = arith.constant 0 : i32
    %c0_i32_0 = arith.constant 0 : i32
    %c0_i32_1 = arith.constant 0 : i32
    %c0_i32_2 = arith.constant 0 : i32
    return %arg0, %c0_i32, %c0_i32_0, %c0_i32_1 : i32, i32, i32, i32
  }
  func.func @transform_1(%arg0: i32, %arg1: i32) -> (i32, i32) {
    %c0_i32 = arith.constant 0 : i32
    %c0_i32_0 = arith.constant 0 : i32
    %c0_i32_1 = arith.constant 0 : i32
    return %c0_i32, %c0_i32_0 : i32, i32
  }
  func.func @transform_2(%arg0: i32, %arg1: i32) -> (i32, i32, i32, i32) {
    %c0_i32 = arith.constant 0 : i32
    %c0_i32_0 = arith.constant 0 : i32
    %c0_i32_1 = arith.constant 0 : i32
    return %arg0, %arg1, %c0_i32, %c0_i32_0 : i32, i32, i32, i32
  }
  func.func @transform_3(%arg0: i32, %arg1: i32) -> (i32, i32, i32, i32) {
    %c0_i32 = arith.constant 0 : i32
    %c0_i32_0 = arith.constant 0 : i32
    %c0_i32_1 = arith.constant 0 : i32
    return %arg0, %arg1, %c0_i32, %c0_i32_0 : i32, i32, i32, i32
  }
}

module attributes {stable_mosaic.version = 11 : i64} {
  func.func @_bn_relu_kernel(%arg0: i32, %arg1: i32, %arg2: memref<1x8x16x128xf32, #tpu.memory_space<vmem>>, %arg3: memref<1x128xf32, #tpu.memory_space<vmem>>, %arg4: memref<1x128xf32, #tpu.memory_space<vmem>>, %arg5: memref<1x8x16x128xf32, #tpu.memory_space<vmem>>) attributes {dimension_semantics = [#tpu.dimension_semantics<parallel>, #tpu.dimension_semantics<parallel>], iteration_bounds = array<i64: 2, 2>, scalar_prefetch = 0 : i64, scratch_operands = 0 : i64, tpu.core_type = #tpu.core_type<tc>, window_params = [{transform_indices = @transform_0, window_bounds = array<i64: 1, 8, 16, 128>}, {pipeline_mode = #tpu.pipeline_mode<synchronous>, transform_indices = @transform_1, window_bounds = array<i64: 1, 128>}, {pipeline_mode = #tpu.pipeline_mode<synchronous>, transform_indices = @transform_2, window_bounds = array<i64: 1, 128>}, {transform_indices = @transform_3, window_bounds = array<i64: 1, 8, 16, 128>}]} {
    %c0 = arith.constant 0 : index
    %c0_0 = arith.constant 0 : index
    %c0_1 = arith.constant 0 : index
    %c0_2 = arith.constant 0 : index
    %0 = vector.load %arg2[%c0, %c0_0, %c0_1, %c0_2] : memref<1x8x16x128xf32, #tpu.memory_space<vmem>>, vector<1x8x16x128xf32>
    %c0_3 = arith.constant 0 : index
    %c0_4 = arith.constant 0 : index
    %1 = vector.load %arg3[%c0_3, %c0_4] : memref<1x128xf32, #tpu.memory_space<vmem>>, vector<1x128xf32>
    %2 = vector.shape_cast %1 : vector<1x128xf32> to vector<1x1x1x128xf32>
    %3 = vector.broadcast %2 : vector<1x1x1x128xf32> to vector<1x8x16x128xf32>
    %4 = arith.mulf %0, %3 : vector<1x8x16x128xf32>
    %c0_5 = arith.constant 0 : index
    %c0_6 = arith.constant 0 : index
    %5 = vector.load %arg4[%c0_5, %c0_6] : memref<1x128xf32, #tpu.memory_space<vmem>>, vector<1x128xf32>
    %6 = vector.shape_cast %5 : vector<1x128xf32> to vector<1x1x1x128xf32>
    %7 = vector.broadcast %6 : vector<1x1x1x128xf32> to vector<1x8x16x128xf32>
    %8 = arith.addf %4, %7 : vector<1x8x16x128xf32>
    %cst = arith.constant 0.000000e+00 : f32
    %9 = vector.broadcast %cst : f32 to vector<1x8x16x128xf32>
    %10 = arith.maximumf %8, %9 : vector<1x8x16x128xf32>
    %c0_7 = arith.constant 0 : index
    %c0_8 = arith.constant 0 : index
    %c0_9 = arith.constant 0 : index
    %c0_10 = arith.constant 0 : index
    %11 = vector.load %arg5[%c0_7, %c0_8, %c0_9, %c0_10] : memref<1x8x16x128xf32, #tpu.memory_space<vmem>>, vector<1x8x16x128xf32>
    tpu.vector_store %arg5[%c0_7, %c0_8, %c0_9, %c0_10], %10 {strides = array<i32>} : memref<1x8x16x128xf32, #tpu.memory_space<vmem>>, vector<1x8x16x128xf32>,
    return
  }
  func.func @transform_0(%arg0: i32, %arg1: i32) -> (i32, i32, i32, i32) {
    %c0_i32 = arith.constant 0 : i32
    %c0_i32_0 = arith.constant 0 : i32
    %c0_i32_1 = arith.constant 0 : i32
    return %arg0, %arg1, %c0_i32, %c0_i32_0 : i32, i32, i32, i32
  }
  func.func @transform_1(%arg0: i32, %arg1: i32) -> (i32, i32) {
    %c0_i32 = arith.constant 0 : i32
    %c0_i32_0 = arith.constant 0 : i32
    %c0_i32_1 = arith.constant 0 : i32
    return %c0_i32, %c0_i32_0 : i32, i32
  }
  func.func @transform_2(%arg0: i32, %arg1: i32) -> (i32, i32) {
    %c0_i32 = arith.constant 0 : i32
    %c0_i32_0 = arith.constant 0 : i32
    %c0_i32_1 = arith.constant 0 : i32
    return %c0_i32, %c0_i32_0 : i32, i32
  }
  func.func @transform_3(%arg0: i32, %arg1: i32) -> (i32, i32, i32, i32) {
    %c0_i32 = arith.constant 0 : i32
    %c0_i32_0 = arith.constant 0 : i32
    %c0_i32_1 = arith.constant 0 : i32
    return %arg0, %arg1, %c0_i32, %c0_i32_0 : i32, i32, i32, i32
  }
}

module attributes {stable_mosaic.version = 11 : i64} {
  func.func @_conv3x3_stats_kernel(%arg0: i32, %arg1: i32, %arg2: memref<1x16x16x128xf32, #tpu.memory_space<vmem>>, %arg3: memref<1152x128xf32, #tpu.memory_space<vmem>>, %arg4: memref<1x8x16x128xf32, #tpu.memory_space<vmem>>, %arg5: memref<1x1x2x128xf32, #tpu.memory_space<vmem>>, %arg6: memref<18x18x128xf32, #tpu.memory_space<vmem>>) attributes {dimension_semantics = [#tpu.dimension_semantics<parallel>, #tpu.dimension_semantics<arbitrary>], iteration_bounds = array<i64: 2, 2>, scalar_prefetch = 0 : i64, scratch_operands = 1 : i64, tpu.core_type = #tpu.core_type<tc>, window_params = [{transform_indices = @transform_0, window_bounds = array<i64: 1, 16, 16, 128>}, {pipeline_mode = #tpu.pipeline_mode<synchronous>, transform_indices = @transform_1, window_bounds = array<i64: 1152, 128>}, {transform_indices = @transform_2, window_bounds = array<i64: 1, 8, 16, 128>}, {transform_indices = @transform_3, window_bounds = array<i64: 1, 1, 2, 128>}]} {
    %c0_i32 = arith.constant 0 : i32
    %0 = arith.cmpi eq, %arg1, %c0_i32 : i32
    %1 = arith.extui %0 : i1 to i32
    %c0_i32_0 = arith.constant 0 : i32
    %2 = arith.cmpi ne, %1, %c0_i32_0 : i32
    scf.if %2 {
      %cst_39 = arith.constant 0.000000e+00 : f32
      %57 = vector.broadcast %cst_39 : f32 to vector<18x18x128xf32>
      %c0_40 = arith.constant 0 : index
      %c0_41 = arith.constant 0 : index
      %c0_42 = arith.constant 0 : index
      %58 = vector.load %arg6[%c0_40, %c0_41, %c0_42] : memref<18x18x128xf32, #tpu.memory_space<vmem>>, vector<18x18x128xf32>
      tpu.vector_store %arg6[%c0_40, %c0_41, %c0_42], %57 {strides = array<i32>} : memref<18x18x128xf32, #tpu.memory_space<vmem>>, vector<18x18x128xf32>,
      %c0_43 = arith.constant 0 : index
      %c0_44 = arith.constant 0 : index
      %c0_45 = arith.constant 0 : index
      %c0_46 = arith.constant 0 : index
      %59 = vector.load %arg2[%c0_43, %c0_44, %c0_45, %c0_46] : memref<1x16x16x128xf32, #tpu.memory_space<vmem>>, vector<1x16x16x128xf32>
      %60 = vector.shape_cast %59 : vector<1x16x16x128xf32> to vector<16x16x128xf32>
      %c1_47 = arith.constant 1 : index
      %c1_48 = arith.constant 1 : index
      %c0_49 = arith.constant 0 : index
      %61 = vector.load %arg6[%c1_47, %c1_48, %c0_49] : memref<18x18x128xf32, #tpu.memory_space<vmem>>, vector<16x16x128xf32>
      tpu.vector_store %arg6[%c1_47, %c1_48, %c0_49], %60 {strides = array<i32>} : memref<18x18x128xf32, #tpu.memory_space<vmem>>, vector<16x16x128xf32>,
    } else {
    }
    %c8_i32 = arith.constant 8 : i32
    %3 = arith.muli %arg1, %c8_i32 : i32
    %4 = tpu.assume_multiple %3, 8 : i32
    %c0_i32_1 = arith.constant 0 : i32
    %5 = arith.addi %4, %c0_i32_1 : i32
    %6 = arith.index_cast %5 : i32 to index
    %c0 = arith.constant 0 : index
    %c0_2 = arith.constant 0 : index
    %7 = vector.load %arg6[%6, %c0, %c0_2] : memref<18x18x128xf32, #tpu.memory_space<vmem>>, vector<8x16x128xf32>
    %8 = vector.shape_cast %7 : vector<8x16x128xf32> to vector<128x128xf32>
    %c0_i32_3 = arith.constant 0 : i32
    %9 = arith.addi %4, %c0_i32_3 : i32
    %10 = arith.index_cast %9 : i32 to index
    %c1 = arith.constant 1 : index
    %c0_4 = arith.constant 0 : index
    %11 = vector.load %arg6[%10, %c1, %c0_4] : memref<18x18x128xf32, #tpu.memory_space<vmem>>, vector<8x16x128xf32>
    %12 = vector.shape_cast %11 : vector<8x16x128xf32> to vector<128x128xf32>
    %c0_i32_5 = arith.constant 0 : i32
    %13 = arith.addi %4, %c0_i32_5 : i32
    %14 = arith.index_cast %13 : i32 to index
    %c2 = arith.constant 2 : index
    %c0_6 = arith.constant 0 : index
    %15 = vector.load %arg6[%14, %c2, %c0_6] : memref<18x18x128xf32, #tpu.memory_space<vmem>>, vector<8x16x128xf32>
    %16 = vector.shape_cast %15 : vector<8x16x128xf32> to vector<128x128xf32>
    %c1_i32 = arith.constant 1 : i32
    %17 = arith.addi %4, %c1_i32 : i32
    %18 = arith.index_cast %17 : i32 to index
    %c0_7 = arith.constant 0 : index
    %c0_8 = arith.constant 0 : index
    %19 = vector.load %arg6[%18, %c0_7, %c0_8] : memref<18x18x128xf32, #tpu.memory_space<vmem>>, vector<8x16x128xf32>
    %20 = vector.shape_cast %19 : vector<8x16x128xf32> to vector<128x128xf32>
    %c1_i32_9 = arith.constant 1 : i32
    %21 = arith.addi %4, %c1_i32_9 : i32
    %22 = arith.index_cast %21 : i32 to index
    %c1_10 = arith.constant 1 : index
    %c0_11 = arith.constant 0 : index
    %23 = vector.load %arg6[%22, %c1_10, %c0_11] : memref<18x18x128xf32, #tpu.memory_space<vmem>>, vector<8x16x128xf32>
    %24 = vector.shape_cast %23 : vector<8x16x128xf32> to vector<128x128xf32>
    %c1_i32_12 = arith.constant 1 : i32
    %25 = arith.addi %4, %c1_i32_12 : i32
    %26 = arith.index_cast %25 : i32 to index
    %c2_13 = arith.constant 2 : index
    %c0_14 = arith.constant 0 : index
    %27 = vector.load %arg6[%26, %c2_13, %c0_14] : memref<18x18x128xf32, #tpu.memory_space<vmem>>, vector<8x16x128xf32>
    %28 = vector.shape_cast %27 : vector<8x16x128xf32> to vector<128x128xf32>
    %c2_i32 = arith.constant 2 : i32
    %29 = arith.addi %4, %c2_i32 : i32
    %30 = arith.index_cast %29 : i32 to index
    %c0_15 = arith.constant 0 : index
    %c0_16 = arith.constant 0 : index
    %31 = vector.load %arg6[%30, %c0_15, %c0_16] : memref<18x18x128xf32, #tpu.memory_space<vmem>>, vector<8x16x128xf32>
    %32 = vector.shape_cast %31 : vector<8x16x128xf32> to vector<128x128xf32>
    %c2_i32_17 = arith.constant 2 : i32
    %33 = arith.addi %4, %c2_i32_17 : i32
    %34 = arith.index_cast %33 : i32 to index
    %c1_18 = arith.constant 1 : index
    %c0_19 = arith.constant 0 : index
    %35 = vector.load %arg6[%34, %c1_18, %c0_19] : memref<18x18x128xf32, #tpu.memory_space<vmem>>, vector<8x16x128xf32>
    %36 = vector.shape_cast %35 : vector<8x16x128xf32> to vector<128x128xf32>
    %c2_i32_20 = arith.constant 2 : i32
    %37 = arith.addi %4, %c2_i32_20 : i32
    %38 = arith.index_cast %37 : i32 to index
    %c2_21 = arith.constant 2 : index
    %c0_22 = arith.constant 0 : index
    %39 = vector.load %arg6[%38, %c2_21, %c0_22] : memref<18x18x128xf32, #tpu.memory_space<vmem>>, vector<8x16x128xf32>
    %40 = vector.shape_cast %39 : vector<8x16x128xf32> to vector<128x128xf32>
    %41 = tpu.concatenate %8, %12, %16, %20, %24, %28, %32, %36, %40 in 1 : vector<128x128xf32>, vector<128x128xf32>, vector<128x128xf32>, vector<128x128xf32>, vector<128x128xf32>, vector<128x128xf32>, vector<128x128xf32>, vector<128x128xf32>, vector<128x128xf32> -> vector<128x1152xf32>
    %c0_23 = arith.constant 0 : index
    %c0_24 = arith.constant 0 : index
    %42 = vector.load %arg3[%c0_23, %c0_24] : memref<1152x128xf32, #tpu.memory_space<vmem>>, vector<1152x128xf32>
    %cst = arith.constant dense<0.000000e+00> : vector<128x128xf32>
    %43 = tpu.matmul %41, %42, %cst {dimension_numbers = #tpu.dot_dimension_numbers<[1], [0], [0], [1], [0, 0, 1, 1], [], []>} : vector<128x1152xf32>, vector<1152x128xf32>, vector<128x128xf32> -> vector<128x128xf32>
    %44 = vector.shape_cast %43 : vector<128x128xf32> to vector<1x8x16x128xf32>
    %c0_25 = arith.constant 0 : index
    %c0_26 = arith.constant 0 : index
    %c0_27 = arith.constant 0 : index
    %c0_28 = arith.constant 0 : index
    %45 = vector.load %arg4[%c0_25, %c0_26, %c0_27, %c0_28] : memref<1x8x16x128xf32, #tpu.memory_space<vmem>>, vector<1x8x16x128xf32>
    tpu.vector_store %arg4[%c0_25, %c0_26, %c0_27, %c0_28], %44 {strides = array<i32>} : memref<1x8x16x128xf32, #tpu.memory_space<vmem>>, vector<1x8x16x128xf32>,
    %cst_29 = arith.constant dense<0.000000e+00> : vector<128xf32>
    %46 = vector.multi_reduction <add>, %43, %cst_29 [0] : vector<128x128xf32> to vector<128xf32>
    %47 = vector.shape_cast %46 : vector<128xf32> to vector<1x128xf32>
    %c0_30 = arith.constant 0 : index
    %c0_31 = arith.constant 0 : index
    %c0_32 = arith.constant 0 : index
    %c0_33 = arith.constant 0 : index
    %48 = vector.load %arg5[%c0_30, %c0_31, %c0_32, %c0_33] : memref<1x1x2x128xf32, #tpu.memory_space<vmem>>, vector<1x1x1x128xf32>
    %49 = vector.shape_cast %48 : vector<1x1x1x128xf32> to vector<1x128xf32>
    %50 = vector.shape_cast %47 : vector<1x128xf32> to vector<1x1x1x128xf32>
    tpu.vector_store %arg5[%c0_30, %c0_31, %c0_32, %c0_33], %50 {strides = array<i32>} : memref<1x1x2x128xf32, #tpu.memory_space<vmem>>, vector<1x1x1x128xf32>,
    %51 = arith.mulf %43, %43 : vector<128x128xf32>
    %cst_34 = arith.constant dense<0.000000e+00> : vector<128xf32>
    %52 = vector.multi_reduction <add>, %51, %cst_34 [0] : vector<128x128xf32> to vector<128xf32>
    %53 = vector.shape_cast %52 : vector<128xf32> to vector<1x128xf32>
    %c0_35 = arith.constant 0 : index
    %c0_36 = arith.constant 0 : index
    %c1_37 = arith.constant 1 : index
    %c0_38 = arith.constant 0 : index
    %54 = vector.load %arg5[%c0_35, %c0_36, %c1_37, %c0_38] : memref<1x1x2x128xf32, #tpu.memory_space<vmem>>, vector<1x1x1x128xf32>
    %55 = vector.shape_cast %54 : vector<1x1x1x128xf32> to vector<1x128xf32>
    %56 = vector.shape_cast %53 : vector<1x128xf32> to vector<1x1x1x128xf32>
    tpu.vector_store %arg5[%c0_35, %c0_36, %c1_37, %c0_38], %56 {strides = array<i32>} : memref<1x1x2x128xf32, #tpu.memory_space<vmem>>, vector<1x1x1x128xf32>,
    return
  }
  func.func @transform_0(%arg0: i32, %arg1: i32) -> (i32, i32, i32, i32) {
    %c0_i32 = arith.constant 0 : i32
    %c0_i32_0 = arith.constant 0 : i32
    %c0_i32_1 = arith.constant 0 : i32
    %c0_i32_2 = arith.constant 0 : i32
    return %arg0, %c0_i32, %c0_i32_0, %c0_i32_1 : i32, i32, i32, i32
  }
  func.func @transform_1(%arg0: i32, %arg1: i32) -> (i32, i32) {
    %c0_i32 = arith.constant 0 : i32
    %c0_i32_0 = arith.constant 0 : i32
    %c0_i32_1 = arith.constant 0 : i32
    return %c0_i32, %c0_i32_0 : i32, i32
  }
  func.func @transform_2(%arg0: i32, %arg1: i32) -> (i32, i32, i32, i32) {
    %c0_i32 = arith.constant 0 : i32
    %c0_i32_0 = arith.constant 0 : i32
    %c0_i32_1 = arith.constant 0 : i32
    return %arg0, %arg1, %c0_i32, %c0_i32_0 : i32, i32, i32, i32
  }
  func.func @transform_3(%arg0: i32, %arg1: i32) -> (i32, i32, i32, i32) {
    %c0_i32 = arith.constant 0 : i32
    %c0_i32_0 = arith.constant 0 : i32
    %c0_i32_1 = arith.constant 0 : i32
    return %arg0, %arg1, %c0_i32, %c0_i32_0 : i32, i32, i32, i32
  }
}

</mosaic_0001>

<llo_original>
// kernel: double_conv_forward.5
$region0: #{double_conv_forward.5}
  #allocation0 [shape = 'u32[]', space=smem, size = 0x4, offset = 0x4, fixed_abs, tag = 'smem constant byte address 0x4 - core index']
  #allocation1 [shape = 'u32[144,128]{1,0:T(1,128)}', space=vmem, size = 0x12000, scoped, tag = 'internal scratch']
  %s0 = inlined_call_operand.vmem [shape: f32[2,16,16,128], index: 0, kind: input, shape index: {}]
  %s1 = inlined_call_operand.vmem [shape: f32[1,128], index: 1, kind: input, shape index: {}]
  %s2 = inlined_call_operand.vmem [shape: f32[1,128], index: 2, kind: input, shape index: {}]
  %s3 = inlined_call_operand.vmem [shape: f32[2,16,16,128], index: 3, kind: output, shape index: {}]
  %s4 = sld [smem:[#allocation0]]
  $region45: #{double_conv_forward.5} parent=0
    _
  %s6 = ssub.s32 1, %s4
  %s7 = scalar_select 0, %s6, %s4
  loop: start=0, step=1, limit=6
  $region2: #{double_conv_forward.5} parent=0 // loop_pre_header
    _
  $region3: #{double_conv_forward.5} parent=0 // loop_header
    %s9 = sphi 0, %s13
    %p10 = scmp.ge.s32.totalorder %s9, 6
    %s16 = sphi 0, %s28
    %s17 = sphi 0, %s24
    %s18 = sphi 0, %s16
    %s19 = sphi 0, %s17
    %s20 = sphi 0, %s18
    %s21 = sphi 0, %s19
    %s33 = sphi 0, %s35
    %s36 = sphi 0, %s33
    %s37 = sphi 0, %s36
    %s53 = sphi 0, %s37
    %s57 = sphi 0, %s57
    %s59 = sphi 0, %s57
    %s60 = sphi 0, %s59
    %s74 = sphi 0, %s60
    %s78 = sphi 0, %s78
    %s80 = sphi 0, %s78
    %s81 = sphi 0, %s80
    %s95 = sphi 0, %s81
    %s103 = sphi 0, %s105
    %s106 = sphi 0, %s103
    %s107 = sphi 0, %s106
    %s123 = sphi 0, %s107
  $region4: #{double_conv_forward.5} parent=0 // loop_header_branch
    %12 = sbr.rel (%p10) target = $region8
  $region5: #{double_conv_forward.5} parent=0 // loop_body
    %s14 = ssub.s32 %s9, 1
    %s15 = ssub.s32 %s9, 2
    %s22 = sadd.s32 1, %s17
    %p23 = scmp.ge.s32.totalorder %s22, 2
    %s24 = scalar_select %p23, 0, %s22
    %s25 = sadd.s32 1, %s16
    %s26 = scalar_select %p23, %s25, %s16
    %p27 = scmp.ge.s32.totalorder %s26, 2
    %s28 = scalar_select %p27, 0, %s26
    %s29 = ssub.s32 %s16, %s28
    %s30 = ssub.s32 %s17, %s24
    %s31 = sor.u32 %s29, %s30
    %p32 = scmp.eq.s32.totalorder %s31, 0
    %s34 = sadd.s32 %s33, 1
    %s35 = scalar_select %p32, %s33, %s34
    %p38 = pneg %p32
    %p39 = scmp.eq.s32.totalorder %s9, 3
    %p40 = por %p38, %p39
    %p41 = scmp.ne.s32.totalorder %s33, %s36
    %p42 = scmp.eq.s32.totalorder %s9, 0
    %p43 = por %p41, %p42
    %p44 = scmp.ne.s32.totalorder %s33, %s36
    %p45 = scmp.eq.s32.totalorder %s14, 3
    %p46 = por %p44, %p45
    %p47 = scmp.ne.s32.totalorder %s36, %s37
    %p48 = scmp.eq.s32.totalorder %s14, 0
    %p49 = por %p47, %p48
    %p50 = scmp.ne.s32.totalorder %s36, %s37
    %p51 = scmp.eq.s32.totalorder %s15, 3
    %p52 = por %p50, %p51
    %p54 = scmp.ne.s32.totalorder %s37, %s53
    %p55 = scmp.eq.s32.totalorder %s15, 0
    %p56 = por %p54, %p55
    %s58 = sadd.s32 %s57, 1
    %p61 = scmp.eq.s32.totalorder %s9, 3
    %p62 = scmp.ne.s32.totalorder %s57, %s59
    %p63 = scmp.eq.s32.totalorder %s9, 0
    %p64 = por %p62, %p63
    %p65 = scmp.ne.s32.totalorder %s57, %s59
    %p66 = scmp.eq.s32.totalorder %s14, 3
    %p67 = por %p65, %p66
    %p68 = scmp.ne.s32.totalorder %s59, %s60
    %p69 = scmp.eq.s32.totalorder %s14, 0
    %p70 = por %p68, %p69
    %p71 = scmp.ne.s32.totalorder %s59, %s60
    %p72 = scmp.eq.s32.totalorder %s15, 3
    %p73 = por %p71, %p72
    %p75 = scmp.ne.s32.totalorder %s60, %s74
    %p76 = scmp.eq.s32.totalorder %s15, 0
    %p77 = por %p75, %p76
    %s79 = sadd.s32 %s78, 1
    %p82 = scmp.eq.s32.totalorder %s9, 3
    %p83 = scmp.ne.s32.totalorder %s78, %s80
    %p84 = scmp.eq.s32.totalorder %s9, 0
    %p85 = por %p83, %p84
    %p86 = scmp.ne.s32.totalorder %s78, %s80
    %p87 = scmp.eq.s32.totalorder %s14, 3
    %p88 = por %p86, %p87
    %p89 = scmp.ne.s32.totalorder %s80, %s81
    %p90 = scmp.eq.s32.totalorder %s14, 0
    %p91 = por %p89, %p90
    %p92 = scmp.ne.s32.totalorder %s80, %s81
    %p93 = scmp.eq.s32.totalorder %s15, 3
    %p94 = por %p92, %p93
    %p96 = scmp.ne.s32.totalorder %s81, %s95
    %p97 = scmp.eq.s32.totalorder %s15, 0
    %p98 = por %p96, %p97
    %s99 = ssub.s32 %s16, %s28
    %s100 = ssub.s32 %s17, %s24
    %s101 = sor.u32 %s99, %s100
    %p102 = scmp.eq.s32.totalorder %s101, 0
    %s104 = sadd.s32 %s103, 1
    %s105 = scalar_select %p102, %s103, %s104
    %p108 = pneg %p102
    %p109 = scmp.eq.s32.totalorder %s9, 3
    %p110 = por %p108, %p109
    %p111 = scmp.ne.s32.totalorder %s103, %s106
    %p112 = scmp.eq.s32.totalorder %s9, 0
    %p113 = por %p111, %p112
    %p114 = scmp.ne.s32.totalorder %s103, %s106
    %p115 = scmp.eq.s32.totalorder %s14, 3
    %p116 = por %p114, %p115
    %p117 = scmp.ne.s32.totalorder %s106, %s107
    %p118 = scmp.eq.s32.totalorder %s14, 0
    %p119 = por %p117, %p118
    %p120 = scmp.ne.s32.totalorder %s106, %s107
    %p121 = scmp.eq.s32.totalorder %s15, 3
    %p122 = por %p120, %p121
    %p124 = scmp.ne.s32.totalorder %s107, %s123
    %p125 = scmp.eq.s32.totalorder %s15, 0
    %p126 = por %p124, %p125
    %p127 = scmp.le.s32.totalorder 1, %s9
    %p128 = scmp.lt.s32.totalorder %s9, 5
    %p129 = pnand %p127, %p128
    %p130 = pneg %p129
    // Predicated region
    $region9: #{double_conv_forward.5} parent=5 // pred_check
      _
    $region10: #{double_conv_forward.5} parent=5 // pred_check_branch
      %132 = sbr.rel (%p129) target = $region12
    $region11: #{double_conv_forward.5} parent=5 // pred_region
      %s133 = ssub.s32 %s9, 1
      // Predicated region
      $region13: #{double_conv_forward.5} parent=11 // pred_check
        %p134 = pneg %p70
      $region14: #{double_conv_forward.5} parent=11 // pred_check_branch
        %136 = sbr.rel (%p134) target = $region16
      $region15: #{double_conv_forward.5} parent=11 // pred_region
        _
      $region16: #{double_conv_forward.5} parent=11 // pred_fallthru
        _
      // Predicated region
      $region17: #{double_conv_forward.5} parent=11 // pred_check
        %p137 = pneg %p91
      $region18: #{double_conv_forward.5} parent=11 // pred_check_branch
        %139 = sbr.rel (%p137) target = $region20
      $region19: #{double_conv_forward.5} parent=11 // pred_region
        _
      $region20: #{double_conv_forward.5} parent=11 // pred_fallthru
        _
    $region12: #{double_conv_forward.5} parent=5 // pred_fallthru
      _
    %p140 = scmp.lt.s32.totalorder %s9, 4
    // Predicated region
    $region21: #{double_conv_forward.5} parent=5 // pred_check
      %p141 = pneg %p140
    $region22: #{double_conv_forward.5} parent=5 // pred_check_branch
      %143 = sbr.rel (%p141) target = $region24
    $region23: #{double_conv_forward.5} parent=5 // pred_region
      // Predicated region
      $region25: #{double_conv_forward.5} parent=23 // pred_check
        %p144 = pneg %p43
      $region26: #{double_conv_forward.5} parent=23 // pred_check_branch
        %146 = sbr.rel (%p144) target = $region28
      $region27: #{double_conv_forward.5} parent=23 // pred_region
        %s147 = smul.u32 8, %s17
        %p148 = scmp.lt.s32.totalorder %s16, 1
        %s149 = scalar_select %p148, %s16, 1
        %p150 = scmp.lt.s32.totalorder %s147, 15
        %s151 = scalar_select %p150, %s147, 15
        %s152 = smul.addr %s151, 2
        %s153 = smul.addr %s149, 32
        %s154 = sadd.s32 %s152, %s153
        %s155 = smul.addr %s154, 8
        %s156 = scalar_lea.vmem %s0, %s155
        %s157 = smul.u32 8, %s17
      $region28: #{double_conv_forward.5} parent=23 // pred_fallthru
        _
    $region24: #{double_conv_forward.5} parent=5 // pred_fallthru
      _
    %p158 = scmp.le.s32.totalorder 1, %s9
    %p159 = scmp.lt.s32.totalorder %s9, 5
    %p160 = pnand %p158, %p159
    %p161 = pneg %p160
    // Predicated region
    $region29: #{double_conv_forward.5} parent=5 // pred_check
      _
    $region30: #{double_conv_forward.5} parent=5 // pred_check_branch
      %163 = sbr.rel (%p160) target = $region32
    $region31: #{double_conv_forward.5} parent=5 // pred_region
      %s164 = ssub.s32 %s9, 1
      %s165 = smul.u32 8, %s19
      %p166 = scmp.lt.s32.totalorder %s18, 1
      %s167 = scalar_select %p166, %s18, 1
      %p168 = scmp.lt.s32.totalorder %s165, 15
      %s169 = scalar_select %p168, %s165, 15
      %s170 = smul.addr %s169, 2
      %s171 = smul.addr %s167, 32
      %s172 = sadd.s32 %s170, %s171
      %s173 = smul.addr %s172, 8
      %s174 = scalar_lea.vmem %s0, %s173
      %p175 = pneg %p49
      %p176 = pneg %p46
      %p177 = pneg %p70
      %p178 = pneg %p67
      %p179 = pneg %p91
      %p180 = pneg %p88
      %p181 = pneg %p119
      %p182 = pneg %p116
      %s183 = smul.u32 8, %s19
      %p184 = scmp.lt.s32.totalorder %s18, 1
      %s185 = scalar_select %p184, %s18, 1
      %p186 = scmp.lt.s32.totalorder %s183, 15
      %s187 = scalar_select %p186, %s183, 15
      %s188 = smul.addr %s187, 2
      %s189 = smul.addr %s185, 32
      %s190 = sadd.s32 %s188, %s189
      %s191 = smul.addr %s190, 8
      %s192 = scalar_lea.vmem %s3, %s191
      %s193 = smul.u32 8, %s19
      %p194 = scmp.lt.s32.totalorder %s18, 1
      %s195 = scalar_select %p194, %s18, 1
      %p196 = scmp.lt.s32.totalorder %s193, 15
      %s197 = scalar_select %p196, %s193, 15
      %s198 = smul.addr %s197, 2
      %s199 = smul.addr %s195, 32
      %s200 = sadd.s32 %s198, %s199
      %s201 = smul.addr %s200, 8
      %s202 = scalar_lea.vmem %s0, %s201
      %s203 = smul.u32 8, %s19
      %s204 = smul.u32 8, %s19
      %p205 = scmp.lt.s32.totalorder %s18, 1
      %s206 = scalar_select %p205, %s18, 1
      %p207 = scmp.lt.s32.totalorder %s204, 15
      %s208 = scalar_select %p207, %s204, 15
      %s209 = smul.addr %s208, 2
      %s210 = smul.addr %s206, 32
      %s211 = sadd.s32 %s209, %s210
      %s212 = smul.addr %s211, 8
      %s213 = scalar_lea.vmem %s3, %s212
      %s214 = smul.u32 8, %s19
      %v215 = vld [vmem:[%s202] sm:$0xff]
      %v216 = vld [vmem:[%s202 + $0x8] sm:$0xff]
      %v217 = vld [vmem:[%s202 + $0x10] sm:$0xff]
      %v218 = vld [vmem:[%s202 + $0x18] sm:$0xff]
      %v219 = vld [vmem:[%s202 + $0x20] sm:$0xff]
      %v220 = vld [vmem:[%s202 + $0x28] sm:$0xff]
      %v221 = vld [vmem:[%s202 + $0x30] sm:$0xff]
      %v222 = vld [vmem:[%s202 + $0x38] sm:$0xff]
      %v223 = vld [vmem:[%s202 + $0x40] sm:$0xff]
      %v224 = vld [vmem:[%s202 + $0x48] sm:$0xff]
      %v225 = vld [vmem:[%s202 + $0x50] sm:$0xff]
      %v226 = vld [vmem:[%s202 + $0x58] sm:$0xff]
      %v227 = vld [vmem:[%s202 + $0x60] sm:$0xff]
      %v228 = vld [vmem:[%s202 + $0x68] sm:$0xff]
      %v229 = vld [vmem:[%s202 + $0x70] sm:$0xff]
      %v230 = vld [vmem:[%s202 + $0x78] sm:$0xff]
      %v231 = vld [vmem:[%s1] sm:$0x1]
      %v233 = vlaneseq
      %v234 = vshrl.u32 %v233, 7
      %v235 = vsub.s32 0, %v234
      %v236 = vrot.slane %v231, %v235
      %v238 = vmul.f32 %v215, %v236
      %v239 = vmul.f32 %v216, %v236
      %v240 = vmul.f32 %v217, %v236
      %v241 = vmul.f32 %v218, %v236
      %v242 = vmul.f32 %v219, %v236
      %v243 = vmul.f32 %v220, %v236
      %v244 = vmul.f32 %v221, %v236
      %v245 = vmul.f32 %v222, %v236
      %v246 = vmul.f32 %v223, %v236
      %v247 = vmul.f32 %v224, %v236
      %v248 = vmul.f32 %v225, %v236
      %v249 = vmul.f32 %v226, %v236
      %v250 = vmul.f32 %v227, %v236
      %v251 = vmul.f32 %v228, %v236
      %v252 = vmul.f32 %v229, %v236
      %v253 = vmul.f32 %v230, %v236
      %v254 = vld [vmem:[%s2] sm:$0x1]
      %v256 = vlaneseq
      %v257 = vshrl.u32 %v256, 7
      %v258 = vsub.s32 0, %v257
      %v259 = vrot.slane %v254, %v258
      %v261 = vadd.f32 %v238, %v259
      %v262 = vadd.f32 %v239, %v259
      %v263 = vadd.f32 %v240, %v259
      %v264 = vadd.f32 %v241, %v259
      %v265 = vadd.f32 %v242, %v259
      %v266 = vadd.f32 %v243, %v259
      %v267 = vadd.f32 %v244, %v259
      %v268 = vadd.f32 %v245, %v259
      %v269 = vadd.f32 %v246, %v259
      %v270 = vadd.f32 %v247, %v259
      %v271 = vadd.f32 %v248, %v259
      %v272 = vadd.f32 %v249, %v259
      %v273 = vadd.f32 %v250, %v259
      %v274 = vadd.f32 %v251, %v259
      %v275 = vadd.f32 %v252, %v259
      %v276 = vadd.f32 %v253, %v259
      %v277 = vmax.f32 %v261, 0.0
      %v278 = vmax.f32 %v262, 0.0
      %v279 = vmax.f32 %v263, 0.0
      %v280 = vmax.f32 %v264, 0.0
      %v281 = vmax.f32 %v265, 0.0
      %v282 = vmax.f32 %v266, 0.0
      %v283 = vmax.f32 %v267, 0.0
      %v284 = vmax.f32 %v268, 0.0
      %v285 = vmax.f32 %v269, 0.0
      %v286 = vmax.f32 %v270, 0.0
      %v287 = vmax.f32 %v271, 0.0
      %v288 = vmax.f32 %v272, 0.0
      %v289 = vmax.f32 %v273, 0.0
      %v290 = vmax.f32 %v274, 0.0
      %v291 = vmax.f32 %v275, 0.0
      %v292 = vmax.f32 %v276, 0.0
      %293 = vst [vmem:[%s213] sm:$0xff] %v277
      %294 = vst [vmem:[%s213 + $0x8] sm:$0xff] %v278
      %295 = vst [vmem:[%s213 + $0x10] sm:$0xff] %v279
      %296 = vst [vmem:[%s213 + $0x18] sm:$0xff] %v280
      %297 = vst [vmem:[%s213 + $0x20] sm:$0xff] %v281
      %298 = vst [vmem:[%s213 + $0x28] sm:$0xff] %v282
      %299 = vst [vmem:[%s213 + $0x30] sm:$0xff] %v283
      %300 = vst [vmem:[%s213 + $0x38] sm:$0xff] %v284
      %301 = vst [vmem:[%s213 + $0x40] sm:$0xff] %v285
      %302 = vst [vmem:[%s213 + $0x48] sm:$0xff] %v286
      %303 = vst [vmem:[%s213 + $0x50] sm:$0xff] %v287
      %304 = vst [vmem:[%s213 + $0x58] sm:$0xff] %v288
      %305 = vst [vmem:[%s213 + $0x60] sm:$0xff] %v289
      %306 = vst [vmem:[%s213 + $0x68] sm:$0xff] %v290
      %307 = vst [vmem:[%s213 + $0x70] sm:$0xff] %v291
      %308 = vst [vmem:[%s213 + $0x78] sm:$0xff] %v292
      %s309 = smul.u32 8, %s19
      %p310 = scmp.lt.s32.totalorder %s18, 1
      %s311 = scalar_select %p310, %s18, 1
      %p312 = scmp.lt.s32.totalorder %s309, 15
      %s313 = scalar_select %p312, %s309, 15
      %s314 = smul.addr %s313, 2
      %s315 = smul.addr %s311, 32
      %s316 = sadd.s32 %s314, %s315
      %s317 = smul.addr %s316, 8
      %s318 = scalar_lea.vmem %s3, %s317
      // Predicated region
      $region33: #{double_conv_forward.5} parent=31 // pred_check
        %p319 = pneg %p116
      $region34: #{double_conv_forward.5} parent=31 // pred_check_branch
        %321 = sbr.rel (%p319) target = $region36
      $region35: #{double_conv_forward.5} parent=31 // pred_region
        %s322 = smul.u32 8, %s19
      $region36: #{double_conv_forward.5} parent=31 // pred_fallthru
        _
    $region32: #{double_conv_forward.5} parent=5 // pred_fallthru
      _
    %p323 = scmp.le.s32.totalorder 2, %s9
    // Predicated region
    $region37: #{double_conv_forward.5} parent=5 // pred_check
      %p324 = pneg %p323
    $region38: #{double_conv_forward.5} parent=5 // pred_check_branch
      %326 = sbr.rel (%p324) target = $region40
    $region39: #{double_conv_forward.5} parent=5 // pred_region
      %s327 = ssub.s32 %s9, 2
      // Predicated region
      $region41: #{double_conv_forward.5} parent=39 // pred_check
        %p328 = pneg %p122
      $region42: #{double_conv_forward.5} parent=39 // pred_check_branch
        %330 = sbr.rel (%p328) target = $region44
      $region43: #{double_conv_forward.5} parent=39 // pred_region
        %s331 = smul.u32 8, %s21
        %p332 = scmp.lt.s32.totalorder %s20, 1
        %s333 = scalar_select %p332, %s20, 1
        %p334 = scmp.lt.s32.totalorder %s331, 15
        %s335 = scalar_select %p334, %s331, 15
        %s336 = smul.addr %s335, 2
        %s337 = smul.addr %s333, 32
        %s338 = sadd.s32 %s336, %s337
        %s339 = smul.addr %s338, 8
        %s340 = scalar_lea.vmem %s3, %s339
      $region44: #{double_conv_forward.5} parent=39 // pred_fallthru
        _
    $region40: #{double_conv_forward.5} parent=5 // pred_fallthru
      _
  $region6: #{double_conv_forward.5} parent=0 // loop_footer
    %s13 = sadd.s32 1, %s9
  $region7: #{double_conv_forward.5} parent=0 // loop_footer_branch
    %8 = sbr.rel target = $region3
  $region8: #{double_conv_forward.5} parent=0 // loop_exit
    _

// kernel: double_conv_forward.4
$region0: #{double_conv_forward.4}
  #allocation0 [shape = 'u32[]', space=smem, size = 0x4, offset = 0x4, fixed_abs, tag = 'smem constant byte address 0x4 - core index']
  #allocation1 [shape = 'u32[144,128]{1,0:T(1,128)}', space=vmem, size = 0x12000, scoped, tag = 'internal scratch']
  #allocation2 [shape = 'f32[18,18,128]{2,1,0:T(8,128)}', space=vmem, size = 0x36000, scoped, tag = 'scratch operand']
  %s0 = inlined_call_operand.vmem [shape: f32[2,16,16,4], index: 0, kind: input, shape index: {}]
  %s1 = inlined_call_operand.vmem [shape: f32[1152,128], index: 1, kind: input, shape index: {}]
  %s2 = inlined_call_operand.vmem [shape: f32[2,16,16,128], index: 2, kind: output, shape index: {0}]
  %s3 = inlined_call_operand.vmem [shape: f32[2,2,2,128], index: 3, kind: output, shape index: {1}]
  %4 = xla_tuple %s2, %s3
  %s5 = sld [smem:[#allocation0]]
  $region53: #{double_conv_forward.4} parent=0
    _
  %s7 = ssub.s32 1, %s5
  %s8 = scalar_select 0, %s7, %s5
  loop: start=0, step=1, limit=6
  $region2: #{double_conv_forward.4} parent=0 // loop_pre_header
    _
  $region3: #{double_conv_forward.4} parent=0 // loop_header
    %s10 = sphi 0, %s14
    %p11 = scmp.ge.s32.totalorder %s10, 6
    %s17 = sphi 0, %s29
    %s18 = sphi 0, %s25
    %s19 = sphi 0, %s17
    %s20 = sphi 0, %s18
    %s21 = sphi 0, %s19
    %s22 = sphi 0, %s20
    %s32 = sphi 0, %s34
    %s35 = sphi 0, %s32
    %s36 = sphi 0, %s35
    %s52 = sphi 0, %s36
    %s56 = sphi 0, %s56
    %s58 = sphi 0, %s56
    %s59 = sphi 0, %s58
    %s73 = sphi 0, %s59
    %s81 = sphi 0, %s83
    %s84 = sphi 0, %s81
    %s85 = sphi 0, %s84
    %s101 = sphi 0, %s85
    %s109 = sphi 0, %s111
    %s112 = sphi 0, %s109
    %s113 = sphi 0, %s112
    %s129 = sphi 0, %s113
  $region4: #{double_conv_forward.4} parent=0 // loop_header_branch
    %13 = sbr.rel (%p11) target = $region8
  $region5: #{double_conv_forward.4} parent=0 // loop_body
    %s15 = ssub.s32 %s10, 1
    %s16 = ssub.s32 %s10, 2
    %s23 = sadd.s32 1, %s18
    %p24 = scmp.ge.s32.totalorder %s23, 2
    %s25 = scalar_select %p24, 0, %s23
    %s26 = sadd.s32 1, %s17
    %s27 = scalar_select %p24, %s26, %s17
    %p28 = scmp.ge.s32.totalorder %s27, 2
    %s29 = scalar_select %p28, 0, %s27
    %s30 = ssub.s32 %s17, %s29
    %p31 = scmp.eq.s32.totalorder %s30, 0
    %s33 = sadd.s32 %s32, 1
    %s34 = scalar_select %p31, %s32, %s33
    %p37 = pneg %p31
    %p38 = scmp.eq.s32.totalorder %s10, 3
    %p39 = por %p37, %p38
    %p40 = scmp.ne.s32.totalorder %s32, %s35
    %p41 = scmp.eq.s32.totalorder %s10, 0
    %p42 = por %p40, %p41
    %p43 = scmp.ne.s32.totalorder %s32, %s35
    %p44 = scmp.eq.s32.totalorder %s15, 3
    %p45 = por %p43, %p44
    %p46 = scmp.ne.s32.totalorder %s35, %s36
    %p47 = scmp.eq.s32.totalorder %s15, 0
    %p48 = por %p46, %p47
    %p49 = scmp.ne.s32.totalorder %s35, %s36
    %p50 = scmp.eq.s32.totalorder %s16, 3
    %p51 = por %p49, %p50
    %p53 = scmp.ne.s32.totalorder %s36, %s52
    %p54 = scmp.eq.s32.totalorder %s16, 0
    %p55 = por %p53, %p54
    %s57 = sadd.s32 %s56, 1
    %p60 = scmp.eq.s32.totalorder %s10, 3
    %p61 = scmp.ne.s32.totalorder %s56, %s58
    %p62 = scmp.eq.s32.totalorder %s10, 0
    %p63 = por %p61, %p62
    %p64 = scmp.ne.s32.totalorder %s56, %s58
    %p65 = scmp.eq.s32.totalorder %s15, 3
    %p66 = por %p64, %p65
    %p67 = scmp.ne.s32.totalorder %s58, %s59
    %p68 = scmp.eq.s32.totalorder %s15, 0
    %p69 = por %p67, %p68
    %p70 = scmp.ne.s32.totalorder %s58, %s59
    %p71 = scmp.eq.s32.totalorder %s16, 3
    %p72 = por %p70, %p71
    %p74 = scmp.ne.s32.totalorder %s59, %s73
    %p75 = scmp.eq.s32.totalorder %s16, 0
    %p76 = por %p74, %p75
    %s77 = ssub.s32 %s17, %s29
    %s78 = ssub.s32 %s18, %s25
    %s79 = sor.u32 %s77, %s78
    %p80 = scmp.eq.s32.totalorder %s79, 0
    %s82 = sadd.s32 %s81, 1
    %s83 = scalar_select %p80, %s81, %s82
    %p86 = pneg %p80
    %p87 = scmp.eq.s32.totalorder %s10, 3
    %p88 = por %p86, %p87
    %p89 = scmp.ne.s32.totalorder %s81, %s84
    %p90 = scmp.eq.s32.totalorder %s10, 0
    %p91 = por %p89, %p90
    %p92 = scmp.ne.s32.totalorder %s81, %s84
    %p93 = scmp.eq.s32.totalorder %s15, 3
    %p94 = por %p92, %p93
    %p95 = scmp.ne.s32.totalorder %s84, %s85
    %p96 = scmp.eq.s32.totalorder %s15, 0
    %p97 = por %p95, %p96
    %p98 = scmp.ne.s32.totalorder %s84, %s85
    %p99 = scmp.eq.s32.totalorder %s16, 3
    %p100 = por %p98, %p99
    %p102 = scmp.ne.s32.totalorder %s85, %s101
    %p103 = scmp.eq.s32.totalorder %s16, 0
    %p104 = por %p102, %p103
    %s105 = ssub.s32 %s17, %s29
    %s106 = ssub.s32 %s18, %s25
    %s107 = sor.u32 %s105, %s106
    %p108 = scmp.eq.s32.totalorder %s107, 0
    %s110 = sadd.s32 %s109, 1
    %s111 = scalar_select %p108, %s109, %s110
    %p114 = pneg %p108
    %p115 = scmp.eq.s32.totalorder %s10, 3
    %p116 = por %p114, %p115
    %p117 = scmp.ne.s32.totalorder %s109, %s112
    %p118 = scmp.eq.s32.totalorder %s10, 0
    %p119 = por %p117, %p118
    %p120 = scmp.ne.s32.totalorder %s109, %s112
    %p121 = scmp.eq.s32.totalorder %s15, 3
    %p122 = por %p120, %p121
    %p123 = scmp.ne.s32.totalorder %s112, %s113
    %p124 = scmp.eq.s32.totalorder %s15, 0
    %p125 = por %p123, %p124
    %p126 = scmp.ne.s32.totalorder %s112, %s113
    %p127 = scmp.eq.s32.totalorder %s16, 3
    %p128 = por %p126, %p127
    %p130 = scmp.ne.s32.totalorder %s113, %s129
    %p131 = scmp.eq.s32.totalorder %s16, 0
    %p132 = por %p130, %p131
    %p133 = scmp.le.s32.totalorder 1, %s10
    %p134 = scmp.lt.s32.totalorder %s10, 5
    %p135 = pnand %p133, %p134
    %p136 = pneg %p135
    // Predicated region
    $region9: #{double_conv_forward.4} parent=5 // pred_check
      _
    $region10: #{double_conv_forward.4} parent=5 // pred_check_branch
      %138 = sbr.rel (%p135) target = $region12
    $region11: #{double_conv_forward.4} parent=5 // pred_region
      %s139 = ssub.s32 %s10, 1
      // Predicated region
      $region13: #{double_conv_forward.4} parent=11 // pred_check
        %p140 = pneg %p69
      $region14: #{double_conv_forward.4} parent=11 // pred_check_branch
        %142 = sbr.rel (%p140) target = $region16
      $region15: #{double_conv_forward.4} parent=11 // pred_region
        _
      $region16: #{double_conv_forward.4} parent=11 // pred_fallthru
        _
    $region12: #{double_conv_forward.4} parent=5 // pred_fallthru
      _
    %p143 = scmp.lt.s32.totalorder %s10, 4
    // Predicated region
    $region17: #{double_conv_forward.4} parent=5 // pred_check
      %p144 = pneg %p143
    $region18: #{double_conv_forward.4} parent=5 // pred_check_branch
      %146 = sbr.rel (%p144) target = $region20
    $region19: #{double_conv_forward.4} parent=5 // pred_region
      // Predicated region
      $region21: #{double_conv_forward.4} parent=19 // pred_check
        %p147 = pneg %p42
      $region22: #{double_conv_forward.4} parent=19 // pred_check_branch
        %149 = sbr.rel (%p147) target = $region24
      $region23: #{double_conv_forward.4} parent=19 // pred_region
        %p150 = scmp.lt.s32.totalorder %s17, 1
        %s151 = scalar_select %p150, %s17, 1
        %s152 = smul.addr %s151, 32
        %s153 = smul.addr %s152, 8
        %s154 = scalar_lea.vmem %s0, %s153
      $region24: #{double_conv_forward.4} parent=19 // pred_fallthru
        _
    $region20: #{double_conv_forward.4} parent=5 // pred_fallthru
      _
    %p155 = scmp.le.s32.totalorder 1, %s10
    %p156 = scmp.lt.s32.totalorder %s10, 5
    %p157 = pnand %p155, %p156
    %p158 = pneg %p157
    // Predicated region
    $region25: #{double_conv_forward.4} parent=5 // pred_check
      _
    $region26: #{double_conv_forward.4} parent=5 // pred_check_branch
      %160 = sbr.rel (%p157) target = $region28
    $region27: #{double_conv_forward.4} parent=5 // pred_region
      %s161 = ssub.s32 %s10, 1
      %p162 = scmp.lt.s32.totalorder %s19, 1
      %s163 = scalar_select %p162, %s19, 1
      %s164 = smul.addr %s163, 32
      %s165 = smul.addr %s164, 8
      %s166 = scalar_lea.vmem %s0, %s165
      %p167 = pneg %p48
      %p168 = pneg %p45
      %p169 = pneg %p69
      %p170 = pneg %p66
      %p171 = pneg %p97
      %p172 = pneg %p94
      %s173 = smul.u32 8, %s20
      %p174 = scmp.lt.s32.totalorder %s19, 1
      %s175 = scalar_select %p174, %s19, 1
      %p176 = scmp.lt.s32.totalorder %s173, 15
      %s177 = scalar_select %p176, %s173, 15
      %s178 = smul.addr %s177, 2
      %s179 = smul.addr %s175, 32
      %s180 = sadd.s32 %s178, %s179
      %s181 = smul.addr %s180, 8
      %s182 = scalar_lea.vmem %s2, %s181
      %p183 = pneg %p125
      %p184 = pneg %p122
      %p185 = scmp.lt.s32.totalorder %s19, 1
      %s186 = scalar_select %p185, %s19, 1
      %p187 = scmp.lt.s32.totalorder %s20, 1
      %s188 = scalar_select %p187, %s20, 1
      %s189 = smul.addr %s186, 2
      %s190 = sadd.s32 %s188, %s189
      %s191 = smul.addr %s190, 2
      %s192 = scalar_lea.vmem %s3, %s191
      %p193 = scmp.lt.s32.totalorder %s19, 1
      %s194 = scalar_select %p193, %s19, 1
      %s195 = smul.addr %s194, 32
      %s196 = smul.addr %s195, 8
      %s197 = scalar_lea.vmem %s0, %s196
      %s198 = smul.u32 8, %s20
      %p199 = scmp.lt.s32.totalorder %s19, 1
      %s200 = scalar_select %p199, %s19, 1
      %p201 = scmp.lt.s32.totalorder %s198, 15
      %s202 = scalar_select %p201, %s198, 15
      %s203 = smul.addr %s202, 2
      %s204 = smul.addr %s200, 32
      %s205 = sadd.s32 %s203, %s204
      %s206 = smul.addr %s205, 8
      %s207 = scalar_lea.vmem %s2, %s206
      %s208 = smul.u32 8, %s20
      %p209 = scmp.lt.s32.totalorder %s19, 1
      %s210 = scalar_select %p209, %s19, 1
      %p211 = scmp.lt.s32.totalorder %s20, 1
      %s212 = scalar_select %p211, %s20, 1
      %s213 = smul.addr %s210, 2
      %s214 = sadd.s32 %s212, %s213
      %s215 = smul.addr %s214, 2
      %s216 = scalar_lea.vmem %s3, %s215
      %p217 = scmp.eq.s32.totalorder %s20, 0
      // Predicated region
      $region29: #{double_conv_forward.4} parent=27 // pred_check
        %p218 = pneg %p217
      $region30: #{double_conv_forward.4} parent=27 // pred_check_branch
        %220 = sbr.rel (%p218) target = $region32
      $region31: #{double_conv_forward.4} parent=27 // pred_region
        %221 = vst [vmem:[#allocation2] sm:$0xff] 0.0
        %222 = vst [vmem:[#allocation2 + $0x8] sm:$0xff] 0.0
        %223 = vst [vmem:[#allocation2 + $0x10] sm:$0x3] 0.0
        %224 = vst [vmem:[#allocation2 + $0x18] sm:$0xff] 0.0
        %225 = vst [vmem:[#allocation2 + $0x20] sm:$0xff] 0.0
        %226 = vst [vmem:[#allocation2 + $0x28] sm:$0x3] 0.0
        %227 = vst [vmem:[#allocation2 + $0x30] sm:$0xff] 0.0
        %228 = vst [vmem:[#allocation2 + $0x38] sm:$0xff] 0.0
        %229 = vst [vmem:[#allocation2 + $0x40] sm:$0x3] 0.0
        %230 = vst [vmem:[#allocation2 + $0x48] sm:$0xff] 0.0
        %231 = vst [vmem:[#allocation2 + $0x50] sm:$0xff] 0.0
        %232 = vst [vmem:[#allocation2 + $0x58] sm:$0x3] 0.0
        %233 = vst [vmem:[#allocation2 + $0x60] sm:$0xff] 0.0
        %234 = vst [vmem:[#allocation2 + $0x68] sm:$0xff] 0.0
        %235 = vst [vmem:[#allocation2 + $0x70] sm:$0x3] 0.0
        %236 = vst [vmem:[#allocation2 + $0x78] sm:$0xff] 0.0
        %237 = vst [vmem:[#allocation2 + $0x80] sm:$0xff] 0.0
        %238 = vst [vmem:[#allocation2 + $0x88] sm:$0x3] 0.0
        %239 = vst [vmem:[#allocation2 + $0x90] sm:$0xff] 0.0
        %240 = vst [vmem:[#allocation2 + $0x98] sm:$0xff] 0.0
        %241 = vst [vmem:[#allocation2 + $0xa0] sm:$0x3] 0.0
        %242 = vst [vmem:[#allocation2 + $0xa8] sm:$0xff] 0.0
        %243 = vst [vmem:[#allocation2 + $0xb0] sm:$0xff] 0.0
        %244 = vst [vmem:[#allocation2 + $0xb8] sm:$0x3] 0.0
        %245 = vst [vmem:[#allocation2 + $0xc0] sm:$0xff] 0.0
        %246 = vst [vmem:[#allocation2 + $0xc8] sm:$0xff] 0.0
        %247 = vst [vmem:[#allocation2 + $0xd0] sm:$0x3] 0.0
        %248 = vst [vmem:[#allocation2 + $0xd8] sm:$0xff] 0.0
        %249 = vst [vmem:[#allocation2 + $0xe0] sm:$0xff] 0.0
        %250 = vst [vmem:[#allocation2 + $0xe8] sm:$0x3] 0.0
        %251 = vst [vmem:[#allocation2 + $0xf0] sm:$0xff] 0.0
        %252 = vst [vmem:[#allocation2 + $0xf8] sm:$0xff] 0.0
        %253 = vst [vmem:[#allocation2 + $0x100] sm:$0x3] 0.0
        %254 = vst [vmem:[#allocation2 + $0x108] sm:$0xff] 0.0
        %255 = vst [vmem:[#allocation2 + $0x110] sm:$0xff] 0.0
        %256 = vst [vmem:[#allocation2 + $0x118] sm:$0x3] 0.0
        %257 = vst [vmem:[#allocation2 + $0x120] sm:$0xff] 0.0
        %258 = vst [vmem:[#allocation2 + $0x128] sm:$0xff] 0.0
        %259 = vst [vmem:[#allocation2 + $0x130] sm:$0x3] 0.0
        %260 = vst [vmem:[#allocation2 + $0x138] sm:$0xff] 0.0
        %261 = vst [vmem:[#allocation2 + $0x140] sm:$0xff] 0.0
        %262 = vst [vmem:[#allocation2 + $0x148] sm:$0x3] 0.0
        %263 = vst [vmem:[#allocation2 + $0x150] sm:$0xff] 0.0
        %264 = vst [vmem:[#allocation2 + $0x158] sm:$0xff] 0.0
        %265 = vst [vmem:[#allocation2 + $0x160] sm:$0x3] 0.0
        %266 = vst [vmem:[#allocation2 + $0x168] sm:$0xff] 0.0
        %267 = vst [vmem:[#allocation2 + $0x170] sm:$0xff] 0.0
        %268 = vst [vmem:[#allocation2 + $0x178] sm:$0x3] 0.0
        %269 = vst [vmem:[#allocation2 + $0x180] sm:$0xff] 0.0
        %270 = vst [vmem:[#allocation2 + $0x188] sm:$0xff] 0.0
        %271 = vst [vmem:[#allocation2 + $0x190] sm:$0x3] 0.0
        %272 = vst [vmem:[#allocation2 + $0x198] sm:$0xff] 0.0
        %273 = vst [vmem:[#allocation2 + $0x1a0] sm:$0xff] 0.0
        %274 = vst [vmem:[#allocation2 + $0x1a8] sm:$0x3] 0.0
        %v275 = vld [vmem:[%s197] sm:$0xff]
        %v276 = vld [vmem:[%s197 + $0x8] sm:$0xff]
        %v277 = vld [vmem:[%s197 + $0x10] sm:$0xff]
        %v278 = vld [vmem:[%s197 + $0x18] sm:$0xff]
        %v279 = vld [vmem:[%s197 + $0x20] sm:$0xff]
        %v280 = vld [vmem:[%s197 + $0x28] sm:$0xff]
        %v281 = vld [vmem:[%s197 + $0x30] sm:$0xff]
        %v282 = vld [vmem:[%s197 + $0x38] sm:$0xff]
        %v283 = vld [vmem:[%s197 + $0x40] sm:$0xff]
        %v284 = vld [vmem:[%s197 + $0x48] sm:$0xff]
        %v285 = vld [vmem:[%s197 + $0x50] sm:$0xff]
        %v286 = vld [vmem:[%s197 + $0x58] sm:$0xff]
        %v287 = vld [vmem:[%s197 + $0x60] sm:$0xff]
        %v288 = vld [vmem:[%s197 + $0x68] sm:$0xff]
        %v289 = vld [vmem:[%s197 + $0x70] sm:$0xff]
        %v290 = vld [vmem:[%s197 + $0x78] sm:$0xff]
        %v291 = vld [vmem:[%s197 + $0x80] sm:$0xff]
        %v292 = vld [vmem:[%s197 + $0x88] sm:$0xff]
        %v293 = vld [vmem:[%s197 + $0x90] sm:$0xff]
        %v294 = vld [vmem:[%s197 + $0x98] sm:$0xff]
        %v295 = vld [vmem:[%s197 + $0xa0] sm:$0xff]
        %v296 = vld [vmem:[%s197 + $0xa8] sm:$0xff]
        %v297 = vld [vmem:[%s197 + $0xb0] sm:$0xff]
        %v298 = vld [vmem:[%s197 + $0xb8] sm:$0xff]
        %v299 = vld [vmem:[%s197 + $0xc0] sm:$0xff]
        %v300 = vld [vmem:[%s197 + $0xc8] sm:$0xff]
        %v301 = vld [vmem:[%s197 + $0xd0] sm:$0xff]
        %v302 = vld [vmem:[%s197 + $0xd8] sm:$0xff]
        %v303 = vld [vmem:[%s197 + $0xe0] sm:$0xff]
        %v304 = vld [vmem:[%s197 + $0xe8] sm:$0xff]
        %v305 = vld [vmem:[%s197 + $0xf0] sm:$0xff]
        %v306 = vld [vmem:[%s197 + $0xf8] sm:$0xff]
        %s307 = scalar_lea.vmem [#allocation2], 24
        %vm308 = vcmask 31744
        %309 = vst.msk [vmem:[%s307 + $0x1] sm:$0xff] %vm308, %v275
        %310 = vst.msk [vmem:[%s307 + $0x9] sm:$0xff] %vm308, %v276
        %311 = vst.msk [vmem:[%s307 + $0x19] sm:$0xff] %vm308, %v277
        %312 = vst.msk [vmem:[%s307 + $0x21] sm:$0xff] %vm308, %v278
        %313 = vst.msk [vmem:[%s307 + $0x31] sm:$0xff] %vm308, %v279
        %314 = vst.msk [vmem:[%s307 + $0x39] sm:$0xff] %vm308, %v280
        %315 = vst.msk [vmem:[%s307 + $0x49] sm:$0xff] %vm308, %v281
        %316 = vst.msk [vmem:[%s307 + $0x51] sm:$0xff] %vm308, %v282
        %317 = vst.msk [vmem:[%s307 + $0x61] sm:$0xff] %vm308, %v283
        %318 = vst.msk [vmem:[%s307 + $0x69] sm:$0xff] %vm308, %v284
        %319 = vst.msk [vmem:[%s307 + $0x79] sm:$0xff] %vm308, %v285
        %320 = vst.msk [vmem:[%s307 + $0x81] sm:$0xff] %vm308, %v286
        %321 = vst.msk [vmem:[%s307 + $0x91] sm:$0xff] %vm308, %v287
        %322 = vst.msk [vmem:[%s307 + $0x99] sm:$0xff] %vm308, %v288
        %323 = vst.msk [vmem:[%s307 + $0xa9] sm:$0xff] %vm308, %v289
        %324 = vst.msk [vmem:[%s307 + $0xb1] sm:$0xff] %vm308, %v290
        %325 = vst.msk [vmem:[%s307 + $0xc1] sm:$0xff] %vm308, %v291
        %326 = vst.msk [vmem:[%s307 + $0xc9] sm:$0xff] %vm308, %v292
        %327 = vst.msk [vmem:[%s307 + $0xd9] sm:$0xff] %vm308, %v293
        %328 = vst.msk [vmem:[%s307 + $0xe1] sm:$0xff] %vm308, %v294
        %329 = vst.msk [vmem:[%s307 + $0xf1] sm:$0xff] %vm308, %v295
        %330 = vst.msk [vmem:[%s307 + $0xf9] sm:$0xff] %vm308, %v296
        %331 = vst.msk [vmem:[%s307 + $0x109] sm:$0xff] %vm308, %v297
        %332 = vst.msk [vmem:[%s307 + $0x111] sm:$0xff] %vm308, %v298
        %333 = vst.msk [vmem:[%s307 + $0x121] sm:$0xff] %vm308, %v299
        %334 = vst.msk [vmem:[%s307 + $0x129] sm:$0xff] %vm308, %v300
        %335 = vst.msk [vmem:[%s307 + $0x139] sm:$0xff] %vm308, %v301
        %336 = vst.msk [vmem:[%s307 + $0x141] sm:$0xff] %vm308, %v302
        %337 = vst.msk [vmem:[%s307 + $0x151] sm:$0xff] %vm308, %v303
        %338 = vst.msk [vmem:[%s307 + $0x159] sm:$0xff] %vm308, %v304
        %339 = vst.msk [vmem:[%s307 + $0x169] sm:$0xff] %vm308, %v305
        %340 = vst.msk [vmem:[%s307 + $0x171] sm:$0xff] %vm308, %v306
      $region32: #{double_conv_forward.4} parent=27 // pred_fallthru
        _
      %s341 = smul.u32 %s20, 8
      %s342 = smul.u32 %s341, 24
      %s343 = scalar_lea.vmem [#allocation2], %s342
      %v344 = vld [vmem:[%s343] sm:$0xff]
      %v345 = vld [vmem:[%s343 + $0x8] sm:$0xff]
      %v346 = vld [vmem:[%s343 + $0x18] sm:$0xff]
      %v347 = vld [vmem:[%s343 + $0x20] sm:$0xff]
      %v348 = vld [vmem:[%s343 + $0x30] sm:$0xff]
      %v349 = vld [vmem:[%s343 + $0x38] sm:$0xff]
      %v350 = vld [vmem:[%s343 + $0x48] sm:$0xff]
      %v351 = vld [vmem:[%s343 + $0x50] sm:$0xff]
      %v352 = vld [vmem:[%s343 + $0x60] sm:$0xff]
      %v353 = vld [vmem:[%s343 + $0x68] sm:$0xff]
      %v354 = vld [vmem:[%s343 + $0x78] sm:$0xff]
      %v355 = vld [vmem:[%s343 + $0x80] sm:$0xff]
      %v356 = vld [vmem:[%s343 + $0x90] sm:$0xff]
      %v357 = vld [vmem:[%s343 + $0x98] sm:$0xff]
      %v358 = vld [vmem:[%s343 + $0xa8] sm:$0xff]
      %v359 = vld [vmem:[%s343 + $0xb0] sm:$0xff]
      %v360 = vld [vmem:[%s343 + $0x1] sm:$0xff]
      %v361 = vld [vmem:[%s343 + $0x9] sm:$0xff]
      %v362 = vld [vmem:[%s343 + $0x19] sm:$0xff]
      %v363 = vld [vmem:[%s343 + $0x21] sm:$0xff]
      %v364 = vld [vmem:[%s343 + $0x31] sm:$0xff]
      %v365 = vld [vmem:[%s343 + $0x39] sm:$0xff]
      %v366 = vld [vmem:[%s343 + $0x49] sm:$0xff]
      %v367 = vld [vmem:[%s343 + $0x51] sm:$0xff]
      %v368 = vld [vmem:[%s343 + $0x61] sm:$0xff]
      %v369 = vld [vmem:[%s343 + $0x69] sm:$0xff]
      %v370 = vld [vmem:[%s343 + $0x79] sm:$0xff]
      %v371 = vld [vmem:[%s343 + $0x81] sm:$0xff]
      %v372 = vld [vmem:[%s343 + $0x91] sm:$0xff]
      %v373 = vld [vmem:[%s343 + $0x99] sm:$0xff]
      %v374 = vld [vmem:[%s343 + $0xa9] sm:$0xff]
      %v375 = vld [vmem:[%s343 + $0xb1] sm:$0xff]
      %v376 = vld [vmem:[%s343 + $0x2] sm:$0xff]
      %v377 = vld [vmem:[%s343 + $0xa] sm:$0xff]
      %v378 = vld [vmem:[%s343 + $0x1a] sm:$0xff]
      %v379 = vld [vmem:[%s343 + $0x22] sm:$0xff]
      %v380 = vld [vmem:[%s343 + $0x32] sm:$0xff]
      %v381 = vld [vmem:[%s343 + $0x3a] sm:$0xff]
      %v382 = vld [vmem:[%s343 + $0x4a] sm:$0xff]
      %v383 = vld [vmem:[%s343 + $0x52] sm:$0xff]
      %v384 = vld [vmem:[%s343 + $0x62] sm:$0xff]
      %v385 = vld [vmem:[%s343 + $0x6a] sm:$0xff]
      %v386 = vld [vmem:[%s343 + $0x7a] sm:$0xff]
      %v387 = vld [vmem:[%s343 + $0x82] sm:$0xff]
      %v388 = vld [vmem:[%s343 + $0x92] sm:$0xff]
      %v389 = vld [vmem:[%s343 + $0x9a] sm:$0xff]
      %v390 = vld [vmem:[%s343 + $0xaa] sm:$0xff]
      %v391 = vld [vmem:[%s343 + $0xb2] sm:$0xff]
      %s392 = sadd.s32 %s341, 1
      %s393 = smul.u32 %s392, 24
      %s394 = scalar_lea.vmem [#allocation2], %s393
      %v395 = vld [vmem:[%s394] sm:$0xff]
      %v396 = vld [vmem:[%s394 + $0x8] sm:$0xff]
      %v397 = vld [vmem:[%s394 + $0x18] sm:$0xff]
      %v398 = vld [vmem:[%s394 + $0x20] sm:$0xff]
      %v399 = vld [vmem:[%s394 + $0x30] sm:$0xff]
      %v400 = vld [vmem:[%s394 + $0x38] sm:$0xff]
      %v401 = vld [vmem:[%s394 + $0x48] sm:$0xff]
      %v402 = vld [vmem:[%s394 + $0x50] sm:$0xff]
      %v403 = vld [vmem:[%s394 + $0x60] sm:$0xff]
      %v404 = vld [vmem:[%s394 + $0x68] sm:$0xff]
      %v405 = vld [vmem:[%s394 + $0x78] sm:$0xff]
      %v406 = vld [vmem:[%s394 + $0x80] sm:$0xff]
      %v407 = vld [vmem:[%s394 + $0x90] sm:$0xff]
      %v408 = vld [vmem:[%s394 + $0x98] sm:$0xff]
      %v409 = vld [vmem:[%s394 + $0xa8] sm:$0xff]
      %v410 = vld [vmem:[%s394 + $0xb0] sm:$0xff]
      %v411 = vld [vmem:[%s394 + $0x1] sm:$0xff]
      %v412 = vld [vmem:[%s394 + $0x9] sm:$0xff]
      %v413 = vld [vmem:[%s394 + $0x19] sm:$0xff]
      %v414 = vld [vmem:[%s394 + $0x21] sm:$0xff]
      %v415 = vld [vmem:[%s394 + $0x31] sm:$0xff]
      %v416 = vld [vmem:[%s394 + $0x39] sm:$0xff]
      %v417 = vld [vmem:[%s394 + $0x49] sm:$0xff]
      %v418 = vld [vmem:[%s394 + $0x51] sm:$0xff]
      %v419 = vld [vmem:[%s394 + $0x61] sm:$0xff]
      %v420 = vld [vmem:[%s394 + $0x69] sm:$0xff]
      %v421 = vld [vmem:[%s394 + $0x79] sm:$0xff]
      %v422 = vld [vmem:[%s394 + $0x81] sm:$0xff]
      %v423 = vld [vmem:[%s394 + $0x91] sm:$0xff]
      %v424 = vld [vmem:[%s394 + $0x99] sm:$0xff]
      %v425 = vld [vmem:[%s394 + $0xa9] sm:$0xff]
      %v426 = vld [vmem:[%s394 + $0xb1] sm:$0xff]
      %v427 = vld [vmem:[%s394 + $0x2] sm:$0xff]
      %v428 = vld [vmem:[%s394 + $0xa] sm:$0xff]
      %v429 = vld [vmem:[%s394 + $0x1a] sm:$0xff]
      %v430 = vld [vmem:[%s394 + $0x22] sm:$0xff]
      %v431 = vld [vmem:[%s394 + $0x32] sm:$0xff]
      %v432 = vld [vmem:[%s394 + $0x3a] sm:$0xff]
      %v433 = vld [vmem:[%s394 + $0x4a] sm:$0xff]
      %v434 = vld [vmem:[%s394 + $0x52] sm:$0xff]
      %v435 = vld [vmem:[%s394 + $0x62] sm:$0xff]
      %v436 = vld [vmem:[%s394 + $0x6a] sm:$0xff]
      %v437 = vld [vmem:[%s394 + $0x7a] sm:$0xff]
      %v438 = vld [vmem:[%s394 + $0x82] sm:$0xff]
      %v439 = vld [vmem:[%s394 + $0x92] sm:$0xff]
      %v440 = vld [vmem:[%s394 + $0x9a] sm:$0xff]
      %v441 = vld [vmem:[%s394 + $0xaa] sm:$0xff]
      %v442 = vld [vmem:[%s394 + $0xb2] sm:$0xff]
      %s443 = sadd.s32 %s341, 2
      %s444 = smul.u32 %s443, 24
      %s445 = scalar_lea.vmem [#allocation2], %s444
      %v446 = vld [vmem:[%s445] sm:$0xff]
      %v447 = vld [vmem:[%s445 + $0x8] sm:$0xff]
      %v448 = vld [vmem:[%s445 + $0x18] sm:$0xff]
      %v449 = vld [vmem:[%s445 + $0x20] sm:$0xff]
      %v450 = vld [vmem:[%s445 + $0x30] sm:$0xff]
      %v451 = vld [vmem:[%s445 + $0x38] sm:$0xff]
      %v452 = vld [vmem:[%s445 + $0x48] sm:$0xff]
      %v453 = vld [vmem:[%s445 + $0x50] sm:$0xff]
      %v454 = vld [vmem:[%s445 + $0x60] sm:$0xff]
      %v455 = vld [vmem:[%s445 + $0x68] sm:$0xff]
      %v456 = vld [vmem:[%s445 + $0x78] sm:$0xff]
      %v457 = vld [vmem:[%s445 + $0x80] sm:$0xff]
      %v458 = vld [vmem:[%s445 + $0x90] sm:$0xff]
      %v459 = vld [vmem:[%s445 + $0x98] sm:$0xff]
      %v460 = vld [vmem:[%s445 + $0xa8] sm:$0xff]
      %v461 = vld [vmem:[%s445 + $0xb0] sm:$0xff]
      %v462 = vld [vmem:[%s445 + $0x1] sm:$0xff]
      %v463 = vld [vmem:[%s445 + $0x9] sm:$0xff]
      %v464 = vld [vmem:[%s445 + $0x19] sm:$0xff]
      %v465 = vld [vmem:[%s445 + $0x21] sm:$0xff]
      %v466 = vld [vmem:[%s445 + $0x31] sm:$0xff]
      %v467 = vld [vmem:[%s445 + $0x39] sm:$0xff]
      %v468 = vld [vmem:[%s445 + $0x49] sm:$0xff]
      %v469 = vld [vmem:[%s445 + $0x51] sm:$0xff]
      %v470 = vld [vmem:[%s445 + $0x61] sm:$0xff]
      %v471 = vld [vmem:[%s445 + $0x69] sm:$0xff]
      %v472 = vld [vmem:[%s445 + $0x79] sm:$0xff]
      %v473 = vld [vmem:[%s445 + $0x81] sm:$0xff]
      %v474 = vld [vmem:[%s445 + $0x91] sm:$0xff]
      %v475 = vld [vmem:[%s445 + $0x99] sm:$0xff]
      %v476 = vld [vmem:[%s445 + $0xa9] sm:$0xff]
      %v477 = vld [vmem:[%s445 + $0xb1] sm:$0xff]
      %v478 = vld [vmem:[%s445 + $0x2] sm:$0xff]
      %v479 = vld [vmem:[%s445 + $0xa] sm:$0xff]
      %v480 = vld [vmem:[%s445 + $0x1a] sm:$0xff]
      %v481 = vld [vmem:[%s445 + $0x22] sm:$0xff]
      %v482 = vld [vmem:[%s445 + $0x32] sm:$0xff]
      %v483 = vld [vmem:[%s445 + $0x3a] sm:$0xff]
      %v484 = vld [vmem:[%s445 + $0x4a] sm:$0xff]
      %v485 = vld [vmem:[%s445 + $0x52] sm:$0xff]
      %v486 = vld [vmem:[%s445 + $0x62] sm:$0xff]
      %v487 = vld [vmem:[%s445 + $0x6a] sm:$0xff]
      %v488 = vld [vmem:[%s445 + $0x7a] sm:$0xff]
      %v489 = vld [vmem:[%s445 + $0x82] sm:$0xff]
      %v490 = vld [vmem:[%s445 + $0x92] sm:$0xff]
      %v491 = vld [vmem:[%s445 + $0x9a] sm:$0xff]
      %v492 = vld [vmem:[%s445 + $0xaa] sm:$0xff]
      %v493 = vld [vmem:[%s445 + $0xb2] sm:$0xff]
      %v494 = vld [vmem:[%s1] sm:$0xff]
      %v495 = vld [vmem:[%s1 + $0x8] sm:$0xff]
      %v496 = vld [vmem:[%s1 + $0x10] sm:$0xff]
      %v497 = vld [vmem:[%s1 + $0x18] sm:$0xff]
      %v498 = vld [vmem:[%s1 + $0x20] sm:$0xff]
      %v499 = vld [vmem:[%s1 + $0x28] sm:$0xff]
      %v500 = vld [vmem:[%s1 + $0x30] sm:$0xff]
      %v501 = vld [vmem:[%s1 + $0x38] sm:$0xff]
      %v502 = vld [vmem:[%s1 + $0x40] sm:$0xff]
      %v503 = vld [vmem:[%s1 + $0x48] sm:$0xff]
      %v504 = vld [vmem:[%s1 + $0x50] sm:$0xff]
      %v505 = vld [vmem:[%s1 + $0x58] sm:$0xff]
      %v506 = vld [vmem:[%s1 + $0x60] sm:$0xff]
      %v507 = vld [vmem:[%s1 + $0x68] sm:$0xff]
      %v508 = vld [vmem:[%s1 + $0x70] sm:$0xff]
      %v509 = vld [vmem:[%s1 + $0x78] sm:$0xff]
      %v510 = vld [vmem:[%s1 + $0x80] sm:$0xff]
      %v511 = vld [vmem:[%s1 + $0x88] sm:$0xff]
      %v512 = vld [vmem:[%s1 + $0x90] sm:$0xff]
      %v513 = vld [vmem:[%s1 + $0x98] sm:$0xff]
      %v514 = vld [vmem:[%s1 + $0xa0] sm:$0xff]
      %v515 = vld [vmem:[%s1 + $0xa8] sm:$0xff]
      %v516 = vld [vmem:[%s1 + $0xb0] sm:$0xff]
      %v517 = vld [vmem:[%s1 + $0xb8] sm:$0xff]
      %v518 = vld [vmem:[%s1 + $0xc0] sm:$0xff]
      %v519 = vld [vmem:[%s1 + $0xc8] sm:$0xff]
      %v520 = vld [vmem:[%s1 + $0xd0] sm:$0xff]
      %v521 = vld [vmem:[%s1 + $0xd8] sm:$0xff]
      %v522 = vld [vmem:[%s1 + $0xe0] sm:$0xff]
      %v523 = vld [vmem:[%s1 + $0xe8] sm:$0xff]
      %v524 = vld [vmem:[%s1 + $0xf0] sm:$0xff]
      %v525 = vld [vmem:[%s1 + $0xf8] sm:$0xff]
      %v526 = vld [vmem:[%s1 + $0x100] sm:$0xff]
      %v527 = vld [vmem:[%s1 + $0x108] sm:$0xff]
      %v528 = vld [vmem:[%s1 + $0x110] sm:$0xff]
      %v529 = vld [vmem:[%s1 + $0x118] sm:$0xff]
      %v530 = vld [vmem:[%s1 + $0x120] sm:$0xff]
      %v531 = vld [vmem:[%s1 + $0x128] sm:$0xff]
      %v532 = vld [vmem:[%s1 + $0x130] sm:$0xff]
      %v533 = vld [vmem:[%s1 + $0x138] sm:$0xff]
      %v534 = vld [vmem:[%s1 + $0x140] sm:$0xff]
      %v535 = vld [vmem:[%s1 + $0x148] sm:$0xff]
      %v536 = vld [vmem:[%s1 + $0x150] sm:$0xff]
      %v537 = vld [vmem:[%s1 + $0x158] sm:$0xff]
      %v538 = vld [vmem:[%s1 + $0x160] sm:$0xff]
      %v539 = vld [vmem:[%s1 + $0x168] sm:$0xff]
      %v540 = vld [vmem:[%s1 + $0x170] sm:$0xff]
      %v541 = vld [vmem:[%s1 + $0x178] sm:$0xff]
      %v542 = vld [vmem:[%s1 + $0x180] sm:$0xff]
      %v543 = vld [vmem:[%s1 + $0x188] sm:$0xff]
      %v544 = vld [vmem:[%s1 + $0x190] sm:$0xff]
      %v545 = vld [vmem:[%s1 + $0x198] sm:$0xff]
      %v546 = vld [vmem:[%s1 + $0x1a0] sm:$0xff]
      %v547 = vld [vmem:[%s1 + $0x1a8] sm:$0xff]
      %v548 = vld [vmem:[%s1 + $0x1b0] sm:$0xff]
      %v549 = vld [vmem:[%s1 + $0x1b8] sm:$0xff]
      %v550 = vld [vmem:[%s1 + $0x1c0] sm:$0xff]
      %v551 = vld [vmem:[%s1 + $0x1c8] sm:$0xff]
      %v552 = vld [vmem:[%s1 + $0x1d0] sm:$0xff]
      %v553 = vld [vmem:[%s1 + $0x1d8] sm:$0xff]
      %v554 = vld [vmem:[%s1 + $0x1e0] sm:$0xff]
      %v555 = vld [vmem:[%s1 + $0x1e8] sm:$0xff]
      %v556 = vld [vmem:[%s1 + $0x1f0] sm:$0xff]
      %v557 = vld [vmem:[%s1 + $0x1f8] sm:$0xff]
      %v558 = vld [vmem:[%s1 + $0x200] sm:$0xff]
      %v559 = vld [vmem:[%s1 + $0x208] sm:$0xff]
      %v560 = vld [vmem:[%s1 + $0x210] sm:$0xff]
      %v561 = vld [vmem:[%s1 + $0x218] sm:$0xff]
      %v562 = vld [vmem:[%s1 + $0x220] sm:$0xff]
      %v563 = vld [vmem:[%s1 + $0x228] sm:$0xff]
      %v564 = vld [vmem:[%s1 + $0x230] sm:$0xff]
      %v565 = vld [vmem:[%s1 + $0x238] sm:$0xff]
      %v566 = vld [vmem:[%s1 + $0x240] sm:$0xff]
      %v567 = vld [vmem:[%s1 + $0x248] sm:$0xff]
      %v568 = vld [vmem:[%s1 + $0x250] sm:$0xff]
      %v569 = vld [vmem:[%s1 + $0x258] sm:$0xff]
      %v570 = vld [vmem:[%s1 + $0x260] sm:$0xff]
      %v571 = vld [vmem:[%s1 + $0x268] sm:$0xff]
      %v572 = vld [vmem:[%s1 + $0x270] sm:$0xff]
      %v573 = vld [vmem:[%s1 + $0x278] sm:$0xff]
      %v574 = vld [vmem:[%s1 + $0x280] sm:$0xff]
      %v575 = vld [vmem:[%s1 + $0x288] sm:$0xff]
      %v576 = vld [vmem:[%s1 + $0x290] sm:$0xff]
      %v577 = vld [vmem:[%s1 + $0x298] sm:$0xff]
      %v578 = vld [vmem:[%s1 + $0x2a0] sm:$0xff]
      %v579 = vld [vmem:[%s1 + $0x2a8] sm:$0xff]
      %v580 = vld [vmem:[%s1 + $0x2b0] sm:$0xff]
      %v581 = vld [vmem:[%s1 + $0x2b8] sm:$0xff]
      %v582 = vld [vmem:[%s1 + $0x2c0] sm:$0xff]
      %v583 = vld [vmem:[%s1 + $0x2c8] sm:$0xff]
      %v584 = vld [vmem:[%s1 + $0x2d0] sm:$0xff]
      %v585 = vld [vmem:[%s1 + $0x2d8] sm:$0xff]
      %v586 = vld [vmem:[%s1 + $0x2e0] sm:$0xff]
      %v587 = vld [vmem:[%s1 + $0x2e8] sm:$0xff]
      %v588 = vld [vmem:[%s1 + $0x2f0] sm:$0xff]
      %v589 = vld [vmem:[%s1 + $0x2f8] sm:$0xff]
      %v590 = vld [vmem:[%s1 + $0x300] sm:$0xff]
      %v591 = vld [vmem:[%s1 + $0x308] sm:$0xff]
      %v592 = vld [vmem:[%s1 + $0x310] sm:$0xff]
      %v593 = vld [vmem:[%s1 + $0x318] sm:$0xff]
      %v594 = vld [vmem:[%s1 + $0x320] sm:$0xff]
      %v595 = vld [vmem:[%s1 + $0x328] sm:$0xff]
      %v596 = vld [vmem:[%s1 + $0x330] sm:$0xff]
      %v597 = vld [vmem:[%s1 + $0x338] sm:$0xff]
      %v598 = vld [vmem:[%s1 + $0x340] sm:$0xff]
      %v599 = vld [vmem:[%s1 + $0x348] sm:$0xff]
      %v600 = vld [vmem:[%s1 + $0x350] sm:$0xff]
      %v601 = vld [vmem:[%s1 + $0x358] sm:$0xff]
      %v602 = vld [vmem:[%s1 + $0x360] sm:$0xff]
      %v603 = vld [vmem:[%s1 + $0x368] sm:$0xff]
      %v604 = vld [vmem:[%s1 + $0x370] sm:$0xff]
      %v605 = vld [vmem:[%s1 + $0x378] sm:$0xff]
      %v606 = vld [vmem:[%s1 + $0x380] sm:$0xff]
      %v607 = vld [vmem:[%s1 + $0x388] sm:$0xff]
      %v608 = vld [vmem:[%s1 + $0x390] sm:$0xff]
      %v609 = vld [vmem:[%s1 + $0x398] sm:$0xff]
      %v610 = vld [vmem:[%s1 + $0x3a0] sm:$0xff]
      %v611 = vld [vmem:[%s1 + $0x3a8] sm:$0xff]
      %v612 = vld [vmem:[%s1 + $0x3b0] sm:$0xff]
      %v613 = vld [vmem:[%s1 + $0x3b8] sm:$0xff]
      %v614 = vld [vmem:[%s1 + $0x3c0] sm:$0xff]
      %v615 = vld [vmem:[%s1 + $0x3c8] sm:$0xff]
      %v616 = vld [vmem:[%s1 + $0x3d0] sm:$0xff]
      %v617 = vld [vmem:[%s1 + $0x3d8] sm:$0xff]
      %v618 = vld [vmem:[%s1 + $0x3e0] sm:$0xff]
      %v619 = vld [vmem:[%s1 + $0x3e8] sm:$0xff]
      %v620 = vld [vmem:[%s1 + $0x3f0] sm:$0xff]
      %v621 = vld [vmem:[%s1 + $0x3f8] sm:$0xff]
      %v622 = vld [vmem:[%s1 + $0x400] sm:$0xff]
      %v623 = vld [vmem:[%s1 + $0x408] sm:$0xff]
      %v624 = vld [vmem:[%s1 + $0x410] sm:$0xff]
      %v625 = vld [vmem:[%s1 + $0x418] sm:$0xff]
      %v626 = vld [vmem:[%s1 + $0x420] sm:$0xff]
      %v627 = vld [vmem:[%s1 + $0x428] sm:$0xff]
      %v628 = vld [vmem:[%s1 + $0x430] sm:$0xff]
      %v629 = vld [vmem:[%s1 + $0x438] sm:$0xff]
      %v630 = vld [vmem:[%s1 + $0x440] sm:$0xff]
      %v631 = vld [vmem:[%s1 + $0x448] sm:$0xff]
      %v632 = vld [vmem:[%s1 + $0x450] sm:$0xff]
      %v633 = vld [vmem:[%s1 + $0x458] sm:$0xff]
      %v634 = vld [vmem:[%s1 + $0x460] sm:$0xff]
      %v635 = vld [vmem:[%s1 + $0x468] sm:$0xff]
      %v636 = vld [vmem:[%s1 + $0x470] sm:$0xff]
      %v637 = vld [vmem:[%s1 + $0x478] sm:$0xff]
      %638 = vmatprep.subr.mxu0 0.0
      %639 = vmatpush1.msra.mxu0 %v494
      %640 = vmatprep.subr.mxu0 0.0
      %641 = vmatpush1.msra.mxu0 %v495
      %642 = vmatprep.subr.mxu0 0.0
      %643 = vmatpush1.msra.mxu0 %v496
      %644 = vmatprep.subr.mxu0 0.0
      %645 = vmatpush1.msra.mxu0 %v497
      %646 = vmatprep.subr.mxu0 0.0
      %647 = vmatpush1.msra.mxu0 %v498
      %648 = vmatprep.subr.mxu0 0.0
      %649 = vmatpush1.msra.mxu0 %v499
      %650 = vmatprep.subr.mxu0 0.0
      %651 = vmatpush1.msra.mxu0 %v500
      %652 = vmatprep.subr.mxu0 0.0
      %653 = vmatpush1.msra.mxu0 %v501
      %654 = vmatprep.subr.mxu0 0.0
      %655 = vmatpush1.msra.mxu0 %v502
      %656 = vmatprep.subr.mxu0 0.0
      %657 = vmatpush1.msra.mxu0 %v503
      %658 = vmatprep.subr.mxu0 0.0
      %659 = vmatpush1.msra.mxu0 %v504
      %660 = vmatprep.subr.mxu0 0.0
      %661 = vmatpush1.msra.mxu0 %v505
      %662 = vmatprep.subr.mxu0 0.0
      %663 = vmatpush1.msra.mxu0 %v506
      %664 = vmatprep.subr.mxu0 0.0
      %665 = vmatpush1.msra.mxu0 %v507
      %666 = vmatprep.subr.mxu0 0.0
      %667 = vmatpush1.msra.mxu0 %v508
      %668 = vmatprep.subr.mxu0 0.0
      %669 = vmatpush1.msra.mxu0 %v509
      %670 = vmatprep.subr.mxu0 0.0
      %671 = vmatpush1.msra.mxu0 %v510
      %672 = vmatprep.subr.mxu0 0.0
      %673 = vmatpush1.msra.mxu0 %v511
      %674 = vmatprep.subr.mxu0 0.0
      %675 = vmatpush1.msra.mxu0 %v512
      %676 = vmatprep.subr.mxu0 0.0
      %677 = vmatpush1.msra.mxu0 %v513
      %678 = vmatprep.subr.mxu0 0.0
      %679 = vmatpush1.msra.mxu0 %v514
      %680 = vmatprep.subr.mxu0 0.0
      %681 = vmatpush1.msra.mxu0 %v515
      %682 = vmatprep.subr.mxu0 0.0
      %683 = vmatpush1.msra.mxu0 %v516
      %684 = vmatprep.subr.mxu0 0.0
      %685 = vmatpush1.msra.mxu0 %v517
      %686 = vmatprep.subr.mxu0 0.0
      %687 = vmatpush1.msra.mxu0 %v518
      %688 = vmatprep.subr.mxu0 0.0
      %689 = vmatpush1.msra.mxu0 %v519
      %690 = vmatprep.subr.mxu0 0.0
      %691 = vmatpush1.msra.mxu0 %v520
      %692 = vmatprep.subr.mxu0 0.0
      %693 = vmatpush1.msra.mxu0 %v521
      %694 = vmatprep.subr.mxu0 0.0
      %695 = vmatpush1.msra.mxu0 %v522
      %696 = vmatprep.subr.mxu0 0.0
      %697 = vmatpush1.msra.mxu0 %v523
      %698 = vmatprep.subr.mxu0 0.0
      %699 = vmatpush1.msra.mxu0 %v524
      %700 = vmatprep.subr.mxu0 0.0
      %701 = vmatpush1.msra.mxu0 %v525
      %702 = vmatprep.mubr.f32.mxu0 %v360
      %703 = vmatmul.mubr.f32.gmra.mrb[0].mxu0 %v344
      %v704 = vpop.f32.mrb[0].mxu0
      %v705 = vadd.f32 0.0, %v704
      %v706 = vpop.f32.mrb[0].mxu0
      %707 = vmatprep.mubr.f32.mxu0 %v361
      %708 = vmatmul.mubr.f32.gmra.mrb[0].mxu0 %v345
      %v709 = vpop.f32.mrb[0].mxu0
      %v710 = vadd.f32 0.0, %v709
      %v711 = vpop.f32.mrb[0].mxu0
      %712 = vmatprep.mubr.f32.mxu0 %v362
      %713 = vmatmul.mubr.f32.gmra.mrb[0].mxu0 %v346
      %v714 = vpop.f32.mrb[0].mxu0
      %v715 = vadd.f32 0.0, %v714
      %v716 = vpop.f32.mrb[0].mxu0
      %717 = vmatprep.mubr.f32.mxu0 %v363
      %718 = vmatmul.mubr.f32.gmra.mrb[0].mxu0 %v347
      %v719 = vpop.f32.mrb[0].mxu0
      %v720 = vadd.f32 0.0, %v719
      %v721 = vpop.f32.mrb[0].mxu0
      %722 = vmatprep.mubr.f32.mxu0 %v364
      %723 = vmatmul.mubr.f32.gmra.mrb[0].mxu0 %v348
      %v724 = vpop.f32.mrb[0].mxu0
      %v725 = vadd.f32 0.0, %v724
      %v726 = vpop.f32.mrb[0].mxu0
      %727 = vmatprep.mubr.f32.mxu0 %v365
      %728 = vmatmul.mubr.f32.gmra.mrb[0].mxu0 %v349
      %v729 = vpop.f32.mrb[0].mxu0
      %v730 = vadd.f32 0.0, %v729
      %v731 = vpop.f32.mrb[0].mxu0
      %732 = vmatprep.mubr.f32.mxu0 %v366
      %733 = vmatmul.mubr.f32.gmra.mrb[0].mxu0 %v350
      %v734 = vpop.f32.mrb[0].mxu0
      %v735 = vadd.f32 0.0, %v734
      %v736 = vpop.f32.mrb[0].mxu0
      %737 = vmatprep.mubr.f32.mxu0 %v367
      %738 = vmatmul.mubr.f32.gmra.mrb[0].mxu0 %v351
      %v739 = vpop.f32.mrb[0].mxu0
      %v740 = vadd.f32 0.0, %v739
      %v741 = vpop.f32.mrb[0].mxu0
      %742 = vmatprep.mubr.f32.mxu0 %v368
      %743 = vmatmul.mubr.f32.gmra.mrb[0].mxu0 %v352
      %v744 = vpop.f32.mrb[0].mxu0
      %v745 = vadd.f32 0.0, %v744
      %v746 = vpop.f32.mrb[0].mxu0
      %747 = vmatprep.mubr.f32.mxu0 %v369
      %748 = vmatmul.mubr.f32.gmra.mrb[0].mxu0 %v353
      %v749 = vpop.f32.mrb[0].mxu0
      %v750 = vadd.f32 0.0, %v749
      %v751 = vpop.f32.mrb[0].mxu0
      %752 = vmatprep.mubr.f32.mxu0 %v370
      %753 = vmatmul.mubr.f32.gmra.mrb[0].mxu0 %v354
      %v754 = vpop.f32.mrb[0].mxu0
      %v755 = vadd.f32 0.0, %v754
      %v756 = vpop.f32.mrb[0].mxu0
      %757 = vmatprep.mubr.f32.mxu0 %v371
      %758 = vmatmul.mubr.f32.gmra.mrb[0].mxu0 %v355
      %v759 = vpop.f32.mrb[0].mxu0
      %v760 = vadd.f32 0.0, %v759
      %v761 = vpop.f32.mrb[0].mxu0
      %762 = vmatprep.mubr.f32.mxu0 %v372
      %763 = vmatmul.mubr.f32.gmra.mrb[0].mxu0 %v356
      %v764 = vpop.f32.mrb[0].mxu0
      %v765 = vadd.f32 0.0, %v764
      %v766 = vpop.f32.mrb[0].mxu0
      %767 = vmatprep.mubr.f32.mxu0 %v373
      %768 = vmatmul.mubr.f32.gmra.mrb[0].mxu0 %v357
      %v769 = vpop.f32.mrb[0].mxu0
      %v770 = vadd.f32 0.0, %v769
      %v771 = vpop.f32.mrb[0].mxu0
      %772 = vmatprep.mubr.f32.mxu0 %v374
      %773 = vmatmul.mubr.f32.gmra.mrb[0].mxu0 %v358
      %v774 = vpop.f32.mrb[0].mxu0
      %v775 = vadd.f32 0.0, %v774
      %v776 = vpop.f32.mrb[0].mxu0
      %777 = vmatprep.mubr.f32.mxu0 %v375
      %778 = vmatmul.mubr.f32.gmra.mrb[0].mxu0 %v359
      %v779 = vpop.f32.mrb[0].mxu0
      %v780 = vadd.f32 0.0, %v779
      %v781 = vpop.f32.mrb[0].mxu0
      %782 = vdwg.mxu0
      %783 = vmatprep.subr.mxu0 0.0
      %784 = vmatpush1.msra.mxu0 %v526
      %785 = vmatprep.subr.mxu0 0.0
      %786 = vmatpush1.msra.mxu0 %v527
      %787 = vmatprep.subr.mxu0 0.0
      %788 = vmatpush1.msra.mxu0 %v528
      %789 = vmatprep.subr.mxu0 0.0
      %790 = vmatpush1.msra.mxu0 %v529
      %791 = vmatprep.subr.mxu0 0.0
      %792 = vmatpush1.msra.mxu0 %v530
      %793 = vmatprep.subr.mxu0 0.0
      %794 = vmatpush1.msra.mxu0 %v531
      %795 = vmatprep.subr.mxu0 0.0
      %796 = vmatpush1.msra.mxu0 %v532
      %797 = vmatprep.subr.mxu0 0.0
      %798 = vmatpush1.msra.mxu0 %v533
      %799 = vmatprep.subr.mxu0 0.0
      %800 = vmatpush1.msra.mxu0 %v534
      %801 = vmatprep.subr.mxu0 0.0
      %802 = vmatpush1.msra.mxu0 %v535
      %803 = vmatprep.subr.mxu0 0.0
      %804 = vmatpush1.msra.mxu0 %v536
      %805 = vmatprep.subr.mxu0 0.0
      %806 = vmatpush1.msra.mxu0 %v537
      %807 = vmatprep.subr.mxu0 0.0
      %808 = vmatpush1.msra.mxu0 %v538
      %809 = vmatprep.subr.mxu0 0.0
      %810 = vmatpush1.msra.mxu0 %v539
      %811 = vmatprep.subr.mxu0 0.0
      %812 = vmatpush1.msra.mxu0 %v540
      %813 = vmatprep.subr.mxu0 0.0
      %814 = vmatpush1.msra.mxu0 %v541
      %815 = vmatprep.subr.mxu0 0.0
      %816 = vmatpush1.msra.mxu0 %v542
      %817 = vmatprep.subr.mxu0 0.0
      %818 = vmatpush1.msra.mxu0 %v543
      %819 = vmatprep.subr.mxu0 0.0
      %820 = vmatpush1.msra.mxu0 %v544
      %821 = vmatprep.subr.mxu0 0.0
      %822 = vmatpush1.msra.mxu0 %v545
      %823 = vmatprep.subr.mxu0 0.0
      %824 = vmatpush1.msra.mxu0 %v546
      %825 = vmatprep.subr.mxu0 0.0
      %826 = vmatpush1.msra.mxu0 %v547
      %827 = vmatprep.subr.mxu0 0.0
      %828 = vmatpush1.msra.mxu0 %v548
      %829 = vmatprep.subr.mxu0 0.0
      %830 = vmatpush1.msra.mxu0 %v549
      %831 = vmatprep.subr.mxu0 0.0
      %832 = vmatpush1.msra.mxu0 %v550
      %833 = vmatprep.subr.mxu0 0.0
      %834 = vmatpush1.msra.mxu0 %v551
      %835 = vmatprep.subr.mxu0 0.0
      %836 = vmatpush1.msra.mxu0 %v552
      %837 = vmatprep.subr.mxu0 0.0
      %838 = vmatpush1.msra.mxu0 %v553
      %839 = vmatprep.subr.mxu0 0.0
      %840 = vmatpush1.msra.mxu0 %v554
      %841 = vmatprep.subr.mxu0 0.0
      %842 = vmatpush1.msra.mxu0 %v555
      %843 = vmatprep.subr.mxu0 0.0
      %844 = vmatpush1.msra.mxu0 %v556
      %845 = vmatprep.subr.mxu0 0.0
      %846 = vmatpush1.msra.mxu0 %v557
      %847 = vmatprep.mubr.f32.mxu0 %v395
      %848 = vmatmul.mubr.f32.gmra.mrb[0].mxu0 %v376
      %v849 = vpop.f32.mrb[0].mxu0
      %v850 = vadd.f32 %v705, %v849
      %v851 = vpop.f32.mrb[0].mxu0
      %852 = vmatprep.mubr.f32.mxu0 %v396
      %853 = vmatmul.mubr.f32.gmra.mrb[0].mxu0 %v377
      %v854 = vpop.f32.mrb[0].mxu0
      %v855 = vadd.f32 %v710, %v854
      %v856 = vpop.f32.mrb[0].mxu0
      %857 = vmatprep.mubr.f32.mxu0 %v397
      %858 = vmatmul.mubr.f32.gmra.mrb[0].mxu0 %v378
      %v859 = vpop.f32.mrb[0].mxu0
      %v860 = vadd.f32 %v715, %v859
      %v861 = vpop.f32.mrb[0].mxu0
      %862 = vmatprep.mubr.f32.mxu0 %v398
      %863 = vmatmul.mubr.f32.gmra.mrb[0].mxu0 %v379
      %v864 = vpop.f32.mrb[0].mxu0
      %v865 = vadd.f32 %v720, %v864
      %v866 = vpop.f32.mrb[0].mxu0
      %867 = vmatprep.mubr.f32.mxu0 %v399
      %868 = vmatmul.mubr.f32.gmra.mrb[0].mxu0 %v380
      %v869 = vpop.f32.mrb[0].mxu0
      %v870 = vadd.f32 %v725, %v869
      %v871 = vpop.f32.mrb[0].mxu0
      %872 = vmatprep.mubr.f32.mxu0 %v400
      %873 = vmatmul.mubr.f32.gmra.mrb[0].mxu0 %v381
      %v874 = vpop.f32.mrb[0].mxu0
      %v875 = vadd.f32 %v730, %v874
      %v876 = vpop.f32.mrb[0].mxu0
      %877 = vmatprep.mubr.f32.mxu0 %v401
      %878 = vmatmul.mubr.f32.gmra.mrb[0].mxu0 %v382
      %v879 = vpop.f32.mrb[0].mxu0
      %v880 = vadd.f32 %v735, %v879
      %v881 = vpop.f32.mrb[0].mxu0
      %882 = vmatprep.mubr.f32.mxu0 %v402
      %883 = vmatmul.mubr.f32.gmra.mrb[0].mxu0 %v383
      %v884 = vpop.f32.mrb[0].mxu0
      %v885 = vadd.f32 %v740, %v884
      %v886 = vpop.f32.mrb[0].mxu0
      %887 = vmatprep.mubr.f32.mxu0 %v403
      %888 = vmatmul.mubr.f32.gmra.mrb[0].mxu0 %v384
      %v889 = vpop.f32.mrb[0].mxu0
      %v890 = vadd.f32 %v745, %v889
      %v891 = vpop.f32.mrb[0].mxu0
      %892 = vmatprep.mubr.f32.mxu0 %v404
      %893 = vmatmul.mubr.f32.gmra.mrb[0].mxu0 %v385
      %v894 = vpop.f32.mrb[0].mxu0
      %v895 = vadd.f32 %v750, %v894
      %v896 = vpop.f32.mrb[0].mxu0
      %897 = vmatprep.mubr.f32.mxu0 %v405
      %898 = vmatmul.mubr.f32.gmra.mrb[0].mxu0 %v386
      %v899 = vpop.f32.mrb[0].mxu0
      %v900 = vadd.f32 %v755, %v899
      %v901 = vpop.f32.mrb[0].mxu0
      %902 = vmatprep.mubr.f32.mxu0 %v406
      %903 = vmatmul.mubr.f32.gmra.mrb[0].mxu0 %v387
      %v904 = vpop.f32.mrb[0].mxu0
      %v905 = vadd.f32 %v760, %v904
      %v906 = vpop.f32.mrb[0].mxu0
      %907 = vmatprep.mubr.f32.mxu0 %v407
      %908 = vmatmul.mubr.f32.gmra.mrb[0].mxu0 %v388
      %v909 = vpop.f32.mrb[0].mxu0
      %v910 = vadd.f32 %v765, %v909
      %v911 = vpop.f32.mrb[0].mxu0
      %912 = vmatprep.mubr.f32.mxu0 %v408
      %913 = vmatmul.mubr.f32.gmra.mrb[0].mxu0 %v389
      %v914 = vpop.f32.mrb[0].mxu0
      %v915 = vadd.f32 %v770, %v914
      %v916 = vpop.f32.mrb[0].mxu0
      %917 = vmatprep.mubr.f32.mxu0 %v409
      %918 = vmatmul.mubr.f32.gmra.mrb[0].mxu0 %v390
      %v919 = vpop.f32.mrb[0].mxu0
      %v920 = vadd.f32 %v775, %v919
      %v921 = vpop.f32.mrb[0].mxu0
      %922 = vmatprep.mubr.f32.mxu0 %v410
      %923 = vmatmul.mubr.f32.gmra.mrb[0].mxu0 %v391
      %v924 = vpop.f32.mrb[0].mxu0
      %v925 = vadd.f32 %v780, %v924
      %v926 = vpop.f32.mrb[0].mxu0
      %927 = vdwg.mxu0
      %928 = vmatprep.subr.mxu0 0.0
      %929 = vmatpush1.msra.mxu0 %v558
      %930 = vmatprep.subr.mxu0 0.0
      %931 = vmatpush1.msra.mxu0 %v559
      %932 = vmatprep.subr.mxu0 0.0
      %933 = vmatpush1.msra.mxu0 %v560
      %934 = vmatprep.subr.mxu0 0.0
      %935 = vmatpush1.msra.mxu0 %v561
      %936 = vmatprep.subr.mxu0 0.0
      %937 = vmatpush1.msra.mxu0 %v562
      %938 = vmatprep.subr.mxu0 0.0
      %939 = vmatpush1.msra.mxu0 %v563
      %940 = vmatprep.subr.mxu0 0.0
      %941 = vmatpush1.msra.mxu0 %v564
      %942 = vmatprep.subr.mxu0 0.0
      %943 = vmatpush1.msra.mxu0 %v565
      %944 = vmatprep.subr.mxu0 0.0
      %945 = vmatpush1.msra.mxu0 %v566
      %946 = vmatprep.subr.mxu0 0.0
      %947 = vmatpush1.msra.mxu0 %v567
      %948 = vmatprep.subr.mxu0 0.0
      %949 = vmatpush1.msra.mxu0 %v568
      %950 = vmatprep.subr.mxu0 0.0
      %951 = vmatpush1.msra.mxu0 %v569
      %952 = vmatprep.subr.mxu0 0.0
      %953 = vmatpush1.msra.mxu0 %v570
      %954 = vmatprep.subr.mxu0 0.0
      %955 = vmatpush1.msra.mxu0 %v571
      %956 = vmatprep.subr.mxu0 0.0
      %957 = vmatpush1.msra.mxu0 %v572
      %958 = vmatprep.subr.mxu0 0.0
      %959 = vmatpush1.msra.mxu0 %v573
      %960 = vmatprep.subr.mxu0 0.0
      %961 = vmatpush1.msra.mxu0 %v574
      %962 = vmatprep.subr.mxu0 0.0
      %963 = vmatpush1.msra.mxu0 %v575
      %964 = vmatprep.subr.mxu0 0.0
      %965 = vmatpush1.msra.mxu0 %v576
      %966 = vmatprep.subr.mxu0 0.0
      %967 = vmatpush1.msra.mxu0 %v577
      %968 = vmatprep.subr.mxu0 0.0
      %969 = vmatpush1.msra.mxu0 %v578
      %970 = vmatprep.subr.mxu0 0.0
      %971 = vmatpush1.msra.mxu0 %v579
      %972 = vmatprep.subr.mxu0 0.0
      %973 = vmatpush1.msra.mxu0 %v580
      %974 = vmatprep.subr.mxu0 0.0
      %975 = vmatpush1.msra.mxu0 %v581
      %976 = vmatprep.subr.mxu0 0.0
      %977 = vmatpush1.msra.mxu0 %v582
      %978 = vmatprep.subr.mxu0 0.0
      %979 = vmatpush1.msra.mxu0 %v583
      %980 = vmatprep.subr.mxu0 0.0
      %981 = vmatpush1.msra.mxu0 %v584
      %982 = vmatprep.subr.mxu0 0.0
      %983 = vmatpush1.msra.mxu0 %v585
      %984 = vmatprep.subr.mxu0 0.0
      %985 = vmatpush1.msra.mxu0 %v586
      %986 = vmatprep.subr.mxu0 0.0
      %987 = vmatpush1.msra.mxu0 %v587
      %988 = vmatprep.subr.mxu0 0.0
      %989 = vmatpush1.msra.mxu0 %v588
      %990 = vmatprep.subr.mxu0 0.0
      %991 = vmatpush1.msra.mxu0 %v589
      %992 = vmatprep.mubr.f32.mxu0 %v427
      %993 = vmatmul.mubr.f32.gmra.mrb[0].mxu0 %v411
      %v994 = vpop.f32.mrb[0].mxu0
      %v995 = vadd.f32 %v850, %v994
      %v996 = vpop.f32.mrb[0].mxu0
      %997 = vmatprep.mubr.f32.mxu0 %v428
      %998 = vmatmul.mubr.f32.gmra.mrb[0].mxu0 %v412
      %v999 = vpop.f32.mrb[0].mxu0
      %v1000 = vadd.f32 %v855, %v999
      %v1001 = vpop.f32.mrb[0].mxu0
      %1002 = vmatprep.mubr.f32.mxu0 %v429
      %1003 = vmatmul.mubr.f32.gmra.mrb[0].mxu0 %v413
      %v1004 = vpop.f32.mrb[0].mxu0
      %v1005 = vadd.f32 %v860, %v1004
      %v1006 = vpop.f32.mrb[0].mxu0
      %1007 = vmatprep.mubr.f32.mxu0 %v430
      %1008 = vmatmul.mubr.f32.gmra.mrb[0].mxu0 %v414
      %v1009 = vpop.f32.mrb[0].mxu0
      %v1010 = vadd.f32 %v865, %v1009
      %v1011 = vpop.f32.mrb[0].mxu0
      %1012 = vmatprep.mubr.f32.mxu0 %v431
      %1013 = vmatmul.mubr.f32.gmra.mrb[0].mxu0 %v415
      %v1014 = vpop.f32.mrb[0].mxu0
      %v1015 = vadd.f32 %v870, %v1014
      %v1016 = vpop.f32.mrb[0].mxu0
      %1017 = vmatprep.mubr.f32.mxu0 %v432
      %1018 = vmatmul.mubr.f32.gmra.mrb[0].mxu0 %v416
      %v1019 = vpop.f32.mrb[0].mxu0
      %v1020 = vadd.f32 %v875, %v1019
      %v1021 = vpop.f32.mrb[0].mxu0
      %1022 = vmatprep.mubr.f32.mxu0 %v433
      %1023 = vmatmul.mubr.f32.gmra.mrb[0].mxu0 %v417
      %v1024 = vpop.f32.mrb[0].mxu0
      %v1025 = vadd.f32 %v880, %v1024
      %v1026 = vpop.f32.mrb[0].mxu0
      %1027 = vmatprep.mubr.f32.mxu0 %v434
      %1028 = vmatmul.mubr.f32.gmra.mrb[0].mxu0 %v418
      %v1029 = vpop.f32.mrb[0].mxu0
      %v1030 = vadd.f32 %v885, %v1029
      %v1031 = vpop.f32.mrb[0].mxu0
      %1032 = vmatprep.mubr.f32.mxu0 %v435
      %1033 = vmatmul.mubr.f32.gmra.mrb[0].mxu0 %v419
      %v1034 = vpop.f32.mrb[0].mxu0
      %v1035 = vadd.f32 %v890, %v1034
      %v1036 = vpop.f32.mrb[0].mxu0
      %1037 = vmatprep.mubr.f32.mxu0 %v436
      %1038 = vmatmul.mubr.f32.gmra.mrb[0].mxu0 %v420
      %v1039 = vpop.f32.mrb[0].mxu0
      %v1040 = vadd.f32 %v895, %v1039
      %v1041 = vpop.f32.mrb[0].mxu0
      %1042 = vmatprep.mubr.f32.mxu0 %v437
      %1043 = vmatmul.mubr.f32.gmra.mrb[0].mxu0 %v421
      %v1044 = vpop.f32.mrb[0].mxu0
      %v1045 = vadd.f32 %v900, %v1044
      %v1046 = vpop.f32.mrb[0].mxu0
      %1047 = vmatprep.mubr.f32.mxu0 %v438
      %1048 = vmatmul.mubr.f32.gmra.mrb[0].mxu0 %v422
      %v1049 = vpop.f32.mrb[0].mxu0
      %v1050 = vadd.f32 %v905, %v1049
      %v1051 = vpop.f32.mrb[0].mxu0
      %1052 = vmatprep.mubr.f32.mxu0 %v439
      %1053 = vmatmul.mubr.f32.gmra.mrb[0].mxu0 %v423
      %v1054 = vpop.f32.mrb[0].mxu0
      %v1055 = vadd.f32 %v910, %v1054
      %v1056 = vpop.f32.mrb[0].mxu0
      %1057 = vmatprep.mubr.f32.mxu0 %v440
      %1058 = vmatmul.mubr.f32.gmra.mrb[0].mxu0 %v424
      %v1059 = vpop.f32.mrb[0].mxu0
      %v1060 = vadd.f32 %v915, %v1059
      %v1061 = vpop.f32.mrb[0].mxu0
      %1062 = vmatprep.mubr.f32.mxu0 %v441
      %1063 = vmatmul.mubr.f32.gmra.mrb[0].mxu0 %v425
      %v1064 = vpop.f32.mrb[0].mxu0
      %v1065 = vadd.f32 %v920, %v1064
      %v1066 = vpop.f32.mrb[0].mxu0
      %1067 = vmatprep.mubr.f32.mxu0 %v442
      %1068 = vmatmul.mubr.f32.gmra.mrb[0].mxu0 %v426
      %v1069 = vpop.f32.mrb[0].mxu0
      %v1070 = vadd.f32 %v925, %v1069
      %v1071 = vpop.f32.mrb[0].mxu0
      %1072 = vdwg.mxu0
      %1073 = vmatprep.subr.mxu0 0.0
      %1074 = vmatpush1.msra.mxu0 %v590
      %1075 = vmatprep.subr.mxu0 0.0
      %1076 = vmatpush1.msra.mxu0 %v591
      %1077 = vmatprep.subr.mxu0 0.0
      %1078 = vmatpush1.msra.mxu0 %v592
      %1079 = vmatprep.subr.mxu0 0.0
      %1080 = vmatpush1.msra.mxu0 %v593
      %1081 = vmatprep.subr.mxu0 0.0
      %1082 = vmatpush1.msra.mxu0 %v594
      %1083 = vmatprep.subr.mxu0 0.0
      %1084 = vmatpush1.msra.mxu0 %v595
      %1085 = vmatprep.subr.mxu0 0.0
      %1086 = vmatpush1.msra.mxu0 %v596
      %1087 = vmatprep.subr.mxu0 0.0
      %1088 = vmatpush1.msra.mxu0 %v597
      %1089 = vmatprep.subr.mxu0 0.0
      %1090 = vmatpush1.msra.mxu0 %v598
      %1091 = vmatprep.subr.mxu0 0.0
      %1092 = vmatpush1.msra.mxu0 %v599
      %1093 = vmatprep.subr.mxu0 0.0
      %1094 = vmatpush1.msra.mxu0 %v600
      %1095 = vmatprep.subr.mxu0 0.0
      %1096 = vmatpush1.msra.mxu0 %v601
      %1097 = vmatprep.subr.mxu0 0.0
      %1098 = vmatpush1.msra.mxu0 %v602
      %1099 = vmatprep.subr.mxu0 0.0
      %1100 = vmatpush1.msra.mxu0 %v603
      %1101 = vmatprep.subr.mxu0 0.0
      %1102 = vmatpush1.msra.mxu0 %v604
      %1103 = vmatprep.subr.mxu0 0.0
      %1104 = vmatpush1.msra.mxu0 %v605
      %1105 = vmatprep.subr.mxu0 0.0
      %1106 = vmatpush1.msra.mxu0 %v606
      %1107 = vmatprep.subr.mxu0 0.0
      %1108 = vmatpush1.msra.mxu0 %v607
      %1109 = vmatprep.subr.mxu0 0.0
      %1110 = vmatpush1.msra.mxu0 %v608
      %1111 = vmatprep.subr.mxu0 0.0
      %1112 = vmatpush1.msra.mxu0 %v609
      %1113 = vmatprep.subr.mxu0 0.0
      %1114 = vmatpush1.msra.mxu0 %v610
      %1115 = vmatprep.subr.mxu0 0.0
      %1116 = vmatpush1.msra.mxu0 %v611
      %1117 = vmatprep.subr.mxu0 0.0
      %1118 = vmatpush1.msra.mxu0 %v612
      %1119 = vmatprep.subr.mxu0 0.0
      %1120 = vmatpush1.msra.mxu0 %v613
      %1121 = vmatprep.subr.mxu0 0.0
      %1122 = vmatpush1.msra.mxu0 %v614
      %1123 = vmatprep.subr.mxu0 0.0
      %1124 = vmatpush1.msra.mxu0 %v615
      %1125 = vmatprep.subr.mxu0 0.0
      %1126 = vmatpush1.msra.mxu0 %v616
      %1127 = vmatprep.subr.mxu0 0.0
      %1128 = vmatpush1.msra.mxu0 %v617
      %1129 = vmatprep.subr.mxu0 0.0
      %1130 = vmatpush1.msra.mxu0 %v618
      %1131 = vmatprep.subr.mxu0 0.0
      %1132 = vmatpush1.msra.mxu0 %v619
      %1133 = vmatprep.subr.mxu0 0.0
      %1134 = vmatpush1.msra.mxu0 %v620
      %1135 = vmatprep.subr.mxu0 0.0
      %1136 = vmatpush1.msra.mxu0 %v621
      %1137 = vmatprep.mubr.f32.mxu0 %v462
      %1138 = vmatmul.mubr.f32.gmra.mrb[0].mxu0 %v446
      %v1139 = vpop.f32.mrb[0].mxu0
      %v1140 = vadd.f32 %v995, %v1139
      %v1141 = vpop.f32.mrb[0].mxu0
      %1142 = vmatprep.mubr.f32.mxu0 %v463
      %1143 = vmatmul.mubr.f32.gmra.mrb[0].mxu0 %v447
      %v1144 = vpop.f32.mrb[0].mxu0
      %v1145 = vadd.f32 %v1000, %v1144
      %v1146 = vpop.f32.mrb[0].mxu0
      %1147 = vmatprep.mubr.f32.mxu0 %v464
      %1148 = vmatmul.mubr.f32.gmra.mrb[0].mxu0 %v448
      %v1149 = vpop.f32.mrb[0].mxu0
      %v1150 = vadd.f32 %v1005, %v1149
      %v1151 = vpop.f32.mrb[0].mxu0
      %1152 = vmatprep.mubr.f32.mxu0 %v465
      %1153 = vmatmul.mubr.f32.gmra.mrb[0].mxu0 %v449
      %v1154 = vpop.f32.mrb[0].mxu0
      %v1155 = vadd.f32 %v1010, %v1154
      %v1156 = vpop.f32.mrb[0].mxu0
      %1157 = vmatprep.mubr.f32.mxu0 %v466
      %1158 = vmatmul.mubr.f32.gmra.mrb[0].mxu0 %v450
      %v1159 = vpop.f32.mrb[0].mxu0
      %v1160 = vadd.f32 %v1015, %v1159
      %v1161 = vpop.f32.mrb[0].mxu0
      %1162 = vmatprep.mubr.f32.mxu0 %v467
      %1163 = vmatmul.mubr.f32.gmra.mrb[0].mxu0 %v451
      %v1164 = vpop.f32.mrb[0].mxu0
      %v1165 = vadd.f32 %v1020, %v1164
      %v1166 = vpop.f32.mrb[0].mxu0
      %1167 = vmatprep.mubr.f32.mxu0 %v468
      %1168 = vmatmul.mubr.f32.gmra.mrb[0].mxu0 %v452
      %v1169 = vpop.f32.mrb[0].mxu0
      %v1170 = vadd.f32 %v1025, %v1169
      %v1171 = vpop.f32.mrb[0].mxu0
      %1172 = vmatprep.mubr.f32.mxu0 %v469
      %1173 = vmatmul.mubr.f32.gmra.mrb[0].mxu0 %v453
      %v1174 = vpop.f32.mrb[0].mxu0
      %v1175 = vadd.f32 %v1030, %v1174
      %v1176 = vpop.f32.mrb[0].mxu0
      %1177 = vmatprep.mubr.f32.mxu0 %v470
      %1178 = vmatmul.mubr.f32.gmra.mrb[0].mxu0 %v454
      %v1179 = vpop.f32.mrb[0].mxu0
      %v1180 = vadd.f32 %v1035, %v1179
      %v1181 = vpop.f32.mrb[0].mxu0
      %1182 = vmatprep.mubr.f32.mxu0 %v471
      %1183 = vmatmul.mubr.f32.gmra.mrb[0].mxu0 %v455
      %v1184 = vpop.f32.mrb[0].mxu0
      %v1185 = vadd.f32 %v1040, %v1184
      %v1186 = vpop.f32.mrb[0].mxu0
      %1187 = vmatprep.mubr.f32.mxu0 %v472
      %1188 = vmatmul.mubr.f32.gmra.mrb[0].mxu0 %v456
      %v1189 = vpop.f32.mrb[0].mxu0
      %v1190 = vadd.f32 %v1045, %v1189
      %v1191 = vpop.f32.mrb[0].mxu0
      %1192 = vmatprep.mubr.f32.mxu0 %v473
      %1193 = vmatmul.mubr.f32.gmra.mrb[0].mxu0 %v457
      %v1194 = vpop.f32.mrb[0].mxu0
      %v1195 = vadd.f32 %v1050, %v1194
      %v1196 = vpop.f32.mrb[0].mxu0
      %1197 = vmatprep.mubr.f32.mxu0 %v474
      %1198 = vmatmul.mubr.f32.gmra.mrb[0].mxu0 %v458
      %v1199 = vpop.f32.mrb[0].mxu0
      %v1200 = vadd.f32 %v1055, %v1199
      %v1201 = vpop.f32.mrb[0].mxu0
      %1202 = vmatprep.mubr.f32.mxu0 %v475
      %1203 = vmatmul.mubr.f32.gmra.mrb[0].mxu0 %v459
      %v1204 = vpop.f32.mrb[0].mxu0
      %v1205 = vadd.f32 %v1060, %v1204
      %v1206 = vpop.f32.mrb[0].mxu0
      %1207 = vmatprep.mubr.f32.mxu0 %v476
      %1208 = vmatmul.mubr.f32.gmra.mrb[0].mxu0 %v460
      %v1209 = vpop.f32.mrb[0].mxu0
      %v1210 = vadd.f32 %v1065, %v1209
      %v1211 = vpop.f32.mrb[0].mxu0
      %1212 = vmatprep.mubr.f32.mxu0 %v477
      %1213 = vmatmul.mubr.f32.gmra.mrb[0].mxu0 %v461
      %v1214 = vpop.f32.mrb[0].mxu0
      %v1215 = vadd.f32 %v1070, %v1214
      %v1216 = vpop.f32.mrb[0].mxu0
      %1217 = vdwg.mxu0
      %1218 = vmatprep.subr.mxu0 0.0
      %1219 = vmatpush1.msra.mxu0 %v622
      %1220 = vmatprep.subr.mxu0 0.0
      %1221 = vmatpush1.msra.mxu0 %v623
      %1222 = vmatprep.subr.mxu0 0.0
      %1223 = vmatpush1.msra.mxu0 %v624
      %1224 = vmatprep.subr.mxu0 0.0
      %1225 = vmatpush1.msra.mxu0 %v625
      %1226 = vmatprep.subr.mxu0 0.0
      %1227 = vmatpush1.msra.mxu0 %v626
      %1228 = vmatprep.subr.mxu0 0.0
      %1229 = vmatpush1.msra.mxu0 %v627
      %1230 = vmatprep.subr.mxu0 0.0
      %1231 = vmatpush1.msra.mxu0 %v628
      %1232 = vmatprep.subr.mxu0 0.0
      %1233 = vmatpush1.msra.mxu0 %v629
      %1234 = vmatprep.subr.mxu0 0.0
      %1235 = vmatpush1.msra.mxu0 %v630
      %1236 = vmatprep.subr.mxu0 0.0
      %1237 = vmatpush1.msra.mxu0 %v631
      %1238 = vmatprep.subr.mxu0 0.0
      %1239 = vmatpush1.msra.mxu0 %v632
      %1240 = vmatprep.subr.mxu0 0.0
      %1241 = vmatpush1.msra.mxu0 %v633
      %1242 = vmatprep.subr.mxu0 0.0
      %1243 = vmatpush1.msra.mxu0 %v634
      %1244 = vmatprep.subr.mxu0 0.0
      %1245 = vmatpush1.msra.mxu0 %v635
      %1246 = vmatprep.subr.mxu0 0.0
      %1247 = vmatpush1.msra.mxu0 %v636
      %1248 = vmatprep.subr.mxu0 0.0
      %1249 = vmatpush1.msra.mxu0 %v637
      %1250 = vmatprep.subr.mxu0 0.0
      %1251 = vmatpush1.msra.mxu0 0.0
      %1252 = vmatprep.subr.mxu0 0.0
      %1253 = vmatpush1.msra.mxu0 0.0
      %1254 = vmatprep.subr.mxu0 0.0
      %1255 = vmatpush1.msra.mxu0 0.0
      %1256 = vmatprep.subr.mxu0 0.0
      %1257 = vmatpush1.msra.mxu0 0.0
      %1258 = vmatprep.subr.mxu0 0.0
      %1259 = vmatpush1.msra.mxu0 0.0
      %1260 = vmatprep.subr.mxu0 0.0
      %1261 = vmatpush1.msra.mxu0 0.0
      %1262 = vmatprep.subr.mxu0 0.0
      %1263 = vmatpush1.msra.mxu0 0.0
      %1264 = vmatprep.subr.mxu0 0.0
      %1265 = vmatpush1.msra.mxu0 0.0
      %1266 = vmatprep.subr.mxu0 0.0
      %1267 = vmatpush1.msra.mxu0 0.0
      %1268 = vmatprep.subr.mxu0 0.0
      %1269 = vmatpush1.msra.mxu0 0.0
      %1270 = vmatprep.subr.mxu0 0.0
      %1271 = vmatpush1.msra.mxu0 0.0
      %1272 = vmatprep.subr.mxu0 0.0
      %1273 = vmatpush1.msra.mxu0 0.0
      %1274 = vmatprep.subr.mxu0 0.0
      %1275 = vmatpush1.msra.mxu0 0.0
      %1276 = vmatprep.subr.mxu0 0.0
      %1277 = vmatpush1.msra.mxu0 0.0
      %1278 = vmatprep.subr.mxu0 0.0
      %1279 = vmatpush1.msra.mxu0 0.0
      %1280 = vmatprep.subr.mxu0 0.0
      %1281 = vmatpush1.msra.mxu0 0.0
      %1282 = vmatprep.mubr.f32.mxu0 0.0
      %1283 = vmatmul.mubr.f32.gmra.mrb[0].mxu0 %v478
      %v1284 = vpop.f32.mrb[0].mxu0
      %v1285 = vadd.f32 %v1140, %v1284
      %v1286 = vpop.f32.mrb[0].mxu0
      %1287 = vmatprep.mubr.f32.mxu0 0.0
      %1288 = vmatmul.mubr.f32.gmra.mrb[0].mxu0 %v479
      %v1289 = vpop.f32.mrb[0].mxu0
      %v1290 = vadd.f32 %v1145, %v1289
      %v1291 = vpop.f32.mrb[0].mxu0
      %1292 = vmatprep.mubr.f32.mxu0 0.0
      %1293 = vmatmul.mubr.f32.gmra.mrb[0].mxu0 %v480
      %v1294 = vpop.f32.mrb[0].mxu0
      %v1295 = vadd.f32 %v1150, %v1294
      %v1296 = vpop.f32.mrb[0].mxu0
      %1297 = vmatprep.mubr.f32.mxu0 0.0
      %1298 = vmatmul.mubr.f32.gmra.mrb[0].mxu0 %v481
      %v1299 = vpop.f32.mrb[0].mxu0
      %v1300 = vadd.f32 %v1155, %v1299
      %v1301 = vpop.f32.mrb[0].mxu0
      %1302 = vmatprep.mubr.f32.mxu0 0.0
      %1303 = vmatmul.mubr.f32.gmra.mrb[0].mxu0 %v482
      %v1304 = vpop.f32.mrb[0].mxu0
      %v1305 = vadd.f32 %v1160, %v1304
      %v1306 = vpop.f32.mrb[0].mxu0
      %1307 = vmatprep.mubr.f32.mxu0 0.0
      %1308 = vmatmul.mubr.f32.gmra.mrb[0].mxu0 %v483
      %v1309 = vpop.f32.mrb[0].mxu0
      %v1310 = vadd.f32 %v1165, %v1309
      %v1311 = vpop.f32.mrb[0].mxu0
      %1312 = vmatprep.mubr.f32.mxu0 0.0
      %1313 = vmatmul.mubr.f32.gmra.mrb[0].mxu0 %v484
      %v1314 = vpop.f32.mrb[0].mxu0
      %v1315 = vadd.f32 %v1170, %v1314
      %v1316 = vpop.f32.mrb[0].mxu0
      %1317 = vmatprep.mubr.f32.mxu0 0.0
      %1318 = vmatmul.mubr.f32.gmra.mrb[0].mxu0 %v485
      %v1319 = vpop.f32.mrb[0].mxu0
      %v1320 = vadd.f32 %v1175, %v1319
      %v1321 = vpop.f32.mrb[0].mxu0
      %1322 = vmatprep.mubr.f32.mxu0 0.0
      %1323 = vmatmul.mubr.f32.gmra.mrb[0].mxu0 %v486
      %v1324 = vpop.f32.mrb[0].mxu0
      %v1325 = vadd.f32 %v1180, %v1324
      %v1326 = vpop.f32.mrb[0].mxu0
      %1327 = vmatprep.mubr.f32.mxu0 0.0
      %1328 = vmatmul.mubr.f32.gmra.mrb[0].mxu0 %v487
      %v1329 = vpop.f32.mrb[0].mxu0
      %v1330 = vadd.f32 %v1185, %v1329
      %v1331 = vpop.f32.mrb[0].mxu0
      %1332 = vmatprep.mubr.f32.mxu0 0.0
      %1333 = vmatmul.mubr.f32.gmra.mrb[0].mxu0 %v488
      %v1334 = vpop.f32.mrb[0].mxu0
      %v1335 = vadd.f32 %v1190, %v1334
      %v1336 = vpop.f32.mrb[0].mxu0
      %1337 = vmatprep.mubr.f32.mxu0 0.0
      %1338 = vmatmul.mubr.f32.gmra.mrb[0].mxu0 %v489
      %v1339 = vpop.f32.mrb[0].mxu0
      %v1340 = vadd.f32 %v1195, %v1339
      %v1341 = vpop.f32.mrb[0].mxu0
      %1342 = vmatprep.mubr.f32.mxu0 0.0
      %1343 = vmatmul.mubr.f32.gmra.mrb[0].mxu0 %v490
      %v1344 = vpop.f32.mrb[0].mxu0
      %v1345 = vadd.f32 %v1200, %v1344
      %v1346 = vpop.f32.mrb[0].mxu0
      %1347 = vmatprep.mubr.f32.mxu0 0.0
      %1348 = vmatmul.mubr.f32.gmra.mrb[0].mxu0 %v491
      %v1349 = vpop.f32.mrb[0].mxu0
      %v1350 = vadd.f32 %v1205, %v1349
      %v1351 = vpop.f32.mrb[0].mxu0
      %1352 = vmatprep.mubr.f32.mxu0 0.0
      %1353 = vmatmul.mubr.f32.gmra.mrb[0].mxu0 %v492
      %v1354 = vpop.f32.mrb[0].mxu0
      %v1355 = vadd.f32 %v1210, %v1354
      %v1356 = vpop.f32.mrb[0].mxu0
      %1357 = vmatprep.mubr.f32.mxu0 0.0
      %1358 = vmatmul.mubr.f32.gmra.mrb[0].mxu0 %v493
      %v1359 = vpop.f32.mrb[0].mxu0
      %v1360 = vadd.f32 %v1215, %v1359
      %v1361 = vpop.f32.mrb[0].mxu0
      %1362 = vdwg.mxu0
      %1363 = vst [vmem:[%s207] sm:$0xff] %v1285
      %1364 = vst [vmem:[%s207 + $0x8] sm:$0xff] %v1290
      %1365 = vst [vmem:[%s207 + $0x10] sm:$0xff] %v1295
      %1366 = vst [vmem:[%s207 + $0x18] sm:$0xff] %v1300
      %1367 = vst [vmem:[%s207 + $0x20] sm:$0xff] %v1305
      %1368 = vst [vmem:[%s207 + $0x28] sm:$0xff] %v1310
      %1369 = vst [vmem:[%s207 + $0x30] sm:$0xff] %v1315
      %1370 = vst [vmem:[%s207 + $0x38] sm:$0xff] %v1320
      %1371 = vst [vmem:[%s207 + $0x40] sm:$0xff] %v1325
      %1372 = vst [vmem:[%s207 + $0x48] sm:$0xff] %v1330
      %1373 = vst [vmem:[%s207 + $0x50] sm:$0xff] %v1335
      %1374 = vst [vmem:[%s207 + $0x58] sm:$0xff] %v1340
      %1375 = vst [vmem:[%s207 + $0x60] sm:$0xff] %v1345
      %1376 = vst [vmem:[%s207 + $0x68] sm:$0xff] %v1350
      %1377 = vst [vmem:[%s207 + $0x70] sm:$0xff] %v1355
      %1378 = vst [vmem:[%s207 + $0x78] sm:$0xff] %v1360
      %v1379 = vadd.f32 %v1285, %v1290
      %v1380 = vadd.f32 %v1379, %v1295
      %v1381 = vadd.f32 %v1380, %v1300
      %v1382 = vadd.f32 %v1381, %v1305
      %v1383 = vadd.f32 %v1382, %v1310
      %v1384 = vadd.f32 %v1383, %v1315
      %v1385 = vadd.f32 %v1384, %v1320
      %v1386 = vadd.f32 %v1385, %v1325
      %v1387 = vadd.f32 %v1386, %v1330
      %v1388 = vadd.f32 %v1387, %v1335
      %v1389 = vadd.f32 %v1388, %v1340
      %v1390 = vadd.f32 %v1389, %v1345
      %v1391 = vadd.f32 %v1390, %v1350
      %v1392 = vadd.f32 %v1391, %v1355
      %v1393 = vadd.f32 %v1392, %v1360
      %v1394 = vrot.slane %v1393, 4
      %v1395 = vadd.f32 %v1393, %v1394
      %v1396 = vrot.slane %v1395, 2
      %v1397 = vadd.f32 %v1395, %v1396
      %v1398 = vrot.slane %v1397, 1
      %v1399 = vadd.f32 %v1397, %v1398
      %1400 = vst [vmem:[%s216] sm:$0x1] %v1399
      %v1401 = vmul.f32 %v1285, %v1285
      %v1402 = vmul.f32 %v1290, %v1290
      %v1403 = vmul.f32 %v1295, %v1295
      %v1404 = vmul.f32 %v1300, %v1300
      %v1405 = vmul.f32 %v1305, %v1305
      %v1406 = vmul.f32 %v1310, %v1310
      %v1407 = vmul.f32 %v1315, %v1315
      %v1408 = vmul.f32 %v1320, %v1320
      %v1409 = vmul.f32 %v1325, %v1325
      %v1410 = vmul.f32 %v1330, %v1330
      %v1411 = vmul.f32 %v1335, %v1335
      %v1412 = vmul.f32 %v1340, %v1340
      %v1413 = vmul.f32 %v1345, %v1345
      %v1414 = vmul.f32 %v1350, %v1350
      %v1415 = vmul.f32 %v1355, %v1355
      %v1416 = vmul.f32 %v1360, %v1360
      %v1417 = vadd.f32 %v1401, %v1402
      %v1418 = vadd.f32 %v1417, %v1403
      %v1419 = vadd.f32 %v1418, %v1404
      %v1420 = vadd.f32 %v1419, %v1405
      %v1421 = vadd.f32 %v1420, %v1406
      %v1422 = vadd.f32 %v1421, %v1407
      %v1423 = vadd.f32 %v1422, %v1408
      %v1424 = vadd.f32 %v1423, %v1409
      %v1425 = vadd.f32 %v1424, %v1410
      %v1426 = vadd.f32 %v1425, %v1411
      %v1427 = vadd.f32 %v1426, %v1412
      %v1428 = vadd.f32 %v1427, %v1413
      %v1429 = vadd.f32 %v1428, %v1414
      %v1430 = vadd.f32 %v1429, %v1415
      %v1431 = vadd.f32 %v1430, %v1416
      %v1432 = vrot.slane %v1431, 4
      %v1433 = vadd.f32 %v1431, %v1432
      %v1434 = vrot.slane %v1433, 2
      %v1435 = vadd.f32 %v1433, %v1434
      %v1436 = vrot.slane %v1435, 1
      %v1437 = vadd.f32 %v1435, %v1436
      %1438 = vst [vmem:[%s216 + $0x1] sm:$0x1] %v1437
      %s1439 = smul.u32 8, %s20
      %p1440 = scmp.lt.s32.totalorder %s19, 1
      %s1441 = scalar_select %p1440, %s19, 1
      %p1442 = scmp.lt.s32.totalorder %s1439, 15
      %s1443 = scalar_select %p1442, %s1439, 15
      %s1444 = smul.addr %s1443, 2
      %s1445 = smul.addr %s1441, 32
      %s1446 = sadd.s32 %s1444, %s1445
      %s1447 = smul.addr %s1446, 8
      %s1448 = scalar_lea.vmem %s2, %s1447
      %p1449 = scmp.lt.s32.totalorder %s19, 1
      %s1450 = scalar_select %p1449, %s19, 1
      %p1451 = scmp.lt.s32.totalorder %s20, 1
      %s1452 = scalar_select %p1451, %s20, 1
      %s1453 = smul.addr %s1450, 2
      %s1454 = sadd.s32 %s1452, %s1453
      %s1455 = smul.addr %s1454, 2
      %s1456 = scalar_lea.vmem %s3, %s1455
      // Predicated region
      $region33: #{double_conv_forward.4} parent=27 // pred_check
        %p1457 = pneg %p94
      $region34: #{double_conv_forward.4} parent=27 // pred_check_branch
        %1459 = sbr.rel (%p1457) target = $region36
      $region35: #{double_conv_forward.4} parent=27 // pred_region
        %s1460 = smul.u32 8, %s20
      $region36: #{double_conv_forward.4} parent=27 // pred_fallthru
        _
      // Predicated region
      $region37: #{double_conv_forward.4} parent=27 // pred_check
        %p1461 = pneg %p122
      $region38: #{double_conv_forward.4} parent=27 // pred_check_branch
        %1463 = sbr.rel (%p1461) target = $region40
      $region39: #{double_conv_forward.4} parent=27 // pred_region
        _
      $region40: #{double_conv_forward.4} parent=27 // pred_fallthru
        _
    $region28: #{double_conv_forward.4} parent=5 // pred_fallthru
      _
    %p1464 = scmp.le.s32.totalorder 2, %s10
    // Predicated region
    $region41: #{double_conv_forward.4} parent=5 // pred_check
      %p1465 = pneg %p1464
    $region42: #{double_conv_forward.4} parent=5 // pred_check_branch
      %1467 = sbr.rel (%p1465) target = $region44
    $region43: #{double_conv_forward.4} parent=5 // pred_region
      %s1468 = ssub.s32 %s10, 2
      // Predicated region
      $region45: #{double_conv_forward.4} parent=43 // pred_check
        %p1469 = pneg %p100
      $region46: #{double_conv_forward.4} parent=43 // pred_check_branch
        %1471 = sbr.rel (%p1469) target = $region48
      $region47: #{double_conv_forward.4} parent=43 // pred_region
        %s1472 = smul.u32 8, %s22
        %p1473 = scmp.lt.s32.totalorder %s21, 1
        %s1474 = scalar_select %p1473, %s21, 1
        %p1475 = scmp.lt.s32.totalorder %s1472, 15
        %s1476 = scalar_select %p1475, %s1472, 15
        %s1477 = smul.addr %s1476, 2
        %s1478 = smul.addr %s1474, 32
        %s1479 = sadd.s32 %s1477, %s1478
        %s1480 = smul.addr %s1479, 8
        %s1481 = scalar_lea.vmem %s2, %s1480
      $region48: #{double_conv_forward.4} parent=43 // pred_fallthru
        _
      // Predicated region
      $region49: #{double_conv_forward.4} parent=43 // pred_check
        %p1482 = pneg %p128
      $region50: #{double_conv_forward.4} parent=43 // pred_check_branch
        %1484 = sbr.rel (%p1482) target = $region52
      $region51: #{double_conv_forward.4} parent=43 // pred_region
        %p1485 = scmp.lt.s32.totalorder %s21, 1
        %s1486 = scalar_select %p1485, %s21, 1
        %p1487 = scmp.lt.s32.totalorder %s22, 1
        %s1488 = scalar_select %p1487, %s22, 1
        %s1489 = smul.addr %s1486, 2
        %s1490 = sadd.s32 %s1488, %s1489
        %s1491 = smul.addr %s1490, 2
        %s1492 = scalar_lea.vmem %s3, %s1491
      $region52: #{double_conv_forward.4} parent=43 // pred_fallthru
        _
    $region44: #{double_conv_forward.4} parent=5 // pred_fallthru
      _
  $region6: #{double_conv_forward.4} parent=0 // loop_footer
    %s14 = sadd.s32 1, %s10
  $region7: #{double_conv_forward.4} parent=0 // loop_footer_branch
    %9 = sbr.rel target = $region3
  $region8: #{double_conv_forward.4} parent=0 // loop_exit
    _

// kernel: double_conv_forward.6
$region0: #{double_conv_forward.6}
  #allocation0 [shape = 'u32[]', space=smem, size = 0x4, offset = 0x4, fixed_abs, tag = 'smem constant byte address 0x4 - core index']
  #allocation1 [shape = 'u32[144,128]{1,0:T(1,128)}', space=vmem, size = 0x12000, scoped, tag = 'internal scratch']
  #allocation2 [shape = 'f32[18,18,128]{2,1,0:T(8,128)}', space=vmem, size = 0x36000, scoped, tag = 'scratch operand']
  %s0 = inlined_call_operand.vmem [shape: f32[2,16,16,128], index: 0, kind: input, shape index: {}]
  %s1 = inlined_call_operand.vmem [shape: f32[1152,128], index: 1, kind: input, shape index: {}]
  %s2 = inlined_call_operand.vmem [shape: f32[2,16,16,128], index: 2, kind: output, shape index: {0}]
  %s3 = inlined_call_operand.vmem [shape: f32[2,2,2,128], index: 3, kind: output, shape index: {1}]
  %4 = xla_tuple %s2, %s3
  %s5 = sld [smem:[#allocation0]]
  $region53: #{double_conv_forward.6} parent=0
    _
  %s7 = ssub.s32 1, %s5
  %s8 = scalar_select 0, %s7, %s5
  loop: start=0, step=1, limit=6
  $region2: #{double_conv_forward.6} parent=0 // loop_pre_header
    _
  $region3: #{double_conv_forward.6} parent=0 // loop_header
    %s10 = sphi 0, %s14
    %p11 = scmp.ge.s32.totalorder %s10, 6
    %s17 = sphi 0, %s29
    %s18 = sphi 0, %s25
    %s19 = sphi 0, %s17
    %s20 = sphi 0, %s18
    %s21 = sphi 0, %s19
    %s22 = sphi 0, %s20
    %s32 = sphi 0, %s34
    %s35 = sphi 0, %s32
    %s36 = sphi 0, %s35
    %s52 = sphi 0, %s36
    %s56 = sphi 0, %s56
    %s58 = sphi 0, %s56
    %s59 = sphi 0, %s58
    %s73 = sphi 0, %s59
    %s81 = sphi 0, %s83
    %s84 = sphi 0, %s81
    %s85 = sphi 0, %s84
    %s101 = sphi 0, %s85
    %s109 = sphi 0, %s111
    %s112 = sphi 0, %s109
    %s113 = sphi 0, %s112
    %s129 = sphi 0, %s113
  $region4: #{double_conv_forward.6} parent=0 // loop_header_branch
    %13 = sbr.rel (%p11) target = $region8
  $region5: #{double_conv_forward.6} parent=0 // loop_body
    %s15 = ssub.s32 %s10, 1
    %s16 = ssub.s32 %s10, 2
    %s23 = sadd.s32 1, %s18
    %p24 = scmp.ge.s32.totalorder %s23, 2
    %s25 = scalar_select %p24, 0, %s23
    %s26 = sadd.s32 1, %s17
    %s27 = scalar_select %p24, %s26, %s17
    %p28 = scmp.ge.s32.totalorder %s27, 2
    %s29 = scalar_select %p28, 0, %s27
    %s30 = ssub.s32 %s17, %s29
    %p31 = scmp.eq.s32.totalorder %s30, 0
    %s33 = sadd.s32 %s32, 1
    %s34 = scalar_select %p31, %s32, %s33
    %p37 = pneg %p31
    %p38 = scmp.eq.s32.totalorder %s10, 3
    %p39 = por %p37, %p38
    %p40 = scmp.ne.s32.totalorder %s32, %s35
    %p41 = scmp.eq.s32.totalorder %s10, 0
    %p42 = por %p40, %p41
    %p43 = scmp.ne.s32.totalorder %s32, %s35
    %p44 = scmp.eq.s32.totalorder %s15, 3
    %p45 = por %p43, %p44
    %p46 = scmp.ne.s32.totalorder %s35, %s36
    %p47 = scmp.eq.s32.totalorder %s15, 0
    %p48 = por %p46, %p47
    %p49 = scmp.ne.s32.totalorder %s35, %s36
    %p50 = scmp.eq.s32.totalorder %s16, 3
    %p51 = por %p49, %p50
    %p53 = scmp.ne.s32.totalorder %s36, %s52
    %p54 = scmp.eq.s32.totalorder %s16, 0
    %p55 = por %p53, %p54
    %s57 = sadd.s32 %s56, 1
    %p60 = scmp.eq.s32.totalorder %s10, 3
    %p61 = scmp.ne.s32.totalorder %s56, %s58
    %p62 = scmp.eq.s32.totalorder %s10, 0
    %p63 = por %p61, %p62
    %p64 = scmp.ne.s32.totalorder %s56, %s58
    %p65 = scmp.eq.s32.totalorder %s15, 3
    %p66 = por %p64, %p65
    %p67 = scmp.ne.s32.totalorder %s58, %s59
    %p68 = scmp.eq.s32.totalorder %s15, 0
    %p69 = por %p67, %p68
    %p70 = scmp.ne.s32.totalorder %s58, %s59
    %p71 = scmp.eq.s32.totalorder %s16, 3
    %p72 = por %p70, %p71
    %p74 = scmp.ne.s32.totalorder %s59, %s73
    %p75 = scmp.eq.s32.totalorder %s16, 0
    %p76 = por %p74, %p75
    %s77 = ssub.s32 %s17, %s29
    %s78 = ssub.s32 %s18, %s25
    %s79 = sor.u32 %s77, %s78
    %p80 = scmp.eq.s32.totalorder %s79, 0
    %s82 = sadd.s32 %s81, 1
    %s83 = scalar_select %p80, %s81, %s82
    %p86 = pneg %p80
    %p87 = scmp.eq.s32.totalorder %s10, 3
    %p88 = por %p86, %p87
    %p89 = scmp.ne.s32.totalorder %s81, %s84
    %p90 = scmp.eq.s32.totalorder %s10, 0
    %p91 = por %p89, %p90
    %p92 = scmp.ne.s32.totalorder %s81, %s84
    %p93 = scmp.eq.s32.totalorder %s15, 3
    %p94 = por %p92, %p93
    %p95 = scmp.ne.s32.totalorder %s84, %s85
    %p96 = scmp.eq.s32.totalorder %s15, 0
    %p97 = por %p95, %p96
    %p98 = scmp.ne.s32.totalorder %s84, %s85
    %p99 = scmp.eq.s32.totalorder %s16, 3
    %p100 = por %p98, %p99
    %p102 = scmp.ne.s32.totalorder %s85, %s101
    %p103 = scmp.eq.s32.totalorder %s16, 0
    %p104 = por %p102, %p103
    %s105 = ssub.s32 %s17, %s29
    %s106 = ssub.s32 %s18, %s25
    %s107 = sor.u32 %s105, %s106
    %p108 = scmp.eq.s32.totalorder %s107, 0
    %s110 = sadd.s32 %s109, 1
    %s111 = scalar_select %p108, %s109, %s110
    %p114 = pneg %p108
    %p115 = scmp.eq.s32.totalorder %s10, 3
    %p116 = por %p114, %p115
    %p117 = scmp.ne.s32.totalorder %s109, %s112
    %p118 = scmp.eq.s32.totalorder %s10, 0
    %p119 = por %p117, %p118
    %p120 = scmp.ne.s32.totalorder %s109, %s112
    %p121 = scmp.eq.s32.totalorder %s15, 3
    %p122 = por %p120, %p121
    %p123 = scmp.ne.s32.totalorder %s112, %s113
    %p124 = scmp.eq.s32.totalorder %s15, 0
    %p125 = por %p123, %p124
    %p126 = scmp.ne.s32.totalorder %s112, %s113
    %p127 = scmp.eq.s32.totalorder %s16, 3
    %p128 = por %p126, %p127
    %p130 = scmp.ne.s32.totalorder %s113, %s129
    %p131 = scmp.eq.s32.totalorder %s16, 0
    %p132 = por %p130, %p131
    %p133 = scmp.le.s32.totalorder 1, %s10
    %p134 = scmp.lt.s32.totalorder %s10, 5
    %p135 = pnand %p133, %p134
    %p136 = pneg %p135
    // Predicated region
    $region9: #{double_conv_forward.6} parent=5 // pred_check
      _
    $region10: #{double_conv_forward.6} parent=5 // pred_check_branch
      %138 = sbr.rel (%p135) target = $region12
    $region11: #{double_conv_forward.6} parent=5 // pred_region
      %s139 = ssub.s32 %s10, 1
      // Predicated region
      $region13: #{double_conv_forward.6} parent=11 // pred_check
        %p140 = pneg %p69
      $region14: #{double_conv_forward.6} parent=11 // pred_check_branch
        %142 = sbr.rel (%p140) target = $region16
      $region15: #{double_conv_forward.6} parent=11 // pred_region
        _
      $region16: #{double_conv_forward.6} parent=11 // pred_fallthru
        _
    $region12: #{double_conv_forward.6} parent=5 // pred_fallthru
      _
    %p143 = scmp.lt.s32.totalorder %s10, 4
    // Predicated region
    $region17: #{double_conv_forward.6} parent=5 // pred_check
      %p144 = pneg %p143
    $region18: #{double_conv_forward.6} parent=5 // pred_check_branch
      %146 = sbr.rel (%p144) target = $region20
    $region19: #{double_conv_forward.6} parent=5 // pred_region
      // Predicated region
      $region21: #{double_conv_forward.6} parent=19 // pred_check
        %p147 = pneg %p42
      $region22: #{double_conv_forward.6} parent=19 // pred_check_branch
        %149 = sbr.rel (%p147) target = $region24
      $region23: #{double_conv_forward.6} parent=19 // pred_region
        %p150 = scmp.lt.s32.totalorder %s17, 1
        %s151 = scalar_select %p150, %s17, 1
        %s152 = smul.addr %s151, 32
        %s153 = smul.addr %s152, 8
        %s154 = scalar_lea.vmem %s0, %s153
      $region24: #{double_conv_forward.6} parent=19 // pred_fallthru
        _
    $region20: #{double_conv_forward.6} parent=5 // pred_fallthru
      _
    %p155 = scmp.le.s32.totalorder 1, %s10
    %p156 = scmp.lt.s32.totalorder %s10, 5
    %p157 = pnand %p155, %p156
    %p158 = pneg %p157
    // Predicated region
    $region25: #{double_conv_forward.6} parent=5 // pred_check
      _
    $region26: #{double_conv_forward.6} parent=5 // pred_check_branch
      %160 = sbr.rel (%p157) target = $region28
    $region27: #{double_conv_forward.6} parent=5 // pred_region
      %s161 = ssub.s32 %s10, 1
      %p162 = scmp.lt.s32.totalorder %s19, 1
      %s163 = scalar_select %p162, %s19, 1
      %s164 = smul.addr %s163, 32
      %s165 = smul.addr %s164, 8
      %s166 = scalar_lea.vmem %s0, %s165
      %p167 = pneg %p48
      %p168 = pneg %p45
      %p169 = pneg %p69
      %p170 = pneg %p66
      %p171 = pneg %p97
      %p172 = pneg %p94
      %s173 = smul.u32 8, %s20
      %p174 = scmp.lt.s32.totalorder %s19, 1
      %s175 = scalar_select %p174, %s19, 1
      %p176 = scmp.lt.s32.totalorder %s173, 15
      %s177 = scalar_select %p176, %s173, 15
      %s178 = smul.addr %s177, 2
      %s179 = smul.addr %s175, 32
      %s180 = sadd.s32 %s178, %s179
      %s181 = smul.addr %s180, 8
      %s182 = scalar_lea.vmem %s2, %s181
      %p183 = pneg %p125
      %p184 = pneg %p122
      %p185 = scmp.lt.s32.totalorder %s19, 1
      %s186 = scalar_select %p185, %s19, 1
      %p187 = scmp.lt.s32.totalorder %s20, 1
      %s188 = scalar_select %p187, %s20, 1
      %s189 = smul.addr %s186, 2
      %s190 = sadd.s32 %s188, %s189
      %s191 = smul.addr %s190, 2
      %s192 = scalar_lea.vmem %s3, %s191
      %p193 = scmp.lt.s32.totalorder %s19, 1
      %s194 = scalar_select %p193, %s19, 1
      %s195 = smul.addr %s194, 32
      %s196 = smul.addr %s195, 8
      %s197 = scalar_lea.vmem %s0, %s196
      %s198 = smul.u32 8, %s20
      %p199 = scmp.lt.s32.totalorder %s19, 1
      %s200 = scalar_select %p199, %s19, 1
      %p201 = scmp.lt.s32.totalorder %s198, 15
      %s202 = scalar_select %p201, %s198, 15
      %s203 = smul.addr %s202, 2
      %s204 = smul.addr %s200, 32
      %s205 = sadd.s32 %s203, %s204
      %s206 = smul.addr %s205, 8
      %s207 = scalar_lea.vmem %s2, %s206
      %s208 = smul.u32 8, %s20
      %p209 = scmp.lt.s32.totalorder %s19, 1
      %s210 = scalar_select %p209, %s19, 1
      %p211 = scmp.lt.s32.totalorder %s20, 1
      %s212 = scalar_select %p211, %s20, 1
      %s213 = smul.addr %s210, 2
      %s214 = sadd.s32 %s212, %s213
      %s215 = smul.addr %s214, 2
      %s216 = scalar_lea.vmem %s3, %s215
      %p217 = scmp.eq.s32.totalorder %s20, 0
      // Predicated region
      $region29: #{double_conv_forward.6} parent=27 // pred_check
        %p218 = pneg %p217
      $region30: #{double_conv_forward.6} parent=27 // pred_check_branch
        %220 = sbr.rel (%p218) target = $region32
      $region31: #{double_conv_forward.6} parent=27 // pred_region
        %221 = vst [vmem:[#allocation2] sm:$0xff] 0.0
        %222 = vst [vmem:[#allocation2 + $0x8] sm:$0xff] 0.0
        %223 = vst [vmem:[#allocation2 + $0x10] sm:$0x3] 0.0
        %224 = vst [vmem:[#allocation2 + $0x18] sm:$0xff] 0.0
        %225 = vst [vmem:[#allocation2 + $0x20] sm:$0xff] 0.0
        %226 = vst [vmem:[#allocation2 + $0x28] sm:$0x3] 0.0
        %227 = vst [vmem:[#allocation2 + $0x30] sm:$0xff] 0.0
        %228 = vst [vmem:[#allocation2 + $0x38] sm:$0xff] 0.0
        %229 = vst [vmem:[#allocation2 + $0x40] sm:$0x3] 0.0
        %230 = vst [vmem:[#allocation2 + $0x48] sm:$0xff] 0.0
        %231 = vst [vmem:[#allocation2 + $0x50] sm:$0xff] 0.0
        %232 = vst [vmem:[#allocation2 + $0x58] sm:$0x3] 0.0
        %233 = vst [vmem:[#allocation2 + $0x60] sm:$0xff] 0.0
        %234 = vst [vmem:[#allocation2 + $0x68] sm:$0xff] 0.0
        %235 = vst [vmem:[#allocation2 + $0x70] sm:$0x3] 0.0
        %236 = vst [vmem:[#allocation2 + $0x78] sm:$0xff] 0.0
        %237 = vst [vmem:[#allocation2 + $0x80] sm:$0xff] 0.0
        %238 = vst [vmem:[#allocation2 + $0x88] sm:$0x3] 0.0
        %239 = vst [vmem:[#allocation2 + $0x90] sm:$0xff] 0.0
        %240 = vst [vmem:[#allocation2 + $0x98] sm:$0xff] 0.0
        %241 = vst [vmem:[#allocation2 + $0xa0] sm:$0x3] 0.0
        %242 = vst [vmem:[#allocation2 + $0xa8] sm:$0xff] 0.0
        %243 = vst [vmem:[#allocation2 + $0xb0] sm:$0xff] 0.0
        %244 = vst [vmem:[#allocation2 + $0xb8] sm:$0x3] 0.0
        %245 = vst [vmem:[#allocation2 + $0xc0] sm:$0xff] 0.0
        %246 = vst [vmem:[#allocation2 + $0xc8] sm:$0xff] 0.0
        %247 = vst [vmem:[#allocation2 + $0xd0] sm:$0x3] 0.0
        %248 = vst [vmem:[#allocation2 + $0xd8] sm:$0xff] 0.0
        %249 = vst [vmem:[#allocation2 + $0xe0] sm:$0xff] 0.0
        %250 = vst [vmem:[#allocation2 + $0xe8] sm:$0x3] 0.0
        %251 = vst [vmem:[#allocation2 + $0xf0] sm:$0xff] 0.0
        %252 = vst [vmem:[#allocation2 + $0xf8] sm:$0xff] 0.0
        %253 = vst [vmem:[#allocation2 + $0x100] sm:$0x3] 0.0
        %254 = vst [vmem:[#allocation2 + $0x108] sm:$0xff] 0.0
        %255 = vst [vmem:[#allocation2 + $0x110] sm:$0xff] 0.0
        %256 = vst [vmem:[#allocation2 + $0x118] sm:$0x3] 0.0
        %257 = vst [vmem:[#allocation2 + $0x120] sm:$0xff] 0.0
        %258 = vst [vmem:[#allocation2 + $0x128] sm:$0xff] 0.0
        %259 = vst [vmem:[#allocation2 + $0x130] sm:$0x3] 0.0
        %260 = vst [vmem:[#allocation2 + $0x138] sm:$0xff] 0.0
        %261 = vst [vmem:[#allocation2 + $0x140] sm:$0xff] 0.0
        %262 = vst [vmem:[#allocation2 + $0x148] sm:$0x3] 0.0
        %263 = vst [vmem:[#allocation2 + $0x150] sm:$0xff] 0.0
        %264 = vst [vmem:[#allocation2 + $0x158] sm:$0xff] 0.0
        %265 = vst [vmem:[#allocation2 + $0x160] sm:$0x3] 0.0
        %266 = vst [vmem:[#allocation2 + $0x168] sm:$0xff] 0.0
        %267 = vst [vmem:[#allocation2 + $0x170] sm:$0xff] 0.0
        %268 = vst [vmem:[#allocation2 + $0x178] sm:$0x3] 0.0
        %269 = vst [vmem:[#allocation2 + $0x180] sm:$0xff] 0.0
        %270 = vst [vmem:[#allocation2 + $0x188] sm:$0xff] 0.0
        %271 = vst [vmem:[#allocation2 + $0x190] sm:$0x3] 0.0
        %272 = vst [vmem:[#allocation2 + $0x198] sm:$0xff] 0.0
        %273 = vst [vmem:[#allocation2 + $0x1a0] sm:$0xff] 0.0
        %274 = vst [vmem:[#allocation2 + $0x1a8] sm:$0x3] 0.0
        %v275 = vld [vmem:[%s197] sm:$0xff]
        %v276 = vld [vmem:[%s197 + $0x8] sm:$0xff]
        %v277 = vld [vmem:[%s197 + $0x10] sm:$0xff]
        %v278 = vld [vmem:[%s197 + $0x18] sm:$0xff]
        %v279 = vld [vmem:[%s197 + $0x20] sm:$0xff]
        %v280 = vld [vmem:[%s197 + $0x28] sm:$0xff]
        %v281 = vld [vmem:[%s197 + $0x30] sm:$0xff]
        %v282 = vld [vmem:[%s197 + $0x38] sm:$0xff]
        %v283 = vld [vmem:[%s197 + $0x40] sm:$0xff]
        %v284 = vld [vmem:[%s197 + $0x48] sm:$0xff]
        %v285 = vld [vmem:[%s197 + $0x50] sm:$0xff]
        %v286 = vld [vmem:[%s197 + $0x58] sm:$0xff]
        %v287 = vld [vmem:[%s197 + $0x60] sm:$0xff]
        %v288 = vld [vmem:[%s197 + $0x68] sm:$0xff]
        %v289 = vld [vmem:[%s197 + $0x70] sm:$0xff]
        %v290 = vld [vmem:[%s197 + $0x78] sm:$0xff]
        %v291 = vld [vmem:[%s197 + $0x80] sm:$0xff]
        %v292 = vld [vmem:[%s197 + $0x88] sm:$0xff]
        %v293 = vld [vmem:[%s197 + $0x90] sm:$0xff]
        %v294 = vld [vmem:[%s197 + $0x98] sm:$0xff]
        %v295 = vld [vmem:[%s197 + $0xa0] sm:$0xff]
        %v296 = vld [vmem:[%s197 + $0xa8] sm:$0xff]
        %v297 = vld [vmem:[%s197 + $0xb0] sm:$0xff]
        %v298 = vld [vmem:[%s197 + $0xb8] sm:$0xff]
        %v299 = vld [vmem:[%s197 + $0xc0] sm:$0xff]
        %v300 = vld [vmem:[%s197 + $0xc8] sm:$0xff]
        %v301 = vld [vmem:[%s197 + $0xd0] sm:$0xff]
        %v302 = vld [vmem:[%s197 + $0xd8] sm:$0xff]
        %v303 = vld [vmem:[%s197 + $0xe0] sm:$0xff]
        %v304 = vld [vmem:[%s197 + $0xe8] sm:$0xff]
        %v305 = vld [vmem:[%s197 + $0xf0] sm:$0xff]
        %v306 = vld [vmem:[%s197 + $0xf8] sm:$0xff]
        %s307 = scalar_lea.vmem [#allocation2], 24
        %308 = vst [vmem:[%s307 + $0x1] sm:$0xff] %v275
        %309 = vst [vmem:[%s307 + $0x9] sm:$0xff] %v276
        %310 = vst [vmem:[%s307 + $0x19] sm:$0xff] %v277
        %311 = vst [vmem:[%s307 + $0x21] sm:$0xff] %v278
        %312 = vst [vmem:[%s307 + $0x31] sm:$0xff] %v279
        %313 = vst [vmem:[%s307 + $0x39] sm:$0xff] %v280
        %314 = vst [vmem:[%s307 + $0x49] sm:$0xff] %v281
        %315 = vst [vmem:[%s307 + $0x51] sm:$0xff] %v282
        %316 = vst [vmem:[%s307 + $0x61] sm:$0xff] %v283
        %317 = vst [vmem:[%s307 + $0x69] sm:$0xff] %v284
        %318 = vst [vmem:[%s307 + $0x79] sm:$0xff] %v285
        %319 = vst [vmem:[%s307 + $0x81] sm:$0xff] %v286
        %320 = vst [vmem:[%s307 + $0x91] sm:$0xff] %v287
        %321 = vst [vmem:[%s307 + $0x99] sm:$0xff] %v288
        %322 = vst [vmem:[%s307 + $0xa9] sm:$0xff] %v289
        %323 = vst [vmem:[%s307 + $0xb1] sm:$0xff] %v290
        %324 = vst [vmem:[%s307 + $0xc1] sm:$0xff] %v291
        %325 = vst [vmem:[%s307 + $0xc9] sm:$0xff] %v292
        %326 = vst [vmem:[%s307 + $0xd9] sm:$0xff] %v293
        %327 = vst [vmem:[%s307 + $0xe1] sm:$0xff] %v294
        %328 = vst [vmem:[%s307 + $0xf1] sm:$0xff] %v295
        %329 = vst [vmem:[%s307 + $0xf9] sm:$0xff] %v296
        %330 = vst [vmem:[%s307 + $0x109] sm:$0xff] %v297
        %331 = vst [vmem:[%s307 + $0x111] sm:$0xff] %v298
        %332 = vst [vmem:[%s307 + $0x121] sm:$0xff] %v299
        %333 = vst [vmem:[%s307 + $0x129] sm:$0xff] %v300
        %334 = vst [vmem:[%s307 + $0x139] sm:$0xff] %v301
        %335 = vst [vmem:[%s307 + $0x141] sm:$0xff] %v302
        %336 = vst [vmem:[%s307 + $0x151] sm:$0xff] %v303
        %337 = vst [vmem:[%s307 + $0x159] sm:$0xff] %v304
        %338 = vst [vmem:[%s307 + $0x169] sm:$0xff] %v305
        %339 = vst [vmem:[%s307 + $0x171] sm:$0xff] %v306
      $region32: #{double_conv_forward.6} parent=27 // pred_fallthru
        _
      %s340 = smul.u32 %s20, 8
      %s341 = smul.u32 %s340, 24
      %s342 = scalar_lea.vmem [#allocation2], %s341
      %v343 = vld [vmem:[%s342] sm:$0xff]
      %v344 = vld [vmem:[%s342 + $0x8] sm:$0xff]
      %v345 = vld [vmem:[%s342 + $0x18] sm:$0xff]
      %v346 = vld [vmem:[%s342 + $0x20] sm:$0xff]
      %v347 = vld [vmem:[%s342 + $0x30] sm:$0xff]
      %v348 = vld [vmem:[%s342 + $0x38] sm:$0xff]
      %v349 = vld [vmem:[%s342 + $0x48] sm:$0xff]
      %v350 = vld [vmem:[%s342 + $0x50] sm:$0xff]
      %v351 = vld [vmem:[%s342 + $0x60] sm:$0xff]
      %v352 = vld [vmem:[%s342 + $0x68] sm:$0xff]
      %v353 = vld [vmem:[%s342 + $0x78] sm:$0xff]
      %v354 = vld [vmem:[%s342 + $0x80] sm:$0xff]
      %v355 = vld [vmem:[%s342 + $0x90] sm:$0xff]
      %v356 = vld [vmem:[%s342 + $0x98] sm:$0xff]
      %v357 = vld [vmem:[%s342 + $0xa8] sm:$0xff]
      %v358 = vld [vmem:[%s342 + $0xb0] sm:$0xff]
      %v359 = vld [vmem:[%s342 + $0x1] sm:$0xff]
      %v360 = vld [vmem:[%s342 + $0x9] sm:$0xff]
      %v361 = vld [vmem:[%s342 + $0x19] sm:$0xff]
      %v362 = vld [vmem:[%s342 + $0x21] sm:$0xff]
      %v363 = vld [vmem:[%s342 + $0x31] sm:$0xff]
      %v364 = vld [vmem:[%s342 + $0x39] sm:$0xff]
      %v365 = vld [vmem:[%s342 + $0x49] sm:$0xff]
      %v366 = vld [vmem:[%s342 + $0x51] sm:$0xff]
      %v367 = vld [vmem:[%s342 + $0x61] sm:$0xff]
      %v368 = vld [vmem:[%s342 + $0x69] sm:$0xff]
      %v369 = vld [vmem:[%s342 + $0x79] sm:$0xff]
      %v370 = vld [vmem:[%s342 + $0x81] sm:$0xff]
      %v371 = vld [vmem:[%s342 + $0x91] sm:$0xff]
      %v372 = vld [vmem:[%s342 + $0x99] sm:$0xff]
      %v373 = vld [vmem:[%s342 + $0xa9] sm:$0xff]
      %v374 = vld [vmem:[%s342 + $0xb1] sm:$0xff]
      %v375 = vld [vmem:[%s342 + $0x2] sm:$0xff]
      %v376 = vld [vmem:[%s342 + $0xa] sm:$0xff]
      %v377 = vld [vmem:[%s342 + $0x1a] sm:$0xff]
      %v378 = vld [vmem:[%s342 + $0x22] sm:$0xff]
      %v379 = vld [vmem:[%s342 + $0x32] sm:$0xff]
      %v380 = vld [vmem:[%s342 + $0x3a] sm:$0xff]
      %v381 = vld [vmem:[%s342 + $0x4a] sm:$0xff]
      %v382 = vld [vmem:[%s342 + $0x52] sm:$0xff]
      %v383 = vld [vmem:[%s342 + $0x62] sm:$0xff]
      %v384 = vld [vmem:[%s342 + $0x6a] sm:$0xff]
      %v385 = vld [vmem:[%s342 + $0x7a] sm:$0xff]
      %v386 = vld [vmem:[%s342 + $0x82] sm:$0xff]
      %v387 = vld [vmem:[%s342 + $0x92] sm:$0xff]
      %v388 = vld [vmem:[%s342 + $0x9a] sm:$0xff]
      %v389 = vld [vmem:[%s342 + $0xaa] sm:$0xff]
      %v390 = vld [vmem:[%s342 + $0xb2] sm:$0xff]
      %s391 = sadd.s32 %s340, 1
      %s392 = smul.u32 %s391, 24
      %s393 = scalar_lea.vmem [#allocation2], %s392
      %v394 = vld [vmem:[%s393] sm:$0xff]
      %v395 = vld [vmem:[%s393 + $0x8] sm:$0xff]
      %v396 = vld [vmem:[%s393 + $0x18] sm:$0xff]
      %v397 = vld [vmem:[%s393 + $0x20] sm:$0xff]
      %v398 = vld [vmem:[%s393 + $0x30] sm:$0xff]
      %v399 = vld [vmem:[%s393 + $0x38] sm:$0xff]
      %v400 = vld [vmem:[%s393 + $0x48] sm:$0xff]
      %v401 = vld [vmem:[%s393 + $0x50] sm:$0xff]
      %v402 = vld [vmem:[%s393 + $0x60] sm:$0xff]
      %v403 = vld [vmem:[%s393 + $0x68] sm:$0xff]
      %v404 = vld [vmem:[%s393 + $0x78] sm:$0xff]
      %v405 = vld [vmem:[%s393 + $0x80] sm:$0xff]
      %v406 = vld [vmem:[%s393 + $0x90] sm:$0xff]
      %v407 = vld [vmem:[%s393 + $0x98] sm:$0xff]
      %v408 = vld [vmem:[%s393 + $0xa8] sm:$0xff]
      %v409 = vld [vmem:[%s393 + $0xb0] sm:$0xff]
      %v410 = vld [vmem:[%s393 + $0x1] sm:$0xff]
      %v411 = vld [vmem:[%s393 + $0x9] sm:$0xff]
      %v412 = vld [vmem:[%s393 + $0x19] sm:$0xff]
      %v413 = vld [vmem:[%s393 + $0x21] sm:$0xff]
      %v414 = vld [vmem:[%s393 + $0x31] sm:$0xff]
      %v415 = vld [vmem:[%s393 + $0x39] sm:$0xff]
      %v416 = vld [vmem:[%s393 + $0x49] sm:$0xff]
      %v417 = vld [vmem:[%s393 + $0x51] sm:$0xff]
      %v418 = vld [vmem:[%s393 + $0x61] sm:$0xff]
      %v419 = vld [vmem:[%s393 + $0x69] sm:$0xff]
      %v420 = vld [vmem:[%s393 + $0x79] sm:$0xff]
      %v421 = vld [vmem:[%s393 + $0x81] sm:$0xff]
      %v422 = vld [vmem:[%s393 + $0x91] sm:$0xff]
      %v423 = vld [vmem:[%s393 + $0x99] sm:$0xff]
      %v424 = vld [vmem:[%s393 + $0xa9] sm:$0xff]
      %v425 = vld [vmem:[%s393 + $0xb1] sm:$0xff]
      %v426 = vld [vmem:[%s393 + $0x2] sm:$0xff]
      %v427 = vld [vmem:[%s393 + $0xa] sm:$0xff]
      %v428 = vld [vmem:[%s393 + $0x1a] sm:$0xff]
      %v429 = vld [vmem:[%s393 + $0x22] sm:$0xff]
      %v430 = vld [vmem:[%s393 + $0x32] sm:$0xff]
      %v431 = vld [vmem:[%s393 + $0x3a] sm:$0xff]
      %v432 = vld [vmem:[%s393 + $0x4a] sm:$0xff]
      %v433 = vld [vmem:[%s393 + $0x52] sm:$0xff]
      %v434 = vld [vmem:[%s393 + $0x62] sm:$0xff]
      %v435 = vld [vmem:[%s393 + $0x6a] sm:$0xff]
      %v436 = vld [vmem:[%s393 + $0x7a] sm:$0xff]
      %v437 = vld [vmem:[%s393 + $0x82] sm:$0xff]
      %v438 = vld [vmem:[%s393 + $0x92] sm:$0xff]
      %v439 = vld [vmem:[%s393 + $0x9a] sm:$0xff]
      %v440 = vld [vmem:[%s393 + $0xaa] sm:$0xff]
      %v441 = vld [vmem:[%s393 + $0xb2] sm:$0xff]
      %s442 = sadd.s32 %s340, 2
      %s443 = smul.u32 %s442, 24
      %s444 = scalar_lea.vmem [#allocation2], %s443
      %v445 = vld [vmem:[%s444] sm:$0xff]
      %v446 = vld [vmem:[%s444 + $0x8] sm:$0xff]
      %v447 = vld [vmem:[%s444 + $0x18] sm:$0xff]
      %v448 = vld [vmem:[%s444 + $0x20] sm:$0xff]
      %v449 = vld [vmem:[%s444 + $0x30] sm:$0xff]
      %v450 = vld [vmem:[%s444 + $0x38] sm:$0xff]
      %v451 = vld [vmem:[%s444 + $0x48] sm:$0xff]
      %v452 = vld [vmem:[%s444 + $0x50] sm:$0xff]
      %v453 = vld [vmem:[%s444 + $0x60] sm:$0xff]
      %v454 = vld [vmem:[%s444 + $0x68] sm:$0xff]
      %v455 = vld [vmem:[%s444 + $0x78] sm:$0xff]
      %v456 = vld [vmem:[%s444 + $0x80] sm:$0xff]
      %v457 = vld [vmem:[%s444 + $0x90] sm:$0xff]
      %v458 = vld [vmem:[%s444 + $0x98] sm:$0xff]
      %v459 = vld [vmem:[%s444 + $0xa8] sm:$0xff]
      %v460 = vld [vmem:[%s444 + $0xb0] sm:$0xff]
      %v461 = vld [vmem:[%s444 + $0x1] sm:$0xff]
      %v462 = vld [vmem:[%s444 + $0x9] sm:$0xff]
      %v463 = vld [vmem:[%s444 + $0x19] sm:$0xff]
      %v464 = vld [vmem:[%s444 + $0x21] sm:$0xff]
      %v465 = vld [vmem:[%s444 + $0x31] sm:$0xff]
      %v466 = vld [vmem:[%s444 + $0x39] sm:$0xff]
      %v467 = vld [vmem:[%s444 + $0x49] sm:$0xff]
      %v468 = vld [vmem:[%s444 + $0x51] sm:$0xff]
      %v469 = vld [vmem:[%s444 + $0x61] sm:$0xff]
      %v470 = vld [vmem:[%s444 + $0x69] sm:$0xff]
      %v471 = vld [vmem:[%s444 + $0x79] sm:$0xff]
      %v472 = vld [vmem:[%s444 + $0x81] sm:$0xff]
      %v473 = vld [vmem:[%s444 + $0x91] sm:$0xff]
      %v474 = vld [vmem:[%s444 + $0x99] sm:$0xff]
      %v475 = vld [vmem:[%s444 + $0xa9] sm:$0xff]
      %v476 = vld [vmem:[%s444 + $0xb1] sm:$0xff]
      %v477 = vld [vmem:[%s444 + $0x2] sm:$0xff]
      %v478 = vld [vmem:[%s444 + $0xa] sm:$0xff]
      %v479 = vld [vmem:[%s444 + $0x1a] sm:$0xff]
      %v480 = vld [vmem:[%s444 + $0x22] sm:$0xff]
      %v481 = vld [vmem:[%s444 + $0x32] sm:$0xff]
      %v482 = vld [vmem:[%s444 + $0x3a] sm:$0xff]
      %v483 = vld [vmem:[%s444 + $0x4a] sm:$0xff]
      %v484 = vld [vmem:[%s444 + $0x52] sm:$0xff]
      %v485 = vld [vmem:[%s444 + $0x62] sm:$0xff]
      %v486 = vld [vmem:[%s444 + $0x6a] sm:$0xff]
      %v487 = vld [vmem:[%s444 + $0x7a] sm:$0xff]
      %v488 = vld [vmem:[%s444 + $0x82] sm:$0xff]
      %v489 = vld [vmem:[%s444 + $0x92] sm:$0xff]
      %v490 = vld [vmem:[%s444 + $0x9a] sm:$0xff]
      %v491 = vld [vmem:[%s444 + $0xaa] sm:$0xff]
      %v492 = vld [vmem:[%s444 + $0xb2] sm:$0xff]
      %v493 = vld [vmem:[%s1] sm:$0xff]
      %v494 = vld [vmem:[%s1 + $0x8] sm:$0xff]
      %v495 = vld [vmem:[%s1 + $0x10] sm:$0xff]
      %v496 = vld [vmem:[%s1 + $0x18] sm:$0xff]
      %v497 = vld [vmem:[%s1 + $0x20] sm:$0xff]
      %v498 = vld [vmem:[%s1 + $0x28] sm:$0xff]
      %v499 = vld [vmem:[%s1 + $0x30] sm:$0xff]
      %v500 = vld [vmem:[%s1 + $0x38] sm:$0xff]
      %v501 = vld [vmem:[%s1 + $0x40] sm:$0xff]
      %v502 = vld [vmem:[%s1 + $0x48] sm:$0xff]
      %v503 = vld [vmem:[%s1 + $0x50] sm:$0xff]
      %v504 = vld [vmem:[%s1 + $0x58] sm:$0xff]
      %v505 = vld [vmem:[%s1 + $0x60] sm:$0xff]
      %v506 = vld [vmem:[%s1 + $0x68] sm:$0xff]
      %v507 = vld [vmem:[%s1 + $0x70] sm:$0xff]
      %v508 = vld [vmem:[%s1 + $0x78] sm:$0xff]
      %v509 = vld [vmem:[%s1 + $0x80] sm:$0xff]
      %v510 = vld [vmem:[%s1 + $0x88] sm:$0xff]
      %v511 = vld [vmem:[%s1 + $0x90] sm:$0xff]
      %v512 = vld [vmem:[%s1 + $0x98] sm:$0xff]
      %v513 = vld [vmem:[%s1 + $0xa0] sm:$0xff]
      %v514 = vld [vmem:[%s1 + $0xa8] sm:$0xff]
      %v515 = vld [vmem:[%s1 + $0xb0] sm:$0xff]
      %v516 = vld [vmem:[%s1 + $0xb8] sm:$0xff]
      %v517 = vld [vmem:[%s1 + $0xc0] sm:$0xff]
      %v518 = vld [vmem:[%s1 + $0xc8] sm:$0xff]
      %v519 = vld [vmem:[%s1 + $0xd0] sm:$0xff]
      %v520 = vld [vmem:[%s1 + $0xd8] sm:$0xff]
      %v521 = vld [vmem:[%s1 + $0xe0] sm:$0xff]
      %v522 = vld [vmem:[%s1 + $0xe8] sm:$0xff]
      %v523 = vld [vmem:[%s1 + $0xf0] sm:$0xff]
      %v524 = vld [vmem:[%s1 + $0xf8] sm:$0xff]
      %v525 = vld [vmem:[%s1 + $0x100] sm:$0xff]
      %v526 = vld [vmem:[%s1 + $0x108] sm:$0xff]
      %v527 = vld [vmem:[%s1 + $0x110] sm:$0xff]
      %v528 = vld [vmem:[%s1 + $0x118] sm:$0xff]
      %v529 = vld [vmem:[%s1 + $0x120] sm:$0xff]
      %v530 = vld [vmem:[%s1 + $0x128] sm:$0xff]
      %v531 = vld [vmem:[%s1 + $0x130] sm:$0xff]
      %v532 = vld [vmem:[%s1 + $0x138] sm:$0xff]
      %v533 = vld [vmem:[%s1 + $0x140] sm:$0xff]
      %v534 = vld [vmem:[%s1 + $0x148] sm:$0xff]
      %v535 = vld [vmem:[%s1 + $0x150] sm:$0xff]
      %v536 = vld [vmem:[%s1 + $0x158] sm:$0xff]
      %v537 = vld [vmem:[%s1 + $0x160] sm:$0xff]
      %v538 = vld [vmem:[%s1 + $0x168] sm:$0xff]
      %v539 = vld [vmem:[%s1 + $0x170] sm:$0xff]
      %v540 = vld [vmem:[%s1 + $0x178] sm:$0xff]
      %v541 = vld [vmem:[%s1 + $0x180] sm:$0xff]
      %v542 = vld [vmem:[%s1 + $0x188] sm:$0xff]
      %v543 = vld [vmem:[%s1 + $0x190] sm:$0xff]
      %v544 = vld [vmem:[%s1 + $0x198] sm:$0xff]
      %v545 = vld [vmem:[%s1 + $0x1a0] sm:$0xff]
      %v546 = vld [vmem:[%s1 + $0x1a8] sm:$0xff]
      %v547 = vld [vmem:[%s1 + $0x1b0] sm:$0xff]
      %v548 = vld [vmem:[%s1 + $0x1b8] sm:$0xff]
      %v549 = vld [vmem:[%s1 + $0x1c0] sm:$0xff]
      %v550 = vld [vmem:[%s1 + $0x1c8] sm:$0xff]
      %v551 = vld [vmem:[%s1 + $0x1d0] sm:$0xff]
      %v552 = vld [vmem:[%s1 + $0x1d8] sm:$0xff]
      %v553 = vld [vmem:[%s1 + $0x1e0] sm:$0xff]
      %v554 = vld [vmem:[%s1 + $0x1e8] sm:$0xff]
      %v555 = vld [vmem:[%s1 + $0x1f0] sm:$0xff]
      %v556 = vld [vmem:[%s1 + $0x1f8] sm:$0xff]
      %v557 = vld [vmem:[%s1 + $0x200] sm:$0xff]
      %v558 = vld [vmem:[%s1 + $0x208] sm:$0xff]
      %v559 = vld [vmem:[%s1 + $0x210] sm:$0xff]
      %v560 = vld [vmem:[%s1 + $0x218] sm:$0xff]
      %v561 = vld [vmem:[%s1 + $0x220] sm:$0xff]
      %v562 = vld [vmem:[%s1 + $0x228] sm:$0xff]
      %v563 = vld [vmem:[%s1 + $0x230] sm:$0xff]
      %v564 = vld [vmem:[%s1 + $0x238] sm:$0xff]
      %v565 = vld [vmem:[%s1 + $0x240] sm:$0xff]
      %v566 = vld [vmem:[%s1 + $0x248] sm:$0xff]
      %v567 = vld [vmem:[%s1 + $0x250] sm:$0xff]
      %v568 = vld [vmem:[%s1 + $0x258] sm:$0xff]
      %v569 = vld [vmem:[%s1 + $0x260] sm:$0xff]
      %v570 = vld [vmem:[%s1 + $0x268] sm:$0xff]
      %v571 = vld [vmem:[%s1 + $0x270] sm:$0xff]
      %v572 = vld [vmem:[%s1 + $0x278] sm:$0xff]
      %v573 = vld [vmem:[%s1 + $0x280] sm:$0xff]
      %v574 = vld [vmem:[%s1 + $0x288] sm:$0xff]
      %v575 = vld [vmem:[%s1 + $0x290] sm:$0xff]
      %v576 = vld [vmem:[%s1 + $0x298] sm:$0xff]
      %v577 = vld [vmem:[%s1 + $0x2a0] sm:$0xff]
      %v578 = vld [vmem:[%s1 + $0x2a8] sm:$0xff]
      %v579 = vld [vmem:[%s1 + $0x2b0] sm:$0xff]
      %v580 = vld [vmem:[%s1 + $0x2b8] sm:$0xff]
      %v581 = vld [vmem:[%s1 + $0x2c0] sm:$0xff]
      %v582 = vld [vmem:[%s1 + $0x2c8] sm:$0xff]
      %v583 = vld [vmem:[%s1 + $0x2d0] sm:$0xff]
      %v584 = vld [vmem:[%s1 + $0x2d8] sm:$0xff]
      %v585 = vld [vmem:[%s1 + $0x2e0] sm:$0xff]
      %v586 = vld [vmem:[%s1 + $0x2e8] sm:$0xff]
      %v587 = vld [vmem:[%s1 + $0x2f0] sm:$0xff]
      %v588 = vld [vmem:[%s1 + $0x2f8] sm:$0xff]
      %v589 = vld [vmem:[%s1 + $0x300] sm:$0xff]
      %v590 = vld [vmem:[%s1 + $0x308] sm:$0xff]
      %v591 = vld [vmem:[%s1 + $0x310] sm:$0xff]
      %v592 = vld [vmem:[%s1 + $0x318] sm:$0xff]
      %v593 = vld [vmem:[%s1 + $0x320] sm:$0xff]
      %v594 = vld [vmem:[%s1 + $0x328] sm:$0xff]
      %v595 = vld [vmem:[%s1 + $0x330] sm:$0xff]
      %v596 = vld [vmem:[%s1 + $0x338] sm:$0xff]
      %v597 = vld [vmem:[%s1 + $0x340] sm:$0xff]
      %v598 = vld [vmem:[%s1 + $0x348] sm:$0xff]
      %v599 = vld [vmem:[%s1 + $0x350] sm:$0xff]
      %v600 = vld [vmem:[%s1 + $0x358] sm:$0xff]
      %v601 = vld [vmem:[%s1 + $0x360] sm:$0xff]
      %v602 = vld [vmem:[%s1 + $0x368] sm:$0xff]
      %v603 = vld [vmem:[%s1 + $0x370] sm:$0xff]
      %v604 = vld [vmem:[%s1 + $0x378] sm:$0xff]
      %v605 = vld [vmem:[%s1 + $0x380] sm:$0xff]
      %v606 = vld [vmem:[%s1 + $0x388] sm:$0xff]
      %v607 = vld [vmem:[%s1 + $0x390] sm:$0xff]
      %v608 = vld [vmem:[%s1 + $0x398] sm:$0xff]
      %v609 = vld [vmem:[%s1 + $0x3a0] sm:$0xff]
      %v610 = vld [vmem:[%s1 + $0x3a8] sm:$0xff]
      %v611 = vld [vmem:[%s1 + $0x3b0] sm:$0xff]
      %v612 = vld [vmem:[%s1 + $0x3b8] sm:$0xff]
      %v613 = vld [vmem:[%s1 + $0x3c0] sm:$0xff]
      %v614 = vld [vmem:[%s1 + $0x3c8] sm:$0xff]
      %v615 = vld [vmem:[%s1 + $0x3d0] sm:$0xff]
      %v616 = vld [vmem:[%s1 + $0x3d8] sm:$0xff]
      %v617 = vld [vmem:[%s1 + $0x3e0] sm:$0xff]
      %v618 = vld [vmem:[%s1 + $0x3e8] sm:$0xff]
      %v619 = vld [vmem:[%s1 + $0x3f0] sm:$0xff]
      %v620 = vld [vmem:[%s1 + $0x3f8] sm:$0xff]
      %v621 = vld [vmem:[%s1 + $0x400] sm:$0xff]
      %v622 = vld [vmem:[%s1 + $0x408] sm:$0xff]
      %v623 = vld [vmem:[%s1 + $0x410] sm:$0xff]
      %v624 = vld [vmem:[%s1 + $0x418] sm:$0xff]
      %v625 = vld [vmem:[%s1 + $0x420] sm:$0xff]
      %v626 = vld [vmem:[%s1 + $0x428] sm:$0xff]
      %v627 = vld [vmem:[%s1 + $0x430] sm:$0xff]
      %v628 = vld [vmem:[%s1 + $0x438] sm:$0xff]
      %v629 = vld [vmem:[%s1 + $0x440] sm:$0xff]
      %v630 = vld [vmem:[%s1 + $0x448] sm:$0xff]
      %v631 = vld [vmem:[%s1 + $0x450] sm:$0xff]
      %v632 = vld [vmem:[%s1 + $0x458] sm:$0xff]
      %v633 = vld [vmem:[%s1 + $0x460] sm:$0xff]
      %v634 = vld [vmem:[%s1 + $0x468] sm:$0xff]
      %v635 = vld [vmem:[%s1 + $0x470] sm:$0xff]
      %v636 = vld [vmem:[%s1 + $0x478] sm:$0xff]
      %637 = vmatprep.subr.mxu0 0.0
      %638 = vmatpush1.msra.mxu0 %v493
      %639 = vmatprep.subr.mxu0 0.0
      %640 = vmatpush1.msra.mxu0 %v494
      %641 = vmatprep.subr.mxu0 0.0
      %642 = vmatpush1.msra.mxu0 %v495
      %643 = vmatprep.subr.mxu0 0.0
      %644 = vmatpush1.msra.mxu0 %v496
      %645 = vmatprep.subr.mxu0 0.0
      %646 = vmatpush1.msra.mxu0 %v497
      %647 = vmatprep.subr.mxu0 0.0
      %648 = vmatpush1.msra.mxu0 %v498
      %649 = vmatprep.subr.mxu0 0.0
      %650 = vmatpush1.msra.mxu0 %v499
      %651 = vmatprep.subr.mxu0 0.0
      %652 = vmatpush1.msra.mxu0 %v500
      %653 = vmatprep.subr.mxu0 0.0
      %654 = vmatpush1.msra.mxu0 %v501
      %655 = vmatprep.subr.mxu0 0.0
      %656 = vmatpush1.msra.mxu0 %v502
      %657 = vmatprep.subr.mxu0 0.0
      %658 = vmatpush1.msra.mxu0 %v503
      %659 = vmatprep.subr.mxu0 0.0
      %660 = vmatpush1.msra.mxu0 %v504
      %661 = vmatprep.subr.mxu0 0.0
      %662 = vmatpush1.msra.mxu0 %v505
      %663 = vmatprep.subr.mxu0 0.0
      %664 = vmatpush1.msra.mxu0 %v506
      %665 = vmatprep.subr.mxu0 0.0
      %666 = vmatpush1.msra.mxu0 %v507
      %667 = vmatprep.subr.mxu0 0.0
      %668 = vmatpush1.msra.mxu0 %v508
      %669 = vmatprep.subr.mxu0 0.0
      %670 = vmatpush1.msra.mxu0 %v509
      %671 = vmatprep.subr.mxu0 0.0
      %672 = vmatpush1.msra.mxu0 %v510
      %673 = vmatprep.subr.mxu0 0.0
      %674 = vmatpush1.msra.mxu0 %v511
      %675 = vmatprep.subr.mxu0 0.0
      %676 = vmatpush1.msra.mxu0 %v512
      %677 = vmatprep.subr.mxu0 0.0
      %678 = vmatpush1.msra.mxu0 %v513
      %679 = vmatprep.subr.mxu0 0.0
      %680 = vmatpush1.msra.mxu0 %v514
      %681 = vmatprep.subr.mxu0 0.0
      %682 = vmatpush1.msra.mxu0 %v515
      %683 = vmatprep.subr.mxu0 0.0
      %684 = vmatpush1.msra.mxu0 %v516
      %685 = vmatprep.subr.mxu0 0.0
      %686 = vmatpush1.msra.mxu0 %v517
      %687 = vmatprep.subr.mxu0 0.0
      %688 = vmatpush1.msra.mxu0 %v518
      %689 = vmatprep.subr.mxu0 0.0
      %690 = vmatpush1.msra.mxu0 %v519
      %691 = vmatprep.subr.mxu0 0.0
      %692 = vmatpush1.msra.mxu0 %v520
      %693 = vmatprep.subr.mxu0 0.0
      %694 = vmatpush1.msra.mxu0 %v521
      %695 = vmatprep.subr.mxu0 0.0
      %696 = vmatpush1.msra.mxu0 %v522
      %697 = vmatprep.subr.mxu0 0.0
      %698 = vmatpush1.msra.mxu0 %v523
      %699 = vmatprep.subr.mxu0 0.0
      %700 = vmatpush1.msra.mxu0 %v524
      %701 = vmatprep.mubr.f32.mxu0 %v359
      %702 = vmatmul.mubr.f32.gmra.mrb[0].mxu0 %v343
      %v703 = vpop.f32.mrb[0].mxu0
      %v704 = vadd.f32 0.0, %v703
      %v705 = vpop.f32.mrb[0].mxu0
      %706 = vmatprep.mubr.f32.mxu0 %v360
      %707 = vmatmul.mubr.f32.gmra.mrb[0].mxu0 %v344
      %v708 = vpop.f32.mrb[0].mxu0
      %v709 = vadd.f32 0.0, %v708
      %v710 = vpop.f32.mrb[0].mxu0
      %711 = vmatprep.mubr.f32.mxu0 %v361
      %712 = vmatmul.mubr.f32.gmra.mrb[0].mxu0 %v345
      %v713 = vpop.f32.mrb[0].mxu0
      %v714 = vadd.f32 0.0, %v713
      %v715 = vpop.f32.mrb[0].mxu0
      %716 = vmatprep.mubr.f32.mxu0 %v362
      %717 = vmatmul.mubr.f32.gmra.mrb[0].mxu0 %v346
      %v718 = vpop.f32.mrb[0].mxu0
      %v719 = vadd.f32 0.0, %v718
      %v720 = vpop.f32.mrb[0].mxu0
      %721 = vmatprep.mubr.f32.mxu0 %v363
      %722 = vmatmul.mubr.f32.gmra.mrb[0].mxu0 %v347
      %v723 = vpop.f32.mrb[0].mxu0
      %v724 = vadd.f32 0.0, %v723
      %v725 = vpop.f32.mrb[0].mxu0
      %726 = vmatprep.mubr.f32.mxu0 %v364
      %727 = vmatmul.mubr.f32.gmra.mrb[0].mxu0 %v348
      %v728 = vpop.f32.mrb[0].mxu0
      %v729 = vadd.f32 0.0, %v728
      %v730 = vpop.f32.mrb[0].mxu0
      %731 = vmatprep.mubr.f32.mxu0 %v365
      %732 = vmatmul.mubr.f32.gmra.mrb[0].mxu0 %v349
      %v733 = vpop.f32.mrb[0].mxu0
      %v734 = vadd.f32 0.0, %v733
      %v735 = vpop.f32.mrb[0].mxu0
      %736 = vmatprep.mubr.f32.mxu0 %v366
      %737 = vmatmul.mubr.f32.gmra.mrb[0].mxu0 %v350
      %v738 = vpop.f32.mrb[0].mxu0
      %v739 = vadd.f32 0.0, %v738
      %v740 = vpop.f32.mrb[0].mxu0
      %741 = vmatprep.mubr.f32.mxu0 %v367
      %742 = vmatmul.mubr.f32.gmra.mrb[0].mxu0 %v351
      %v743 = vpop.f32.mrb[0].mxu0
      %v744 = vadd.f32 0.0, %v743
      %v745 = vpop.f32.mrb[0].mxu0
      %746 = vmatprep.mubr.f32.mxu0 %v368
      %747 = vmatmul.mubr.f32.gmra.mrb[0].mxu0 %v352
      %v748 = vpop.f32.mrb[0].mxu0
      %v749 = vadd.f32 0.0, %v748
      %v750 = vpop.f32.mrb[0].mxu0
      %751 = vmatprep.mubr.f32.mxu0 %v369
      %752 = vmatmul.mubr.f32.gmra.mrb[0].mxu0 %v353
      %v753 = vpop.f32.mrb[0].mxu0
      %v754 = vadd.f32 0.0, %v753
      %v755 = vpop.f32.mrb[0].mxu0
      %756 = vmatprep.mubr.f32.mxu0 %v370
      %757 = vmatmul.mubr.f32.gmra.mrb[0].mxu0 %v354
      %v758 = vpop.f32.mrb[0].mxu0
      %v759 = vadd.f32 0.0, %v758
      %v760 = vpop.f32.mrb[0].mxu0
      %761 = vmatprep.mubr.f32.mxu0 %v371
      %762 = vmatmul.mubr.f32.gmra.mrb[0].mxu0 %v355
      %v763 = vpop.f32.mrb[0].mxu0
      %v764 = vadd.f32 0.0, %v763
      %v765 = vpop.f32.mrb[0].mxu0
      %766 = vmatprep.mubr.f32.mxu0 %v372
      %767 = vmatmul.mubr.f32.gmra.mrb[0].mxu0 %v356
      %v768 = vpop.f32.mrb[0].mxu0
      %v769 = vadd.f32 0.0, %v768
      %v770 = vpop.f32.mrb[0].mxu0
      %771 = vmatprep.mubr.f32.mxu0 %v373
      %772 = vmatmul.mubr.f32.gmra.mrb[0].mxu0 %v357
      %v773 = vpop.f32.mrb[0].mxu0
      %v774 = vadd.f32 0.0, %v773
      %v775 = vpop.f32.mrb[0].mxu0
      %776 = vmatprep.mubr.f32.mxu0 %v374
      %777 = vmatmul.mubr.f32.gmra.mrb[0].mxu0 %v358
      %v778 = vpop.f32.mrb[0].mxu0
      %v779 = vadd.f32 0.0, %v778
      %v780 = vpop.f32.mrb[0].mxu0
      %781 = vdwg.mxu0
      %782 = vmatprep.subr.mxu0 0.0
      %783 = vmatpush1.msra.mxu0 %v525
      %784 = vmatprep.subr.mxu0 0.0
      %785 = vmatpush1.msra.mxu0 %v526
      %786 = vmatprep.subr.mxu0 0.0
      %787 = vmatpush1.msra.mxu0 %v527
      %788 = vmatprep.subr.mxu0 0.0
      %789 = vmatpush1.msra.mxu0 %v528
      %790 = vmatprep.subr.mxu0 0.0
      %791 = vmatpush1.msra.mxu0 %v529
      %792 = vmatprep.subr.mxu0 0.0
      %793 = vmatpush1.msra.mxu0 %v530
      %794 = vmatprep.subr.mxu0 0.0
      %795 = vmatpush1.msra.mxu0 %v531
      %796 = vmatprep.subr.mxu0 0.0
      %797 = vmatpush1.msra.mxu0 %v532
      %798 = vmatprep.subr.mxu0 0.0
      %799 = vmatpush1.msra.mxu0 %v533
      %800 = vmatprep.subr.mxu0 0.0
      %801 = vmatpush1.msra.mxu0 %v534
      %802 = vmatprep.subr.mxu0 0.0
      %803 = vmatpush1.msra.mxu0 %v535
      %804 = vmatprep.subr.mxu0 0.0
      %805 = vmatpush1.msra.mxu0 %v536
      %806 = vmatprep.subr.mxu0 0.0
      %807 = vmatpush1.msra.mxu0 %v537
      %808 = vmatprep.subr.mxu0 0.0
      %809 = vmatpush1.msra.mxu0 %v538
      %810 = vmatprep.subr.mxu0 0.0
      %811 = vmatpush1.msra.mxu0 %v539
      %812 = vmatprep.subr.mxu0 0.0
      %813 = vmatpush1.msra.mxu0 %v540
      %814 = vmatprep.subr.mxu0 0.0
      %815 = vmatpush1.msra.mxu0 %v541
      %816 = vmatprep.subr.mxu0 0.0
      %817 = vmatpush1.msra.mxu0 %v542
      %818 = vmatprep.subr.mxu0 0.0
      %819 = vmatpush1.msra.mxu0 %v543
      %820 = vmatprep.subr.mxu0 0.0
      %821 = vmatpush1.msra.mxu0 %v544
      %822 = vmatprep.subr.mxu0 0.0
      %823 = vmatpush1.msra.mxu0 %v545
      %824 = vmatprep.subr.mxu0 0.0
      %825 = vmatpush1.msra.mxu0 %v546
      %826 = vmatprep.subr.mxu0 0.0
      %827 = vmatpush1.msra.mxu0 %v547
      %828 = vmatprep.subr.mxu0 0.0
      %829 = vmatpush1.msra.mxu0 %v548
      %830 = vmatprep.subr.mxu0 0.0
      %831 = vmatpush1.msra.mxu0 %v549
      %832 = vmatprep.subr.mxu0 0.0
      %833 = vmatpush1.msra.mxu0 %v550
      %834 = vmatprep.subr.mxu0 0.0
      %835 = vmatpush1.msra.mxu0 %v551
      %836 = vmatprep.subr.mxu0 0.0
      %837 = vmatpush1.msra.mxu0 %v552
      %838 = vmatprep.subr.mxu0 0.0
      %839 = vmatpush1.msra.mxu0 %v553
      %840 = vmatprep.subr.mxu0 0.0
      %841 = vmatpush1.msra.mxu0 %v554
      %842 = vmatprep.subr.mxu0 0.0
      %843 = vmatpush1.msra.mxu0 %v555
      %844 = vmatprep.subr.mxu0 0.0
      %845 = vmatpush1.msra.mxu0 %v556
      %846 = vmatprep.mubr.f32.mxu0 %v394
      %847 = vmatmul.mubr.f32.gmra.mrb[0].mxu0 %v375
      %v848 = vpop.f32.mrb[0].mxu0
      %v849 = vadd.f32 %v704, %v848
      %v850 = vpop.f32.mrb[0].mxu0
      %851 = vmatprep.mubr.f32.mxu0 %v395
      %852 = vmatmul.mubr.f32.gmra.mrb[0].mxu0 %v376
      %v853 = vpop.f32.mrb[0].mxu0
      %v854 = vadd.f32 %v709, %v853
      %v855 = vpop.f32.mrb[0].mxu0
      %856 = vmatprep.mubr.f32.mxu0 %v396
      %857 = vmatmul.mubr.f32.gmra.mrb[0].mxu0 %v377
      %v858 = vpop.f32.mrb[0].mxu0
      %v859 = vadd.f32 %v714, %v858
      %v860 = vpop.f32.mrb[0].mxu0
      %861 = vmatprep.mubr.f32.mxu0 %v397
      %862 = vmatmul.mubr.f32.gmra.mrb[0].mxu0 %v378
      %v863 = vpop.f32.mrb[0].mxu0
      %v864 = vadd.f32 %v719, %v863
      %v865 = vpop.f32.mrb[0].mxu0
      %866 = vmatprep.mubr.f32.mxu0 %v398
      %867 = vmatmul.mubr.f32.gmra.mrb[0].mxu0 %v379
      %v868 = vpop.f32.mrb[0].mxu0
      %v869 = vadd.f32 %v724, %v868
      %v870 = vpop.f32.mrb[0].mxu0
      %871 = vmatprep.mubr.f32.mxu0 %v399
      %872 = vmatmul.mubr.f32.gmra.mrb[0].mxu0 %v380
      %v873 = vpop.f32.mrb[0].mxu0
      %v874 = vadd.f32 %v729, %v873
      %v875 = vpop.f32.mrb[0].mxu0
      %876 = vmatprep.mubr.f32.mxu0 %v400
      %877 = vmatmul.mubr.f32.gmra.mrb[0].mxu0 %v381
      %v878 = vpop.f32.mrb[0].mxu0
      %v879 = vadd.f32 %v734, %v878
      %v880 = vpop.f32.mrb[0].mxu0
      %881 = vmatprep.mubr.f32.mxu0 %v401
      %882 = vmatmul.mubr.f32.gmra.mrb[0].mxu0 %v382
      %v883 = vpop.f32.mrb[0].mxu0
      %v884 = vadd.f32 %v739, %v883
      %v885 = vpop.f32.mrb[0].mxu0
      %886 = vmatprep.mubr.f32.mxu0 %v402
      %887 = vmatmul.mubr.f32.gmra.mrb[0].mxu0 %v383
      %v888 = vpop.f32.mrb[0].mxu0
      %v889 = vadd.f32 %v744, %v888
      %v890 = vpop.f32.mrb[0].mxu0
      %891 = vmatprep.mubr.f32.mxu0 %v403
      %892 = vmatmul.mubr.f32.gmra.mrb[0].mxu0 %v384
      %v893 = vpop.f32.mrb[0].mxu0
      %v894 = vadd.f32 %v749, %v893
      %v895 = vpop.f32.mrb[0].mxu0
      %896 = vmatprep.mubr.f32.mxu0 %v404
      %897 = vmatmul.mubr.f32.gmra.mrb[0].mxu0 %v385
      %v898 = vpop.f32.mrb[0].mxu0
      %v899 = vadd.f32 %v754, %v898
      %v900 = vpop.f32.mrb[0].mxu0
      %901 = vmatprep.mubr.f32.mxu0 %v405
      %902 = vmatmul.mubr.f32.gmra.mrb[0].mxu0 %v386
      %v903 = vpop.f32.mrb[0].mxu0
      %v904 = vadd.f32 %v759, %v903
      %v905 = vpop.f32.mrb[0].mxu0
      %906 = vmatprep.mubr.f32.mxu0 %v406
      %907 = vmatmul.mubr.f32.gmra.mrb[0].mxu0 %v387
      %v908 = vpop.f32.mrb[0].mxu0
      %v909 = vadd.f32 %v764, %v908
      %v910 = vpop.f32.mrb[0].mxu0
      %911 = vmatprep.mubr.f32.mxu0 %v407
      %912 = vmatmul.mubr.f32.gmra.mrb[0].mxu0 %v388
      %v913 = vpop.f32.mrb[0].mxu0
      %v914 = vadd.f32 %v769, %v913
      %v915 = vpop.f32.mrb[0].mxu0
      %916 = vmatprep.mubr.f32.mxu0 %v408
      %917 = vmatmul.mubr.f32.gmra.mrb[0].mxu0 %v389
      %v918 = vpop.f32.mrb[0].mxu0
      %v919 = vadd.f32 %v774, %v918
      %v920 = vpop.f32.mrb[0].mxu0
      %921 = vmatprep.mubr.f32.mxu0 %v409
      %922 = vmatmul.mubr.f32.gmra.mrb[0].mxu0 %v390
      %v923 = vpop.f32.mrb[0].mxu0
      %v924 = vadd.f32 %v779, %v923
      %v925 = vpop.f32.mrb[0].mxu0
      %926 = vdwg.mxu0
      %927 = vmatprep.subr.mxu0 0.0
      %928 = vmatpush1.msra.mxu0 %v557
      %929 = vmatprep.subr.mxu0 0.0
      %930 = vmatpush1.msra.mxu0 %v558
      %931 = vmatprep.subr.mxu0 0.0
      %932 = vmatpush1.msra.mxu0 %v559
      %933 = vmatprep.subr.mxu0 0.0
      %934 = vmatpush1.msra.mxu0 %v560
      %935 = vmatprep.subr.mxu0 0.0
      %936 = vmatpush1.msra.mxu0 %v561
      %937 = vmatprep.subr.mxu0 0.0
      %938 = vmatpush1.msra.mxu0 %v562
      %939 = vmatprep.subr.mxu0 0.0
      %940 = vmatpush1.msra.mxu0 %v563
      %941 = vmatprep.subr.mxu0 0.0
      %942 = vmatpush1.msra.mxu0 %v564
      %943 = vmatprep.subr.mxu0 0.0
      %944 = vmatpush1.msra.mxu0 %v565
      %945 = vmatprep.subr.mxu0 0.0
      %946 = vmatpush1.msra.mxu0 %v566
      %947 = vmatprep.subr.mxu0 0.0
      %948 = vmatpush1.msra.mxu0 %v567
      %949 = vmatprep.subr.mxu0 0.0
      %950 = vmatpush1.msra.mxu0 %v568
      %951 = vmatprep.subr.mxu0 0.0
      %952 = vmatpush1.msra.mxu0 %v569
      %953 = vmatprep.subr.mxu0 0.0
      %954 = vmatpush1.msra.mxu0 %v570
      %955 = vmatprep.subr.mxu0 0.0
      %956 = vmatpush1.msra.mxu0 %v571
      %957 = vmatprep.subr.mxu0 0.0
      %958 = vmatpush1.msra.mxu0 %v572
      %959 = vmatprep.subr.mxu0 0.0
      %960 = vmatpush1.msra.mxu0 %v573
      %961 = vmatprep.subr.mxu0 0.0
      %962 = vmatpush1.msra.mxu0 %v574
      %963 = vmatprep.subr.mxu0 0.0
      %964 = vmatpush1.msra.mxu0 %v575
      %965 = vmatprep.subr.mxu0 0.0
      %966 = vmatpush1.msra.mxu0 %v576
      %967 = vmatprep.subr.mxu0 0.0
      %968 = vmatpush1.msra.mxu0 %v577
      %969 = vmatprep.subr.mxu0 0.0
      %970 = vmatpush1.msra.mxu0 %v578
      %971 = vmatprep.subr.mxu0 0.0
      %972 = vmatpush1.msra.mxu0 %v579
      %973 = vmatprep.subr.mxu0 0.0
      %974 = vmatpush1.msra.mxu0 %v580
      %975 = vmatprep.subr.mxu0 0.0
      %976 = vmatpush1.msra.mxu0 %v581
      %977 = vmatprep.subr.mxu0 0.0
      %978 = vmatpush1.msra.mxu0 %v582
      %979 = vmatprep.subr.mxu0 0.0
      %980 = vmatpush1.msra.mxu0 %v583
      %981 = vmatprep.subr.mxu0 0.0
      %982 = vmatpush1.msra.mxu0 %v584
      %983 = vmatprep.subr.mxu0 0.0
      %984 = vmatpush1.msra.mxu0 %v585
      %985 = vmatprep.subr.mxu0 0.0
      %986 = vmatpush1.msra.mxu0 %v586
      %987 = vmatprep.subr.mxu0 0.0
      %988 = vmatpush1.msra.mxu0 %v587
      %989 = vmatprep.subr.mxu0 0.0
      %990 = vmatpush1.msra.mxu0 %v588
      %991 = vmatprep.mubr.f32.mxu0 %v426
      %992 = vmatmul.mubr.f32.gmra.mrb[0].mxu0 %v410
      %v993 = vpop.f32.mrb[0].mxu0
      %v994 = vadd.f32 %v849, %v993
      %v995 = vpop.f32.mrb[0].mxu0
      %996 = vmatprep.mubr.f32.mxu0 %v427
      %997 = vmatmul.mubr.f32.gmra.mrb[0].mxu0 %v411
      %v998 = vpop.f32.mrb[0].mxu0
      %v999 = vadd.f32 %v854, %v998
      %v1000 = vpop.f32.mrb[0].mxu0
      %1001 = vmatprep.mubr.f32.mxu0 %v428
      %1002 = vmatmul.mubr.f32.gmra.mrb[0].mxu0 %v412
      %v1003 = vpop.f32.mrb[0].mxu0
      %v1004 = vadd.f32 %v859, %v1003
      %v1005 = vpop.f32.mrb[0].mxu0
      %1006 = vmatprep.mubr.f32.mxu0 %v429
      %1007 = vmatmul.mubr.f32.gmra.mrb[0].mxu0 %v413
      %v1008 = vpop.f32.mrb[0].mxu0
      %v1009 = vadd.f32 %v864, %v1008
      %v1010 = vpop.f32.mrb[0].mxu0
      %1011 = vmatprep.mubr.f32.mxu0 %v430
      %1012 = vmatmul.mubr.f32.gmra.mrb[0].mxu0 %v414
      %v1013 = vpop.f32.mrb[0].mxu0
      %v1014 = vadd.f32 %v869, %v1013
      %v1015 = vpop.f32.mrb[0].mxu0
      %1016 = vmatprep.mubr.f32.mxu0 %v431
      %1017 = vmatmul.mubr.f32.gmra.mrb[0].mxu0 %v415
      %v1018 = vpop.f32.mrb[0].mxu0
      %v1019 = vadd.f32 %v874, %v1018
      %v1020 = vpop.f32.mrb[0].mxu0
      %1021 = vmatprep.mubr.f32.mxu0 %v432
      %1022 = vmatmul.mubr.f32.gmra.mrb[0].mxu0 %v416
      %v1023 = vpop.f32.mrb[0].mxu0
      %v1024 = vadd.f32 %v879, %v1023
      %v1025 = vpop.f32.mrb[0].mxu0
      %1026 = vmatprep.mubr.f32.mxu0 %v433
      %1027 = vmatmul.mubr.f32.gmra.mrb[0].mxu0 %v417
      %v1028 = vpop.f32.mrb[0].mxu0
      %v1029 = vadd.f32 %v884, %v1028
      %v1030 = vpop.f32.mrb[0].mxu0
      %1031 = vmatprep.mubr.f32.mxu0 %v434
      %1032 = vmatmul.mubr.f32.gmra.mrb[0].mxu0 %v418
      %v1033 = vpop.f32.mrb[0].mxu0
      %v1034 = vadd.f32 %v889, %v1033
      %v1035 = vpop.f32.mrb[0].mxu0
      %1036 = vmatprep.mubr.f32.mxu0 %v435
      %1037 = vmatmul.mubr.f32.gmra.mrb[0].mxu0 %v419
      %v1038 = vpop.f32.mrb[0].mxu0
      %v1039 = vadd.f32 %v894, %v1038
      %v1040 = vpop.f32.mrb[0].mxu0
      %1041 = vmatprep.mubr.f32.mxu0 %v436
      %1042 = vmatmul.mubr.f32.gmra.mrb[0].mxu0 %v420
      %v1043 = vpop.f32.mrb[0].mxu0
      %v1044 = vadd.f32 %v899, %v1043
      %v1045 = vpop.f32.mrb[0].mxu0
      %1046 = vmatprep.mubr.f32.mxu0 %v437
      %1047 = vmatmul.mubr.f32.gmra.mrb[0].mxu0 %v421
      %v1048 = vpop.f32.mrb[0].mxu0
      %v1049 = vadd.f32 %v904, %v1048
      %v1050 = vpop.f32.mrb[0].mxu0
      %1051 = vmatprep.mubr.f32.mxu0 %v438
      %1052 = vmatmul.mubr.f32.gmra.mrb[0].mxu0 %v422
      %v1053 = vpop.f32.mrb[0].mxu0
      %v1054 = vadd.f32 %v909, %v1053
      %v1055 = vpop.f32.mrb[0].mxu0
      %1056 = vmatprep.mubr.f32.mxu0 %v439
      %1057 = vmatmul.mubr.f32.gmra.mrb[0].mxu0 %v423
      %v1058 = vpop.f32.mrb[0].mxu0
      %v1059 = vadd.f32 %v914, %v1058
      %v1060 = vpop.f32.mrb[0].mxu0
      %1061 = vmatprep.mubr.f32.mxu0 %v440
      %1062 = vmatmul.mubr.f32.gmra.mrb[0].mxu0 %v424
      %v1063 = vpop.f32.mrb[0].mxu0
      %v1064 = vadd.f32 %v919, %v1063
      %v1065 = vpop.f32.mrb[0].mxu0
      %1066 = vmatprep.mubr.f32.mxu0 %v441
      %1067 = vmatmul.mubr.f32.gmra.mrb[0].mxu0 %v425
      %v1068 = vpop.f32.mrb[0].mxu0
      %v1069 = vadd.f32 %v924, %v1068
      %v1070 = vpop.f32.mrb[0].mxu0
      %1071 = vdwg.mxu0
      %1072 = vmatprep.subr.mxu0 0.0
      %1073 = vmatpush1.msra.mxu0 %v589
      %1074 = vmatprep.subr.mxu0 0.0
      %1075 = vmatpush1.msra.mxu0 %v590
      %1076 = vmatprep.subr.mxu0 0.0
      %1077 = vmatpush1.msra.mxu0 %v591
      %1078 = vmatprep.subr.mxu0 0.0
      %1079 = vmatpush1.msra.mxu0 %v592
      %1080 = vmatprep.subr.mxu0 0.0
      %1081 = vmatpush1.msra.mxu0 %v593
      %1082 = vmatprep.subr.mxu0 0.0
      %1083 = vmatpush1.msra.mxu0 %v594
      %1084 = vmatprep.subr.mxu0 0.0
      %1085 = vmatpush1.msra.mxu0 %v595
      %1086 = vmatprep.subr.mxu0 0.0
      %1087 = vmatpush1.msra.mxu0 %v596
      %1088 = vmatprep.subr.mxu0 0.0
      %1089 = vmatpush1.msra.mxu0 %v597
      %1090 = vmatprep.subr.mxu0 0.0
      %1091 = vmatpush1.msra.mxu0 %v598
      %1092 = vmatprep.subr.mxu0 0.0
      %1093 = vmatpush1.msra.mxu0 %v599
      %1094 = vmatprep.subr.mxu0 0.0
      %1095 = vmatpush1.msra.mxu0 %v600
      %1096 = vmatprep.subr.mxu0 0.0
      %1097 = vmatpush1.msra.mxu0 %v601
      %1098 = vmatprep.subr.mxu0 0.0
      %1099 = vmatpush1.msra.mxu0 %v602
      %1100 = vmatprep.subr.mxu0 0.0
      %1101 = vmatpush1.msra.mxu0 %v603
      %1102 = vmatprep.subr.mxu0 0.0
      %1103 = vmatpush1.msra.mxu0 %v604
      %1104 = vmatprep.subr.mxu0 0.0
      %1105 = vmatpush1.msra.mxu0 %v605
      %1106 = vmatprep.subr.mxu0 0.0
      %1107 = vmatpush1.msra.mxu0 %v606
      %1108 = vmatprep.subr.mxu0 0.0
      %1109 = vmatpush1.msra.mxu0 %v607
      %1110 = vmatprep.subr.mxu0 0.0
      %1111 = vmatpush1.msra.mxu0 %v608
      %1112 = vmatprep.subr.mxu0 0.0
      %1113 = vmatpush1.msra.mxu0 %v609
      %1114 = vmatprep.subr.mxu0 0.0
      %1115 = vmatpush1.msra.mxu0 %v610
      %1116 = vmatprep.subr.mxu0 0.0
      %1117 = vmatpush1.msra.mxu0 %v611
      %1118 = vmatprep.subr.mxu0 0.0
      %1119 = vmatpush1.msra.mxu0 %v612
      %1120 = vmatprep.subr.mxu0 0.0
      %1121 = vmatpush1.msra.mxu0 %v613
      %1122 = vmatprep.subr.mxu0 0.0
      %1123 = vmatpush1.msra.mxu0 %v614
      %1124 = vmatprep.subr.mxu0 0.0
      %1125 = vmatpush1.msra.mxu0 %v615
      %1126 = vmatprep.subr.mxu0 0.0
      %1127 = vmatpush1.msra.mxu0 %v616
      %1128 = vmatprep.subr.mxu0 0.0
      %1129 = vmatpush1.msra.mxu0 %v617
      %1130 = vmatprep.subr.mxu0 0.0
      %1131 = vmatpush1.msra.mxu0 %v618
      %1132 = vmatprep.subr.mxu0 0.0
      %1133 = vmatpush1.msra.mxu0 %v619
      %1134 = vmatprep.subr.mxu0 0.0
      %1135 = vmatpush1.msra.mxu0 %v620
      %1136 = vmatprep.mubr.f32.mxu0 %v461
      %1137 = vmatmul.mubr.f32.gmra.mrb[0].mxu0 %v445
      %v1138 = vpop.f32.mrb[0].mxu0
      %v1139 = vadd.f32 %v994, %v1138
      %v1140 = vpop.f32.mrb[0].mxu0
      %1141 = vmatprep.mubr.f32.mxu0 %v462
      %1142 = vmatmul.mubr.f32.gmra.mrb[0].mxu0 %v446
      %v1143 = vpop.f32.mrb[0].mxu0
      %v1144 = vadd.f32 %v999, %v1143
      %v1145 = vpop.f32.mrb[0].mxu0
      %1146 = vmatprep.mubr.f32.mxu0 %v463
      %1147 = vmatmul.mubr.f32.gmra.mrb[0].mxu0 %v447
      %v1148 = vpop.f32.mrb[0].mxu0
      %v1149 = vadd.f32 %v1004, %v1148
      %v1150 = vpop.f32.mrb[0].mxu0
      %1151 = vmatprep.mubr.f32.mxu0 %v464
      %1152 = vmatmul.mubr.f32.gmra.mrb[0].mxu0 %v448
      %v1153 = vpop.f32.mrb[0].mxu0
      %v1154 = vadd.f32 %v1009, %v1153
      %v1155 = vpop.f32.mrb[0].mxu0
      %1156 = vmatprep.mubr.f32.mxu0 %v465
      %1157 = vmatmul.mubr.f32.gmra.mrb[0].mxu0 %v449
      %v1158 = vpop.f32.mrb[0].mxu0
      %v1159 = vadd.f32 %v1014, %v1158
      %v1160 = vpop.f32.mrb[0].mxu0
      %1161 = vmatprep.mubr.f32.mxu0 %v466
      %1162 = vmatmul.mubr.f32.gmra.mrb[0].mxu0 %v450
      %v1163 = vpop.f32.mrb[0].mxu0
      %v1164 = vadd.f32 %v1019, %v1163
      %v1165 = vpop.f32.mrb[0].mxu0
      %1166 = vmatprep.mubr.f32.mxu0 %v467
      %1167 = vmatmul.mubr.f32.gmra.mrb[0].mxu0 %v451
      %v1168 = vpop.f32.mrb[0].mxu0
      %v1169 = vadd.f32 %v1024, %v1168
      %v1170 = vpop.f32.mrb[0].mxu0
      %1171 = vmatprep.mubr.f32.mxu0 %v468
      %1172 = vmatmul.mubr.f32.gmra.mrb[0].mxu0 %v452
      %v1173 = vpop.f32.mrb[0].mxu0
      %v1174 = vadd.f32 %v1029, %v1173
      %v1175 = vpop.f32.mrb[0].mxu0
      %1176 = vmatprep.mubr.f32.mxu0 %v469
      %1177 = vmatmul.mubr.f32.gmra.mrb[0].mxu0 %v453
      %v1178 = vpop.f32.mrb[0].mxu0
      %v1179 = vadd.f32 %v1034, %v1178
      %v1180 = vpop.f32.mrb[0].mxu0
      %1181 = vmatprep.mubr.f32.mxu0 %v470
      %1182 = vmatmul.mubr.f32.gmra.mrb[0].mxu0 %v454
      %v1183 = vpop.f32.mrb[0].mxu0
      %v1184 = vadd.f32 %v1039, %v1183
      %v1185 = vpop.f32.mrb[0].mxu0
      %1186 = vmatprep.mubr.f32.mxu0 %v471
      %1187 = vmatmul.mubr.f32.gmra.mrb[0].mxu0 %v455
      %v1188 = vpop.f32.mrb[0].mxu0
      %v1189 = vadd.f32 %v1044, %v1188
      %v1190 = vpop.f32.mrb[0].mxu0
      %1191 = vmatprep.mubr.f32.mxu0 %v472
      %1192 = vmatmul.mubr.f32.gmra.mrb[0].mxu0 %v456
      %v1193 = vpop.f32.mrb[0].mxu0
      %v1194 = vadd.f32 %v1049, %v1193
      %v1195 = vpop.f32.mrb[0].mxu0
      %1196 = vmatprep.mubr.f32.mxu0 %v473
      %1197 = vmatmul.mubr.f32.gmra.mrb[0].mxu0 %v457
      %v1198 = vpop.f32.mrb[0].mxu0
      %v1199 = vadd.f32 %v1054, %v1198
      %v1200 = vpop.f32.mrb[0].mxu0
      %1201 = vmatprep.mubr.f32.mxu0 %v474
      %1202 = vmatmul.mubr.f32.gmra.mrb[0].mxu0 %v458
      %v1203 = vpop.f32.mrb[0].mxu0
      %v1204 = vadd.f32 %v1059, %v1203
      %v1205 = vpop.f32.mrb[0].mxu0
      %1206 = vmatprep.mubr.f32.mxu0 %v475
      %1207 = vmatmul.mubr.f32.gmra.mrb[0].mxu0 %v459
      %v1208 = vpop.f32.mrb[0].mxu0
      %v1209 = vadd.f32 %v1064, %v1208
      %v1210 = vpop.f32.mrb[0].mxu0
      %1211 = vmatprep.mubr.f32.mxu0 %v476
      %1212 = vmatmul.mubr.f32.gmra.mrb[0].mxu0 %v460
      %v1213 = vpop.f32.mrb[0].mxu0
      %v1214 = vadd.f32 %v1069, %v1213
      %v1215 = vpop.f32.mrb[0].mxu0
      %1216 = vdwg.mxu0
      %1217 = vmatprep.subr.mxu0 0.0
      %1218 = vmatpush1.msra.mxu0 %v621
      %1219 = vmatprep.subr.mxu0 0.0
      %1220 = vmatpush1.msra.mxu0 %v622
      %1221 = vmatprep.subr.mxu0 0.0
      %1222 = vmatpush1.msra.mxu0 %v623
      %1223 = vmatprep.subr.mxu0 0.0
      %1224 = vmatpush1.msra.mxu0 %v624
      %1225 = vmatprep.subr.mxu0 0.0
      %1226 = vmatpush1.msra.mxu0 %v625
      %1227 = vmatprep.subr.mxu0 0.0
      %1228 = vmatpush1.msra.mxu0 %v626
      %1229 = vmatprep.subr.mxu0 0.0
      %1230 = vmatpush1.msra.mxu0 %v627
      %1231 = vmatprep.subr.mxu0 0.0
      %1232 = vmatpush1.msra.mxu0 %v628
      %1233 = vmatprep.subr.mxu0 0.0
      %1234 = vmatpush1.msra.mxu0 %v629
      %1235 = vmatprep.subr.mxu0 0.0
      %1236 = vmatpush1.msra.mxu0 %v630
      %1237 = vmatprep.subr.mxu0 0.0
      %1238 = vmatpush1.msra.mxu0 %v631
      %1239 = vmatprep.subr.mxu0 0.0
      %1240 = vmatpush1.msra.mxu0 %v632
      %1241 = vmatprep.subr.mxu0 0.0
      %1242 = vmatpush1.msra.mxu0 %v633
      %1243 = vmatprep.subr.mxu0 0.0
      %1244 = vmatpush1.msra.mxu0 %v634
      %1245 = vmatprep.subr.mxu0 0.0
      %1246 = vmatpush1.msra.mxu0 %v635
      %1247 = vmatprep.subr.mxu0 0.0
      %1248 = vmatpush1.msra.mxu0 %v636
      %1249 = vmatprep.subr.mxu0 0.0
      %1250 = vmatpush1.msra.mxu0 0.0
      %1251 = vmatprep.subr.mxu0 0.0
      %1252 = vmatpush1.msra.mxu0 0.0
      %1253 = vmatprep.subr.mxu0 0.0
      %1254 = vmatpush1.msra.mxu0 0.0
      %1255 = vmatprep.subr.mxu0 0.0
      %1256 = vmatpush1.msra.mxu0 0.0
      %1257 = vmatprep.subr.mxu0 0.0
      %1258 = vmatpush1.msra.mxu0 0.0
      %1259 = vmatprep.subr.mxu0 0.0
      %1260 = vmatpush1.msra.mxu0 0.0
      %1261 = vmatprep.subr.mxu0 0.0
      %1262 = vmatpush1.msra.mxu0 0.0
      %1263 = vmatprep.subr.mxu0 0.0
      %1264 = vmatpush1.msra.mxu0 0.0
      %1265 = vmatprep.subr.mxu0 0.0
      %1266 = vmatpush1.msra.mxu0 0.0
      %1267 = vmatprep.subr.mxu0 0.0
      %1268 = vmatpush1.msra.mxu0 0.0
      %1269 = vmatprep.subr.mxu0 0.0
      %1270 = vmatpush1.msra.mxu0 0.0
      %1271 = vmatprep.subr.mxu0 0.0
      %1272 = vmatpush1.msra.mxu0 0.0
      %1273 = vmatprep.subr.mxu0 0.0
      %1274 = vmatpush1.msra.mxu0 0.0
      %1275 = vmatprep.subr.mxu0 0.0
      %1276 = vmatpush1.msra.mxu0 0.0
      %1277 = vmatprep.subr.mxu0 0.0
      %1278 = vmatpush1.msra.mxu0 0.0
      %1279 = vmatprep.subr.mxu0 0.0
      %1280 = vmatpush1.msra.mxu0 0.0
      %1281 = vmatprep.mubr.f32.mxu0 0.0
      %1282 = vmatmul.mubr.f32.gmra.mrb[0].mxu0 %v477
      %v1283 = vpop.f32.mrb[0].mxu0
      %v1284 = vadd.f32 %v1139, %v1283
      %v1285 = vpop.f32.mrb[0].mxu0
      %1286 = vmatprep.mubr.f32.mxu0 0.0
      %1287 = vmatmul.mubr.f32.gmra.mrb[0].mxu0 %v478
      %v1288 = vpop.f32.mrb[0].mxu0
      %v1289 = vadd.f32 %v1144, %v1288
      %v1290 = vpop.f32.mrb[0].mxu0
      %1291 = vmatprep.mubr.f32.mxu0 0.0
      %1292 = vmatmul.mubr.f32.gmra.mrb[0].mxu0 %v479
      %v1293 = vpop.f32.mrb[0].mxu0
      %v1294 = vadd.f32 %v1149, %v1293
      %v1295 = vpop.f32.mrb[0].mxu0
      %1296 = vmatprep.mubr.f32.mxu0 0.0
      %1297 = vmatmul.mubr.f32.gmra.mrb[0].mxu0 %v480
      %v1298 = vpop.f32.mrb[0].mxu0
      %v1299 = vadd.f32 %v1154, %v1298
      %v1300 = vpop.f32.mrb[0].mxu0
      %1301 = vmatprep.mubr.f32.mxu0 0.0
      %1302 = vmatmul.mubr.f32.gmra.mrb[0].mxu0 %v481
      %v1303 = vpop.f32.mrb[0].mxu0
      %v1304 = vadd.f32 %v1159, %v1303
      %v1305 = vpop.f32.mrb[0].mxu0
      %1306 = vmatprep.mubr.f32.mxu0 0.0
      %1307 = vmatmul.mubr.f32.gmra.mrb[0].mxu0 %v482
      %v1308 = vpop.f32.mrb[0].mxu0
      %v1309 = vadd.f32 %v1164, %v1308
      %v1310 = vpop.f32.mrb[0].mxu0
      %1311 = vmatprep.mubr.f32.mxu0 0.0
      %1312 = vmatmul.mubr.f32.gmra.mrb[0].mxu0 %v483
      %v1313 = vpop.f32.mrb[0].mxu0
      %v1314 = vadd.f32 %v1169, %v1313
      %v1315 = vpop.f32.mrb[0].mxu0
      %1316 = vmatprep.mubr.f32.mxu0 0.0
      %1317 = vmatmul.mubr.f32.gmra.mrb[0].mxu0 %v484
      %v1318 = vpop.f32.mrb[0].mxu0
      %v1319 = vadd.f32 %v1174, %v1318
      %v1320 = vpop.f32.mrb[0].mxu0
      %1321 = vmatprep.mubr.f32.mxu0 0.0
      %1322 = vmatmul.mubr.f32.gmra.mrb[0].mxu0 %v485
      %v1323 = vpop.f32.mrb[0].mxu0
      %v1324 = vadd.f32 %v1179, %v1323
      %v1325 = vpop.f32.mrb[0].mxu0
      %1326 = vmatprep.mubr.f32.mxu0 0.0
      %1327 = vmatmul.mubr.f32.gmra.mrb[0].mxu0 %v486
      %v1328 = vpop.f32.mrb[0].mxu0
      %v1329 = vadd.f32 %v1184, %v1328
      %v1330 = vpop.f32.mrb[0].mxu0
      %1331 = vmatprep.mubr.f32.mxu0 0.0
      %1332 = vmatmul.mubr.f32.gmra.mrb[0].mxu0 %v487
      %v1333 = vpop.f32.mrb[0].mxu0
      %v1334 = vadd.f32 %v1189, %v1333
      %v1335 = vpop.f32.mrb[0].mxu0
      %1336 = vmatprep.mubr.f32.mxu0 0.0
      %1337 = vmatmul.mubr.f32.gmra.mrb[0].mxu0 %v488
      %v1338 = vpop.f32.mrb[0].mxu0
      %v1339 = vadd.f32 %v1194, %v1338
      %v1340 = vpop.f32.mrb[0].mxu0
      %1341 = vmatprep.mubr.f32.mxu0 0.0
      %1342 = vmatmul.mubr.f32.gmra.mrb[0].mxu0 %v489
      %v1343 = vpop.f32.mrb[0].mxu0
      %v1344 = vadd.f32 %v1199, %v1343
      %v1345 = vpop.f32.mrb[0].mxu0
      %1346 = vmatprep.mubr.f32.mxu0 0.0
      %1347 = vmatmul.mubr.f32.gmra.mrb[0].mxu0 %v490
      %v1348 = vpop.f32.mrb[0].mxu0
      %v1349 = vadd.f32 %v1204, %v1348
      %v1350 = vpop.f32.mrb[0].mxu0
      %1351 = vmatprep.mubr.f32.mxu0 0.0
      %1352 = vmatmul.mubr.f32.gmra.mrb[0].mxu0 %v491
      %v1353 = vpop.f32.mrb[0].mxu0
      %v1354 = vadd.f32 %v1209, %v1353
      %v1355 = vpop.f32.mrb[0].mxu0
      %1356 = vmatprep.mubr.f32.mxu0 0.0
      %1357 = vmatmul.mubr.f32.gmra.mrb[0].mxu0 %v492
      %v1358 = vpop.f32.mrb[0].mxu0
      %v1359 = vadd.f32 %v1214, %v1358
      %v1360 = vpop.f32.mrb[0].mxu0
      %1361 = vdwg.mxu0
      %1362 = vst [vmem:[%s207] sm:$0xff] %v1284
      %1363 = vst [vmem:[%s207 + $0x8] sm:$0xff] %v1289
      %1364 = vst [vmem:[%s207 + $0x10] sm:$0xff] %v1294
      %1365 = vst [vmem:[%s207 + $0x18] sm:$0xff] %v1299
      %1366 = vst [vmem:[%s207 + $0x20] sm:$0xff] %v1304
      %1367 = vst [vmem:[%s207 + $0x28] sm:$0xff] %v1309
      %1368 = vst [vmem:[%s207 + $0x30] sm:$0xff] %v1314
      %1369 = vst [vmem:[%s207 + $0x38] sm:$0xff] %v1319
      %1370 = vst [vmem:[%s207 + $0x40] sm:$0xff] %v1324
      %1371 = vst [vmem:[%s207 + $0x48] sm:$0xff] %v1329
      %1372 = vst [vmem:[%s207 + $0x50] sm:$0xff] %v1334
      %1373 = vst [vmem:[%s207 + $0x58] sm:$0xff] %v1339
      %1374 = vst [vmem:[%s207 + $0x60] sm:$0xff] %v1344
      %1375 = vst [vmem:[%s207 + $0x68] sm:$0xff] %v1349
      %1376 = vst [vmem:[%s207 + $0x70] sm:$0xff] %v1354
      %1377 = vst [vmem:[%s207 + $0x78] sm:$0xff] %v1359
      %v1378 = vadd.f32 %v1284, %v1289
      %v1379 = vadd.f32 %v1378, %v1294
      %v1380 = vadd.f32 %v1379, %v1299
      %v1381 = vadd.f32 %v1380, %v1304
      %v1382 = vadd.f32 %v1381, %v1309
      %v1383 = vadd.f32 %v1382, %v1314
      %v1384 = vadd.f32 %v1383, %v1319
      %v1385 = vadd.f32 %v1384, %v1324
      %v1386 = vadd.f32 %v1385, %v1329
      %v1387 = vadd.f32 %v1386, %v1334
      %v1388 = vadd.f32 %v1387, %v1339
      %v1389 = vadd.f32 %v1388, %v1344
      %v1390 = vadd.f32 %v1389, %v1349
      %v1391 = vadd.f32 %v1390, %v1354
      %v1392 = vadd.f32 %v1391, %v1359
      %v1393 = vrot.slane %v1392, 4
      %v1394 = vadd.f32 %v1392, %v1393
      %v1395 = vrot.slane %v1394, 2
      %v1396 = vadd.f32 %v1394, %v1395
      %v1397 = vrot.slane %v1396, 1
      %v1398 = vadd.f32 %v1396, %v1397
      %1399 = vst [vmem:[%s216] sm:$0x1] %v1398
      %v1400 = vmul.f32 %v1284, %v1284
      %v1401 = vmul.f32 %v1289, %v1289
      %v1402 = vmul.f32 %v1294, %v1294
      %v1403 = vmul.f32 %v1299, %v1299
      %v1404 = vmul.f32 %v1304, %v1304
      %v1405 = vmul.f32 %v1309, %v1309
      %v1406 = vmul.f32 %v1314, %v1314
      %v1407 = vmul.f32 %v1319, %v1319
      %v1408 = vmul.f32 %v1324, %v1324
      %v1409 = vmul.f32 %v1329, %v1329
      %v1410 = vmul.f32 %v1334, %v1334
      %v1411 = vmul.f32 %v1339, %v1339
      %v1412 = vmul.f32 %v1344, %v1344
      %v1413 = vmul.f32 %v1349, %v1349
      %v1414 = vmul.f32 %v1354, %v1354
      %v1415 = vmul.f32 %v1359, %v1359
      %v1416 = vadd.f32 %v1400, %v1401
      %v1417 = vadd.f32 %v1416, %v1402
      %v1418 = vadd.f32 %v1417, %v1403
      %v1419 = vadd.f32 %v1418, %v1404
      %v1420 = vadd.f32 %v1419, %v1405
      %v1421 = vadd.f32 %v1420, %v1406
      %v1422 = vadd.f32 %v1421, %v1407
      %v1423 = vadd.f32 %v1422, %v1408
      %v1424 = vadd.f32 %v1423, %v1409
      %v1425 = vadd.f32 %v1424, %v1410
      %v1426 = vadd.f32 %v1425, %v1411
      %v1427 = vadd.f32 %v1426, %v1412
      %v1428 = vadd.f32 %v1427, %v1413
      %v1429 = vadd.f32 %v1428, %v1414
      %v1430 = vadd.f32 %v1429, %v1415
      %v1431 = vrot.slane %v1430, 4
      %v1432 = vadd.f32 %v1430, %v1431
      %v1433 = vrot.slane %v1432, 2
      %v1434 = vadd.f32 %v1432, %v1433
      %v1435 = vrot.slane %v1434, 1
      %v1436 = vadd.f32 %v1434, %v1435
      %1437 = vst [vmem:[%s216 + $0x1] sm:$0x1] %v1436
      %s1438 = smul.u32 8, %s20
      %p1439 = scmp.lt.s32.totalorder %s19, 1
      %s1440 = scalar_select %p1439, %s19, 1
      %p1441 = scmp.lt.s32.totalorder %s1438, 15
      %s1442 = scalar_select %p1441, %s1438, 15
      %s1443 = smul.addr %s1442, 2
      %s1444 = smul.addr %s1440, 32
      %s1445 = sadd.s32 %s1443, %s1444
      %s1446 = smul.addr %s1445, 8
      %s1447 = scalar_lea.vmem %s2, %s1446
      %p1448 = scmp.lt.s32.totalorder %s19, 1
      %s1449 = scalar_select %p1448, %s19, 1
      %p1450 = scmp.lt.s32.totalorder %s20, 1
      %s1451 = scalar_select %p1450, %s20, 1
      %s1452 = smul.addr %s1449, 2
      %s1453 = sadd.s32 %s1451, %s1452
      %s1454 = smul.addr %s1453, 2
      %s1455 = scalar_lea.vmem %s3, %s1454
      // Predicated region
      $region33: #{double_conv_forward.6} parent=27 // pred_check
        %p1456 = pneg %p94
      $region34: #{double_conv_forward.6} parent=27 // pred_check_branch
        %1458 = sbr.rel (%p1456) target = $region36
      $region35: #{double_conv_forward.6} parent=27 // pred_region
        %s1459 = smul.u32 8, %s20
      $region36: #{double_conv_forward.6} parent=27 // pred_fallthru
        _
      // Predicated region
      $region37: #{double_conv_forward.6} parent=27 // pred_check
        %p1460 = pneg %p122
      $region38: #{double_conv_forward.6} parent=27 // pred_check_branch
        %1462 = sbr.rel (%p1460) target = $region40
      $region39: #{double_conv_forward.6} parent=27 // pred_region
        _
      $region40: #{double_conv_forward.6} parent=27 // pred_fallthru
        _
    $region28: #{double_conv_forward.6} parent=5 // pred_fallthru
      _
    %p1463 = scmp.le.s32.totalorder 2, %s10
    // Predicated region
    $region41: #{double_conv_forward.6} parent=5 // pred_check
      %p1464 = pneg %p1463
    $region42: #{double_conv_forward.6} parent=5 // pred_check_branch
      %1466 = sbr.rel (%p1464) target = $region44
    $region43: #{double_conv_forward.6} parent=5 // pred_region
      %s1467 = ssub.s32 %s10, 2
      // Predicated region
      $region45: #{double_conv_forward.6} parent=43 // pred_check
        %p1468 = pneg %p100
      $region46: #{double_conv_forward.6} parent=43 // pred_check_branch
        %1470 = sbr.rel (%p1468) target = $region48
      $region47: #{double_conv_forward.6} parent=43 // pred_region
        %s1471 = smul.u32 8, %s22
        %p1472 = scmp.lt.s32.totalorder %s21, 1
        %s1473 = scalar_select %p1472, %s21, 1
        %p1474 = scmp.lt.s32.totalorder %s1471, 15
        %s1475 = scalar_select %p1474, %s1471, 15
        %s1476 = smul.addr %s1475, 2
        %s1477 = smul.addr %s1473, 32
        %s1478 = sadd.s32 %s1476, %s1477
        %s1479 = smul.addr %s1478, 8
        %s1480 = scalar_lea.vmem %s2, %s1479
      $region48: #{double_conv_forward.6} parent=43 // pred_fallthru
        _
      // Predicated region
      $region49: #{double_conv_forward.6} parent=43 // pred_check
        %p1481 = pneg %p128
      $region50: #{double_conv_forward.6} parent=43 // pred_check_branch
        %1483 = sbr.rel (%p1481) target = $region52
      $region51: #{double_conv_forward.6} parent=43 // pred_region
        %p1484 = scmp.lt.s32.totalorder %s21, 1
        %s1485 = scalar_select %p1484, %s21, 1
        %p1486 = scmp.lt.s32.totalorder %s22, 1
        %s1487 = scalar_select %p1486, %s22, 1
        %s1488 = smul.addr %s1485, 2
        %s1489 = sadd.s32 %s1487, %s1488
        %s1490 = smul.addr %s1489, 2
        %s1491 = scalar_lea.vmem %s3, %s1490
      $region52: #{double_conv_forward.6} parent=43 // pred_fallthru
        _
    $region44: #{double_conv_forward.6} parent=5 // pred_fallthru
      _
  $region6: #{double_conv_forward.6} parent=0 // loop_footer
    %s14 = sadd.s32 1, %s10
  $region7: #{double_conv_forward.6} parent=0 // loop_footer_branch
    %9 = sbr.rel target = $region3
  $region8: #{double_conv_forward.6} parent=0 // loop_exit
    _

</llo_original>
